<compile_context>
chip_gen: v7x
topology: tpu7x:2x2x1
jax: 0.10.0
libtpu: 0.0.40
codegen_flags: <defaults>
</compile_context>

<pallas_src>
import functools

import jax
import jax.numpy as jnp
from jax.experimental import pallas as pl
from jax.experimental.pallas import tpu as pltpu


def _vmem_spec():
    return pl.BlockSpec(memory_space=pltpu.MemorySpace.VMEM)


def _pick_tile_m(M):
    """Largest M-tile (multiple of 8, < M so the grid pipelines / megacore-shards)."""
    # Sized so double-buffered in/out tiles stay far below v7x's 32 MiB scoped VMEM.
    for t in (4096, 2048, 1024, 512, 256, 128, 64, 32, 16, 8):
        if t < M and M % t == 0:
            return t
    return M


# ----------------------------- Pallas kernels -----------------------------

def _backbone_rpn_kernel(x_ref, bbw_ref, bbb_ref, rpnw_ref, rpnb_ref,
                         feat_ref, rpn_ref):
    """Fused: feat = relu(x @ bb_w + bb_b);  rpn = feat @ [obj_w | reg_w] + b."""
    # bf16 into the MXU, f32 accumulation; elementwise epilogue in f32.
    x = x_ref[...].astype(jnp.bfloat16)
    feat = jnp.dot(x, bbw_ref[...], preferred_element_type=jnp.float32)
    feat = jnp.maximum(feat + bbb_ref[...], 0.0)
    rpn = jnp.dot(feat.astype(jnp.bfloat16), rpnw_ref[...],
                  preferred_element_type=jnp.float32)
    rpn_ref[...] = rpn + rpnb_ref[...]
    feat_ref[...] = feat.astype(feat_ref.dtype)


def backbone_rpn_pallas(x_flat, bb_w, bb_b, rpn_w, rpn_b):
    """x:(M,C) f32; bb_w:(C,F) bf16; rpn_w:(F,5A) bf16; biases (1,F)/(1,5A) f32.

    Returns (feat (M,F) bf16, rpn (M,5A) f32)."""
    M, C = x_flat.shape
    F = bb_w.shape[1]
    R = rpn_w.shape[1]
    tm = _pick_tile_m(M)
    const = lambda i: (0, 0)          # weights/bias stay VMEM-resident across the grid
    return pl.pallas_call(
        _backbone_rpn_kernel,
        out_shape=(jax.ShapeDtypeStruct((M, F), jnp.bfloat16),
                   jax.ShapeDtypeStruct((M, R), jnp.float32)),
        grid=(M // tm,),
        in_specs=[
            pl.BlockSpec((tm, C), lambda i: (i, 0)),
            pl.BlockSpec((C, F), const),
            pl.BlockSpec((1, F), const),
            pl.BlockSpec((F, R), const),
            pl.BlockSpec((1, R), const),
        ],
        out_specs=(pl.BlockSpec((tm, F), lambda i: (i, 0)),
                   pl.BlockSpec((tm, R), lambda i: (i, 0))),
        compiler_params=pltpu.CompilerParams(
            dimension_semantics=("parallel",)),
    )(x_flat, bb_w, bb_b, rpn_w, rpn_b)


def _roi_head_kernel(x_ref, fc1w_ref, fc1b_ref, fc2w_ref, fc2b_ref,
                     predw_ref, predb_ref, o_ref):
    """Fused box-head MLP + concatenated cls/box/s2 predictors; h1/h2 stay in VMEM."""
    x = x_ref[...].astype(jnp.float32)
    h1 = jnp.maximum(
        jnp.dot(x, fc1w_ref[...], preferred_element_type=jnp.float32) + fc1b_ref[...], 0.0)
    h2 = jnp.maximum(
        jnp.dot(h1, fc2w_ref[...], preferred_element_type=jnp.float32) + fc2b_ref[...], 0.0)
    o_ref[...] = jnp.dot(h2, predw_ref[...],
                         preferred_element_type=jnp.float32) + predb_ref[...]


def roi_head_pallas(pooled, fc1_w, fc1_b, fc2_w, fc2_b, pred_w, pred_b):
    M, _ = pooled.shape
    P = pred_w.shape[1]
    return pl.pallas_call(
        _roi_head_kernel,
        out_shape=jax.ShapeDtypeStruct((M, P), jnp.float32),
        in_specs=[_vmem_spec()] * 7,
        out_specs=_vmem_spec(),
    )(pooled, fc1_w, fc1_b.reshape(1, -1), fc2_w, fc2_b.reshape(1, -1),
      pred_w, pred_b.reshape(1, -1))


# ----------------------------- Parameters -----------------------------

def init_params(key, c_in=3, feat=32, hidden=64, num_anchors=3, num_classes=2):
    ks = jax.random.split(key, 10)

    def w(k, shape, scale=0.1):
        return jax.random.normal(k, shape, jnp.float32) * scale

    return dict(
        # transform (normalize)
        img_mean=jnp.array([[0.485, 0.456, 0.406]], jnp.float32),
        img_std=jnp.array([[0.229, 0.224, 0.225]], jnp.float32),
        # backbone: 1x1 conv C->F
        bb_w=w(ks[0], (c_in, feat)), bb_b=jnp.zeros((feat,), jnp.float32),
        # rpn heads (NOTE: reg head columns grouped [anchor0:(dx,dy,dw,dh), anchor1:...])
        rpn_obj_w=w(ks[1], (feat, num_anchors)), rpn_obj_b=jnp.zeros((num_anchors,), jnp.float32),
        rpn_reg_w=w(ks[2], (feat, 4 * num_anchors)), rpn_reg_b=jnp.zeros((4 * num_anchors,), jnp.float32),
        anchor_sizes=jnp.array([4.0, 8.0, 16.0], jnp.float32),
        # roi_heads: box head MLP + predictors
        fc1_w=w(ks[3], (feat, hidden)), fc1_b=jnp.zeros((hidden,), jnp.float32),
        fc2_w=w(ks[4], (hidden, hidden)), fc2_b=jnp.zeros((hidden,), jnp.float32),
        cls_w=w(ks[5], (hidden, num_classes)), cls_b=jnp.zeros((num_classes,), jnp.float32),
        box_w=w(ks[6], (hidden, 4 * num_classes)), box_b=jnp.zeros((4 * num_classes,), jnp.float32),
        # s2new: per ranked-box covid score
        s2_w=w(ks[7], (hidden, 1)), s2_b=jnp.zeros((1,), jnp.float32),
    )


# ----------------------------- Forward -----------------------------

@functools.partial(jax.jit, static_argnames=("num_proposals",))
def _rcnn_forward_impl(params, batch, num_proposals):
    N, C, H, W = batch.shape
    M = N * H * W
    x_flat = batch.transpose(0, 2, 3, 1).reshape(M, C)

    # ---- transform.normalize folded into the backbone conv:
    #      relu((x - m)/s @ W + b) == relu(x @ (W/s) + (b - (m/s) @ W))
    inv_std = 1.0 / params['img_std']                                   # (1, C)
    bb_w_f = (params['bb_w'] * inv_std.reshape(C, 1)).astype(jnp.bfloat16)
    bb_b_f = params['bb_b'] - jnp.squeeze((params['img_mean'] * inv_std) @ params['bb_w'], axis=0)

    # ---- RPN objectness + regression heads concatenated into one (F, 5A) matmul.
    rpn_w = jnp.concatenate([params['rpn_obj_w'], params['rpn_reg_w']], axis=1).astype(jnp.bfloat16)
    rpn_b = jnp.concatenate([params['rpn_obj_b'], params['rpn_reg_b']], axis=0)

    feat_flat, rpn_flat = backbone_rpn_pallas(
        x_flat, bb_w_f, bb_b_f.reshape(1, -1), rpn_w, rpn_b.reshape(1, -1))
    F = feat_flat.shape[1]
    A = params['rpn_obj_w'].shape[1]
    features = feat_flat.reshape(N, H, W, F)                            # bf16

    obj = rpn_flat[:, :A].reshape(N, H * W * A)
    deltas = rpn_flat[:, A:].reshape(N, H * W * A, 4)                   # per-anchor (dx,dy,dw,dh)

    # ---- anchor generation + proposal decode (f32 glue) ----
    ys, xs = jnp.meshgrid(jnp.arange(H, dtype=jnp.float32) + 0.5,
                          jnp.arange(W, dtype=jnp.float32) + 0.5, indexing='ij')
    anchors_cx = jnp.repeat(xs.reshape(-1), A)
    anchors_cy = jnp.repeat(ys.reshape(-1), A)
    anchors_s = jnp.tile(params['anchor_sizes'], H * W)

    K = num_proposals
    top_scores, top_idx = jax.lax.top_k(obj, K)                         # (N, K)
    sel_d = jnp.take_along_axis(deltas, top_idx[..., None], axis=1)     # (N, K, 4)
    a_cx = anchors_cx[top_idx]
    a_cy = anchors_cy[top_idx]
    a_s = anchors_s[top_idx]
    cx = a_cx + sel_d[..., 0] * a_s
    cy = a_cy + sel_d[..., 1] * a_s
    bw = a_s * jnp.exp(jnp.clip(sel_d[..., 2], -4.0, 4.0))
    bh = a_s * jnp.exp(jnp.clip(sel_d[..., 3], -4.0, 4.0))
    x1 = jnp.clip(cx - bw * 0.5, 0.0, float(W))
    y1 = jnp.clip(cy - bh * 0.5, 0.0, float(H))
    x2 = jnp.clip(cx + bw * 0.5, 0.0, float(W))
    y2 = jnp.clip(cy + bh * 0.5, 0.0, float(H))
    proposals = jnp.stack([x1, y1, x2, y2], axis=-1)                    # (N, K, 4)

    # ---- roi_heads ----
    # TODO(synk): RoIAlign bilinear pooling and per-class NMS have no clean Pallas
    # equivalent at this size; pooling is approximated by a box-center feature gather
    # (at real H/W this gather should move into the box-head kernel via
    # PrefetchScalarGridSpec + manual DMA from HBM-resident features) and NMS is
    # replaced with a score ranking.
    pcx = jnp.clip(((x1 + x2) * 0.5).astype(jnp.int32), 0, W - 1)
    pcy = jnp.clip(((y1 + y2) * 0.5).astype(jnp.int32), 0, H - 1)
    batch_idx = jnp.broadcast_to(jnp.arange(N)[:, None], (N, K))
    pooled = features[batch_idx, pcy, pcx]                              # (N, K, F) bf16

    n_cls = params['cls_w'].shape[1]
    pred_w = jnp.concatenate([params['cls_w'], params['box_w'], params['s2_w']], axis=1)
    pred_b = jnp.concatenate([params['cls_b'], params['box_b'], params['s2_b']], axis=0)
    pred = roi_head_pallas(pooled.reshape(N * K, F),
                           params['fc1_w'], params['fc1_b'],
                           params['fc2_w'], params['fc2_b'],
                           pred_w, pred_b)                              # (N*K, n_cls+4*n_cls+1)

    cls_logits = pred[:, :n_cls]
    _box_reg = pred[:, n_cls:5 * n_cls]                                 # computed, unused downstream
    s2_scores = pred[:, 5 * n_cls:5 * n_cls + 1]                        # s2new covid score / proposal

    probs = jax.nn.softmax(cls_logits, axis=-1).reshape(N, K, n_cls)
    fg_scores = probs[..., 1]
    labels = jnp.ones((N, K), jnp.int32)

    order = jnp.argsort(-fg_scores, axis=1)
    ranked_boxes = jnp.take_along_axis(proposals, order[..., None], axis=1)
    ranked_scores = jnp.take_along_axis(fg_scores, order, axis=1)
    ranked_s2 = jnp.take_along_axis(s2_scores.reshape(N, K, 1), order[..., None], axis=1)
    covid_scores = ranked_s2[0]                                         # image 0, (K, 1)

    # ---- transform.postprocess: rescale to original sizes (identity resize => 1.0) ----
    scale = jnp.array([1.0, 1.0, 1.0, 1.0], jnp.float32)
    ranked_boxes = ranked_boxes * scale

    return ranked_boxes, ranked_scores, labels, covid_scores


def generalized_rcnn_forward(params, images, targets=None, training=False, num_proposals=8):
    if training and targets is None:
        raise ValueError('In training mode, targets should be passed')

    batch = jnp.stack(images, axis=0)                                   # (N, C, H, W)
    boxes, scores, labels, covid = _rcnn_forward_impl(params, batch, num_proposals=num_proposals)

    N = batch.shape[0]
    detections = [dict(boxes=boxes[i], scores=scores[i], labels=labels[i]) for i in range(N)]
    scores_covid_img = None if training else [dict(final_scores=covid)]

    losses = {}                                                         # inference path
    return (losses, scores_covid_img, detections)


# ----------------------------- Main -----------------------------

if __name__ == "__main__":
    key = jax.random.PRNGKey(0)
    k_img, _ = jax.random.split(key)

    N, C, H, W = 2, 3, 16, 16
    imgs_batch = jax.random.uniform(k_img, (N, C, H, W), jnp.float32)
    images = [imgs_batch[i] for i in range(N)]                          # list[Tensor] like the module

    params = init_params(jax.random.PRNGKey(42), c_in=C, feat=32, hidden=64,
                         num_anchors=3, num_classes=2)

    losses, scores_covid_img, detections = generalized_rcnn_forward(
        params, images, targets=None, training=False)

    jax.block_until_ready(scores_covid_img[0]['final_scores'])
    jax.block_until_ready(detections[0]['boxes'])
    jax.block_until_ready(detections[1]['scores'])

    assert losses == {}
    assert scores_covid_img[0]['final_scores'].shape == (8, 1)
    assert detections[0]['boxes'].shape == (8, 4)
    print("KERNEL_OK")
</pallas_src>

<mosaic_0001>
module attributes {stable_mosaic.version = 11 : i64} {
  func.func @_backbone_rpn_kernel(%arg0: i32, %arg1: memref<256x3xf32, #tpu.memory_space<vmem>>, %arg2: memref<3x32xbf16, #tpu.memory_space<vmem>>, %arg3: memref<1x32xf32, #tpu.memory_space<vmem>>, %arg4: memref<32x15xbf16, #tpu.memory_space<vmem>>, %arg5: memref<1x15xf32, #tpu.memory_space<vmem>>, %arg6: memref<256x32xbf16, #tpu.memory_space<vmem>>, %arg7: memref<256x15xf32, #tpu.memory_space<vmem>>) attributes {dimension_semantics = [#tpu.dimension_semantics<parallel>], iteration_bounds = array<i64: 2>, scalar_prefetch = 0 : i64, scratch_operands = 0 : i64, tpu.core_type = #tpu.core_type<tc>, window_params = [{transform_indices = @transform_0, window_bounds = array<i64: 256, 3>}, {pipeline_mode = #tpu.pipeline_mode<synchronous>, transform_indices = @transform_1, window_bounds = array<i64: 3, 32>}, {pipeline_mode = #tpu.pipeline_mode<synchronous>, transform_indices = @transform_2, window_bounds = array<i64: 1, 32>}, {pipeline_mode = #tpu.pipeline_mode<synchronous>, transform_indices = @transform_3, window_bounds = array<i64: 32, 15>}, {pipeline_mode = #tpu.pipeline_mode<synchronous>, transform_indices = @transform_4, window_bounds = array<i64: 1, 15>}, {transform_indices = @transform_5, window_bounds = array<i64: 256, 32>}, {transform_indices = @transform_6, window_bounds = array<i64: 256, 15>}]} {
    %c0 = arith.constant 0 : index
    %c0_0 = arith.constant 0 : index
    %0 = vector.load %arg1[%c0, %c0_0] : memref<256x3xf32, #tpu.memory_space<vmem>>, vector<256x3xf32>
    %1 = arith.truncf %0 : vector<256x3xf32> to vector<256x3xbf16>
    %c0_1 = arith.constant 0 : index
    %c0_2 = arith.constant 0 : index
    %2 = vector.load %arg2[%c0_1, %c0_2] : memref<3x32xbf16, #tpu.memory_space<vmem>>, vector<3x32xbf16>
    %cst = arith.constant dense<0.000000e+00> : vector<256x32xf32>
    %3 = tpu.matmul %1, %2, %cst {dimension_numbers = #tpu.dot_dimension_numbers<[1], [0], [0], [1], [0, 0, 1, 1], [], []>} : vector<256x3xbf16>, vector<3x32xbf16>, vector<256x32xf32> -> vector<256x32xf32>
    %c0_3 = arith.constant 0 : index
    %c0_4 = arith.constant 0 : index
    %4 = vector.load %arg3[%c0_3, %c0_4] : memref<1x32xf32, #tpu.memory_space<vmem>>, vector<1x32xf32>
    %5 = vector.broadcast %4 : vector<1x32xf32> to vector<256x32xf32>
    %6 = arith.addf %3, %5 : vector<256x32xf32>
    %cst_5 = arith.constant 0.000000e+00 : f32
    %7 = vector.broadcast %cst_5 : f32 to vector<256x32xf32>
    %8 = arith.maximumf %6, %7 : vector<256x32xf32>
    %9 = arith.truncf %8 : vector<256x32xf32> to vector<256x32xbf16>
    %c0_6 = arith.constant 0 : index
    %c0_7 = arith.constant 0 : index
    %10 = vector.load %arg4[%c0_6, %c0_7] : memref<32x15xbf16, #tpu.memory_space<vmem>>, vector<32x15xbf16>
    %cst_8 = arith.constant dense<0.000000e+00> : vector<256x15xf32>
    %11 = tpu.matmul %9, %10, %cst_8 {dimension_numbers = #tpu.dot_dimension_numbers<[1], [0], [0], [1], [0, 0, 1, 1], [], []>} : vector<256x32xbf16>, vector<32x15xbf16>, vector<256x15xf32> -> vector<256x15xf32>
    %c0_9 = arith.constant 0 : index
    %c0_10 = arith.constant 0 : index
    %12 = vector.load %arg5[%c0_9, %c0_10] : memref<1x15xf32, #tpu.memory_space<vmem>>, vector<1x15xf32>
    %13 = vector.broadcast %12 : vector<1x15xf32> to vector<256x15xf32>
    %14 = arith.addf %11, %13 : vector<256x15xf32>
    %c0_11 = arith.constant 0 : index
    %c0_12 = arith.constant 0 : index
    %15 = vector.load %arg7[%c0_11, %c0_12] : memref<256x15xf32, #tpu.memory_space<vmem>>, vector<256x15xf32>
    tpu.vector_store %arg7[%c0_11, %c0_12], %14 {strides = array<i32>} : memref<256x15xf32, #tpu.memory_space<vmem>>, vector<256x15xf32>,
    %16 = arith.truncf %8 : vector<256x32xf32> to vector<256x32xbf16>
    %c0_13 = arith.constant 0 : index
    %c0_14 = arith.constant 0 : index
    %17 = vector.load %arg6[%c0_13, %c0_14] : memref<256x32xbf16, #tpu.memory_space<vmem>>, vector<256x32xbf16>
    tpu.vector_store %arg6[%c0_13, %c0_14], %16 {strides = array<i32>} : memref<256x32xbf16, #tpu.memory_space<vmem>>, vector<256x32xbf16>,
    return
  }
  func.func @transform_0(%arg0: i32) -> (i32, i32) {
    %c0_i32 = arith.constant 0 : i32
    %c0_i32_0 = arith.constant 0 : i32
    return %arg0, %c0_i32 : i32, i32
  }
  func.func @transform_1(%arg0: i32) -> (i32, i32) {
    %c0_i32 = arith.constant 0 : i32
    %c0_i32_0 = arith.constant 0 : i32
    %c0_i32_1 = arith.constant 0 : i32
    return %c0_i32, %c0_i32_0 : i32, i32
  }
  func.func @transform_2(%arg0: i32) -> (i32, i32) {
    %c0_i32 = arith.constant 0 : i32
    %c0_i32_0 = arith.constant 0 : i32
    %c0_i32_1 = arith.constant 0 : i32
    return %c0_i32, %c0_i32_0 : i32, i32
  }
  func.func @transform_3(%arg0: i32) -> (i32, i32) {
    %c0_i32 = arith.constant 0 : i32
    %c0_i32_0 = arith.constant 0 : i32
    %c0_i32_1 = arith.constant 0 : i32
    return %c0_i32, %c0_i32_0 : i32, i32
  }
  func.func @transform_4(%arg0: i32) -> (i32, i32) {
    %c0_i32 = arith.constant 0 : i32
    %c0_i32_0 = arith.constant 0 : i32
    %c0_i32_1 = arith.constant 0 : i32
    return %c0_i32, %c0_i32_0 : i32, i32
  }
  func.func @transform_5(%arg0: i32) -> (i32, i32) {
    %c0_i32 = arith.constant 0 : i32
    %c0_i32_0 = arith.constant 0 : i32
    return %arg0, %c0_i32 : i32, i32
  }
  func.func @transform_6(%arg0: i32) -> (i32, i32) {
    %c0_i32 = arith.constant 0 : i32
    %c0_i32_0 = arith.constant 0 : i32
    return %arg0, %c0_i32 : i32, i32
  }
}

module attributes {stable_mosaic.version = 11 : i64} {
  func.func @_roi_head_kernel(%arg0: memref<16x32xbf16, #tpu.memory_space<vmem>>, %arg1: memref<32x64xf32, #tpu.memory_space<vmem>>, %arg2: memref<1x64xf32, #tpu.memory_space<vmem>>, %arg3: memref<64x64xf32, #tpu.memory_space<vmem>>, %arg4: memref<1x64xf32, #tpu.memory_space<vmem>>, %arg5: memref<64x11xf32, #tpu.memory_space<vmem>>, %arg6: memref<1x11xf32, #tpu.memory_space<vmem>>, %arg7: memref<16x11xf32, #tpu.memory_space<vmem>>) attributes {dimension_semantics = [], scalar_prefetch = 0 : i64, scratch_operands = 0 : i64, tpu.core_type = #tpu.core_type<tc>} {
    %c0 = arith.constant 0 : index
    %c0_0 = arith.constant 0 : index
    %0 = vector.load %arg0[%c0, %c0_0] : memref<16x32xbf16, #tpu.memory_space<vmem>>, vector<16x32xbf16>
    %1 = arith.extf %0 : vector<16x32xbf16> to vector<16x32xf32>
    %c0_1 = arith.constant 0 : index
    %c0_2 = arith.constant 0 : index
    %2 = vector.load %arg1[%c0_1, %c0_2] : memref<32x64xf32, #tpu.memory_space<vmem>>, vector<32x64xf32>
    %cst = arith.constant dense<0.000000e+00> : vector<16x64xf32>
    %3 = tpu.matmul %1, %2, %cst {dimension_numbers = #tpu.dot_dimension_numbers<[1], [0], [0], [1], [0, 0, 1, 1], [], []>} : vector<16x32xf32>, vector<32x64xf32>, vector<16x64xf32> -> vector<16x64xf32>
    %c0_3 = arith.constant 0 : index
    %c0_4 = arith.constant 0 : index
    %4 = vector.load %arg2[%c0_3, %c0_4] : memref<1x64xf32, #tpu.memory_space<vmem>>, vector<1x64xf32>
    %5 = vector.broadcast %4 : vector<1x64xf32> to vector<16x64xf32>
    %6 = arith.addf %3, %5 : vector<16x64xf32>
    %cst_5 = arith.constant 0.000000e+00 : f32
    %7 = vector.broadcast %cst_5 : f32 to vector<16x64xf32>
    %8 = arith.maximumf %6, %7 : vector<16x64xf32>
    %c0_6 = arith.constant 0 : index
    %c0_7 = arith.constant 0 : index
    %9 = vector.load %arg3[%c0_6, %c0_7] : memref<64x64xf32, #tpu.memory_space<vmem>>, vector<64x64xf32>
    %cst_8 = arith.constant dense<0.000000e+00> : vector<16x64xf32>
    %10 = tpu.matmul %8, %9, %cst_8 {dimension_numbers = #tpu.dot_dimension_numbers<[1], [0], [0], [1], [0, 0, 1, 1], [], []>} : vector<16x64xf32>, vector<64x64xf32>, vector<16x64xf32> -> vector<16x64xf32>
    %c0_9 = arith.constant 0 : index
    %c0_10 = arith.constant 0 : index
    %11 = vector.load %arg4[%c0_9, %c0_10] : memref<1x64xf32, #tpu.memory_space<vmem>>, vector<1x64xf32>
    %12 = vector.broadcast %11 : vector<1x64xf32> to vector<16x64xf32>
    %13 = arith.addf %10, %12 : vector<16x64xf32>
    %cst_11 = arith.constant 0.000000e+00 : f32
    %14 = vector.broadcast %cst_11 : f32 to vector<16x64xf32>
    %15 = arith.maximumf %13, %14 : vector<16x64xf32>
    %c0_12 = arith.constant 0 : index
    %c0_13 = arith.constant 0 : index
    %16 = vector.load %arg5[%c0_12, %c0_13] : memref<64x11xf32, #tpu.memory_space<vmem>>, vector<64x11xf32>
    %cst_14 = arith.constant dense<0.000000e+00> : vector<16x11xf32>
    %17 = tpu.matmul %15, %16, %cst_14 {dimension_numbers = #tpu.dot_dimension_numbers<[1], [0], [0], [1], [0, 0, 1, 1], [], []>} : vector<16x64xf32>, vector<64x11xf32>, vector<16x11xf32> -> vector<16x11xf32>
    %c0_15 = arith.constant 0 : index
    %c0_16 = arith.constant 0 : index
    %18 = vector.load %arg6[%c0_15, %c0_16] : memref<1x11xf32, #tpu.memory_space<vmem>>, vector<1x11xf32>
    %19 = vector.broadcast %18 : vector<1x11xf32> to vector<16x11xf32>
    %20 = arith.addf %17, %19 : vector<16x11xf32>
    %c0_17 = arith.constant 0 : index
    %c0_18 = arith.constant 0 : index
    %21 = vector.load %arg7[%c0_17, %c0_18] : memref<16x11xf32, #tpu.memory_space<vmem>>, vector<16x11xf32>
    tpu.vector_store %arg7[%c0_17, %c0_18], %20 {strides = array<i32>} : memref<16x11xf32, #tpu.memory_space<vmem>>, vector<16x11xf32>,
    return
  }
}

</mosaic_0001>

<llo_original>
// kernel: custom-call
$region0: #{custom-call}
  #allocation0 [shape = 'u32[8,128]{1,0}', space=vmem, size = 0x1000, scoped, tag = 'scratch']
  #allocation1 [shape = 'u32[8,128]{1,0}', space=vmem, size = 0x1000, scoped, tag = 'scratch']
  #allocation2 [shape = 'u32[8,128]{1,0}', space=vmem, size = 0x1000, scoped, tag = 'scratch']
  #allocation3 [shape = 'u32[8,128]{1,0}', space=vmem, size = 0x1000, scoped, tag = 'scratch']
  #allocation4 [shape = 'u32[8,128]{1,0}', space=vmem, size = 0x1000, scoped, tag = 'scratch']
  #allocation5 [shape = 'u32[8,128]{1,0}', space=vmem, size = 0x1000, scoped, tag = 'scratch']
  #allocation6 [shape = 'u32[8,128]{1,0}', space=vmem, size = 0x1000, scoped, tag = 'scratch']
  %s0 = inlined_call_operand.vmem [shape: f32[2,768], index: 0, kind: input, shape index: {}]
  %s1 = inlined_call_operand.hbm [shape: f32[2,8], index: 1, kind: output, shape index: {0}]
  %s2 = inlined_call_operand.vmem [shape: s32[2,8], index: 2, kind: output, shape index: {1}]
  %3 = xla_tuple %s1, %s2
  %4 = xla_tuple 2147483648, 2147483647
  $region1: #{custom-call} parent=0
    #allocation7 [shape = 'u8[4096]{0}', space=vmem, size = 0x1000, scoped, tag = 'operand span for operand 1']
    #allocation8 [shape = 's32[1]{0}', space=sflag, size = 0x4, scoped, tag = 'scoped memory for custom-call']
    #allocation9 [shape = 'u8[4096]{0}', space=vmem, size = 0x1000, scoped, tag = 'operand span for operand 2']
    #allocation10 [shape = 'f32[8,128]{1,0:T(8,128)}', space=vmem, size = 0x1000, scoped, tag = 'scoped memory for custom-call']
    #allocation11 [shape = 'f32[8,128]{1,0:T(8,128)}', space=vmem, size = 0x1000, scoped, tag = 'scoped memory for custom-call']
    #allocation12 [shape = 's32[8,128]{1,0:T(8,128)}', space=vmem, size = 0x1000, scoped, tag = 'scoped memory for custom-call']
    #allocation13 [shape = 's32[8,128]{1,0:T(8,128)}', space=vmem, size = 0x1000, scoped, tag = 'scoped memory for custom-call']
    %5 = vsyncpa [#allocation8], 0
    %6 = xla_tuple [#allocation7], [#allocation9]
    %7 = vst [vmem:[#allocation10] sm:$0xff] 2147483648
    %8 = vst [vmem:[#allocation12] sm:$0xff] 2147483647
    %9 = xla_tuple [#allocation10], [#allocation12]
    %10 = xla_tuple [#allocation11], [#allocation13]
    $region2: #{custom-call} parent=1
      #allocation14 [shape = 'u8[393216]{0}', space=vmem, size = 0x60000, scoped, tag = 'operand span for operand 0']
      #allocation15 [shape = 's32[98304]{0}', space=vmem, size = 0x60000, scoped, tag = 'scoped memory for custom-call']
      // Predicated region
      $region3: #{custom-call} parent=2 // pred_check
        _
      $region4: #{custom-call} parent=2 // pred_check_branch
        %12 = sbr.rel (0) target = $region6
      $region5: #{custom-call} parent=2 // pred_region
        // Predicated region
        $region7: #{custom-call} parent=5 // pred_check
          _
        $region8: #{custom-call} parent=5 // pred_check_branch
          %14 = sbr.rel (0) target = $region10
        $region9: #{custom-call} parent=5 // pred_region
          // Predicated region
          $region11: #{custom-call} parent=9 // pred_check
            _
          $region12: #{custom-call} parent=9 // pred_check_branch
            %16 = sbr.rel (0) target = $region14
          $region13: #{custom-call} parent=9 // pred_region
            // Predicated region
            $region26: #{custom-call} parent=13 // pred_check
              _
            $region27: #{custom-call} parent=13 // pred_check_branch
              %221 = sbr.rel (0) target = $region29
            $region28: #{custom-call} parent=13 // pred_region
              loop: start=0, step=1, limit=1
              $region30: #{custom-call} parent=28 // loop_pre_header
                _
              $region31: #{custom-call} parent=28 // loop_header
                %s223 = sphi 0, %s227
                %p224 = scmp.ge.s32.totalorder %s223, 1
                %s228 = sphi %s0, %s0
                %s229 = sphi [#allocation14], [#allocation14]
              $region32: #{custom-call} parent=28 // loop_header_branch
                %226 = sbr.rel (%p224) target = $region36
              $region33: #{custom-call} parent=28 // loop_body
                %v230 = vld [vmem:[%s228] sm:$0xff]
                %231 = vst [vmem:[%s229] sm:$0xff] %v230
                %v232 = vld [vmem:[%s228 + $0x8] sm:$0xff]
                %233 = vst [vmem:[%s229 + $0x8] sm:$0xff] %v232
                %v234 = vld [vmem:[%s228 + $0x10] sm:$0xff]
                %235 = vst [vmem:[%s229 + $0x10] sm:$0xff] %v234
                %v236 = vld [vmem:[%s228 + $0x18] sm:$0xff]
                %237 = vst [vmem:[%s229 + $0x18] sm:$0xff] %v236
                %v238 = vld [vmem:[%s228 + $0x20] sm:$0xff]
                %239 = vst [vmem:[%s229 + $0x20] sm:$0xff] %v238
                %v240 = vld [vmem:[%s228 + $0x28] sm:$0xff]
                %241 = vst [vmem:[%s229 + $0x28] sm:$0xff] %v240
                %v242 = vld [vmem:[%s228 + $0x30] sm:$0xff]
                %243 = vst [vmem:[%s229 + $0x30] sm:$0xff] %v242
                %v244 = vld [vmem:[%s228 + $0x38] sm:$0xff]
                %245 = vst [vmem:[%s229 + $0x38] sm:$0xff] %v244
                %v246 = vld [vmem:[%s228 + $0x40] sm:$0xff]
                %247 = vst [vmem:[%s229 + $0x40] sm:$0xff] %v246
                %v248 = vld [vmem:[%s228 + $0x48] sm:$0xff]
                %249 = vst [vmem:[%s229 + $0x48] sm:$0xff] %v248
                %v250 = vld [vmem:[%s228 + $0x50] sm:$0xff]
                %251 = vst [vmem:[%s229 + $0x50] sm:$0xff] %v250
                %v252 = vld [vmem:[%s228 + $0x58] sm:$0xff]
                %253 = vst [vmem:[%s229 + $0x58] sm:$0xff] %v252
                %v254 = vld [vmem:[%s228 + $0x60] sm:$0xff]
                %255 = vst [vmem:[%s229 + $0x60] sm:$0xff] %v254
                %v256 = vld [vmem:[%s228 + $0x68] sm:$0xff]
                %257 = vst [vmem:[%s229 + $0x68] sm:$0xff] %v256
                %v258 = vld [vmem:[%s228 + $0x70] sm:$0xff]
                %259 = vst [vmem:[%s229 + $0x70] sm:$0xff] %v258
                %v260 = vld [vmem:[%s228 + $0x78] sm:$0xff]
                %261 = vst [vmem:[%s229 + $0x78] sm:$0xff] %v260
                %v262 = vld [vmem:[%s228 + $0x80] sm:$0xff]
                %263 = vst [vmem:[%s229 + $0x80] sm:$0xff] %v262
                %v264 = vld [vmem:[%s228 + $0x88] sm:$0xff]
                %265 = vst [vmem:[%s229 + $0x88] sm:$0xff] %v264
                %v266 = vld [vmem:[%s228 + $0x90] sm:$0xff]
                %267 = vst [vmem:[%s229 + $0x90] sm:$0xff] %v266
                %v268 = vld [vmem:[%s228 + $0x98] sm:$0xff]
                %269 = vst [vmem:[%s229 + $0x98] sm:$0xff] %v268
                %v270 = vld [vmem:[%s228 + $0xa0] sm:$0xff]
                %271 = vst [vmem:[%s229 + $0xa0] sm:$0xff] %v270
                %v272 = vld [vmem:[%s228 + $0xa8] sm:$0xff]
                %273 = vst [vmem:[%s229 + $0xa8] sm:$0xff] %v272
                %v274 = vld [vmem:[%s228 + $0xb0] sm:$0xff]
                %275 = vst [vmem:[%s229 + $0xb0] sm:$0xff] %v274
                %v276 = vld [vmem:[%s228 + $0xb8] sm:$0xff]
                %277 = vst [vmem:[%s229 + $0xb8] sm:$0xff] %v276
                %v278 = vld [vmem:[%s228 + $0xc0] sm:$0xff]
                %279 = vst [vmem:[%s229 + $0xc0] sm:$0xff] %v278
                %v280 = vld [vmem:[%s228 + $0xc8] sm:$0xff]
                %281 = vst [vmem:[%s229 + $0xc8] sm:$0xff] %v280
                %v282 = vld [vmem:[%s228 + $0xd0] sm:$0xff]
                %283 = vst [vmem:[%s229 + $0xd0] sm:$0xff] %v282
                %v284 = vld [vmem:[%s228 + $0xd8] sm:$0xff]
                %285 = vst [vmem:[%s229 + $0xd8] sm:$0xff] %v284
                %v286 = vld [vmem:[%s228 + $0xe0] sm:$0xff]
                %287 = vst [vmem:[%s229 + $0xe0] sm:$0xff] %v286
                %v288 = vld [vmem:[%s228 + $0xe8] sm:$0xff]
                %289 = vst [vmem:[%s229 + $0xe8] sm:$0xff] %v288
                %v290 = vld [vmem:[%s228 + $0xf0] sm:$0xff]
                %291 = vst [vmem:[%s229 + $0xf0] sm:$0xff] %v290
                %v292 = vld [vmem:[%s228 + $0xf8] sm:$0xff]
                %293 = vst [vmem:[%s229 + $0xf8] sm:$0xff] %v292
                %v294 = vld [vmem:[%s228 + $0x100] sm:$0xff]
                %295 = vst [vmem:[%s229 + $0x100] sm:$0xff] %v294
                %v296 = vld [vmem:[%s228 + $0x108] sm:$0xff]
                %297 = vst [vmem:[%s229 + $0x108] sm:$0xff] %v296
                %v298 = vld [vmem:[%s228 + $0x110] sm:$0xff]
                %299 = vst [vmem:[%s229 + $0x110] sm:$0xff] %v298
                %v300 = vld [vmem:[%s228 + $0x118] sm:$0xff]
                %301 = vst [vmem:[%s229 + $0x118] sm:$0xff] %v300
                %v302 = vld [vmem:[%s228 + $0x120] sm:$0xff]
                %303 = vst [vmem:[%s229 + $0x120] sm:$0xff] %v302
                %v304 = vld [vmem:[%s228 + $0x128] sm:$0xff]
                %305 = vst [vmem:[%s229 + $0x128] sm:$0xff] %v304
                %v306 = vld [vmem:[%s228 + $0x130] sm:$0xff]
                %307 = vst [vmem:[%s229 + $0x130] sm:$0xff] %v306
                %v308 = vld [vmem:[%s228 + $0x138] sm:$0xff]
                %309 = vst [vmem:[%s229 + $0x138] sm:$0xff] %v308
                %v310 = vld [vmem:[%s228 + $0x140] sm:$0xff]
                %311 = vst [vmem:[%s229 + $0x140] sm:$0xff] %v310
                %v312 = vld [vmem:[%s228 + $0x148] sm:$0xff]
                %313 = vst [vmem:[%s229 + $0x148] sm:$0xff] %v312
                %v314 = vld [vmem:[%s228 + $0x150] sm:$0xff]
                %315 = vst [vmem:[%s229 + $0x150] sm:$0xff] %v314
                %v316 = vld [vmem:[%s228 + $0x158] sm:$0xff]
                %317 = vst [vmem:[%s229 + $0x158] sm:$0xff] %v316
                %v318 = vld [vmem:[%s228 + $0x160] sm:$0xff]
                %319 = vst [vmem:[%s229 + $0x160] sm:$0xff] %v318
                %v320 = vld [vmem:[%s228 + $0x168] sm:$0xff]
                %321 = vst [vmem:[%s229 + $0x168] sm:$0xff] %v320
                %v322 = vld [vmem:[%s228 + $0x170] sm:$0xff]
                %323 = vst [vmem:[%s229 + $0x170] sm:$0xff] %v322
                %v324 = vld [vmem:[%s228 + $0x178] sm:$0xff]
                %325 = vst [vmem:[%s229 + $0x178] sm:$0xff] %v324
                %v326 = vld [vmem:[%s228 + $0x180] sm:$0xff]
                %327 = vst [vmem:[%s229 + $0x180] sm:$0xff] %v326
                %v328 = vld [vmem:[%s228 + $0x188] sm:$0xff]
                %329 = vst [vmem:[%s229 + $0x188] sm:$0xff] %v328
                %v330 = vld [vmem:[%s228 + $0x190] sm:$0xff]
                %331 = vst [vmem:[%s229 + $0x190] sm:$0xff] %v330
                %v332 = vld [vmem:[%s228 + $0x198] sm:$0xff]
                %333 = vst [vmem:[%s229 + $0x198] sm:$0xff] %v332
                %v334 = vld [vmem:[%s228 + $0x1a0] sm:$0xff]
                %335 = vst [vmem:[%s229 + $0x1a0] sm:$0xff] %v334
                %v336 = vld [vmem:[%s228 + $0x1a8] sm:$0xff]
                %337 = vst [vmem:[%s229 + $0x1a8] sm:$0xff] %v336
                %v338 = vld [vmem:[%s228 + $0x1b0] sm:$0xff]
                %339 = vst [vmem:[%s229 + $0x1b0] sm:$0xff] %v338
                %v340 = vld [vmem:[%s228 + $0x1b8] sm:$0xff]
                %341 = vst [vmem:[%s229 + $0x1b8] sm:$0xff] %v340
                %v342 = vld [vmem:[%s228 + $0x1c0] sm:$0xff]
                %343 = vst [vmem:[%s229 + $0x1c0] sm:$0xff] %v342
                %v344 = vld [vmem:[%s228 + $0x1c8] sm:$0xff]
                %345 = vst [vmem:[%s229 + $0x1c8] sm:$0xff] %v344
                %v346 = vld [vmem:[%s228 + $0x1d0] sm:$0xff]
                %347 = vst [vmem:[%s229 + $0x1d0] sm:$0xff] %v346
                %v348 = vld [vmem:[%s228 + $0x1d8] sm:$0xff]
                %349 = vst [vmem:[%s229 + $0x1d8] sm:$0xff] %v348
                %v350 = vld [vmem:[%s228 + $0x1e0] sm:$0xff]
                %351 = vst [vmem:[%s229 + $0x1e0] sm:$0xff] %v350
                %v352 = vld [vmem:[%s228 + $0x1e8] sm:$0xff]
                %353 = vst [vmem:[%s229 + $0x1e8] sm:$0xff] %v352
                %v354 = vld [vmem:[%s228 + $0x1f0] sm:$0xff]
                %355 = vst [vmem:[%s229 + $0x1f0] sm:$0xff] %v354
                %v356 = vld [vmem:[%s228 + $0x1f8] sm:$0xff]
                %357 = vst [vmem:[%s229 + $0x1f8] sm:$0xff] %v356
                %v358 = vld [vmem:[%s228 + $0x200] sm:$0xff]
                %359 = vst [vmem:[%s229 + $0x200] sm:$0xff] %v358
                %v360 = vld [vmem:[%s228 + $0x208] sm:$0xff]
                %361 = vst [vmem:[%s229 + $0x208] sm:$0xff] %v360
                %v362 = vld [vmem:[%s228 + $0x210] sm:$0xff]
                %363 = vst [vmem:[%s229 + $0x210] sm:$0xff] %v362
                %v364 = vld [vmem:[%s228 + $0x218] sm:$0xff]
                %365 = vst [vmem:[%s229 + $0x218] sm:$0xff] %v364
                %v366 = vld [vmem:[%s228 + $0x220] sm:$0xff]
                %367 = vst [vmem:[%s229 + $0x220] sm:$0xff] %v366
                %v368 = vld [vmem:[%s228 + $0x228] sm:$0xff]
                %369 = vst [vmem:[%s229 + $0x228] sm:$0xff] %v368
                %v370 = vld [vmem:[%s228 + $0x230] sm:$0xff]
                %371 = vst [vmem:[%s229 + $0x230] sm:$0xff] %v370
                %v372 = vld [vmem:[%s228 + $0x238] sm:$0xff]
                %373 = vst [vmem:[%s229 + $0x238] sm:$0xff] %v372
                %v374 = vld [vmem:[%s228 + $0x240] sm:$0xff]
                %375 = vst [vmem:[%s229 + $0x240] sm:$0xff] %v374
                %v376 = vld [vmem:[%s228 + $0x248] sm:$0xff]
                %377 = vst [vmem:[%s229 + $0x248] sm:$0xff] %v376
                %v378 = vld [vmem:[%s228 + $0x250] sm:$0xff]
                %379 = vst [vmem:[%s229 + $0x250] sm:$0xff] %v378
                %v380 = vld [vmem:[%s228 + $0x258] sm:$0xff]
                %381 = vst [vmem:[%s229 + $0x258] sm:$0xff] %v380
                %v382 = vld [vmem:[%s228 + $0x260] sm:$0xff]
                %383 = vst [vmem:[%s229 + $0x260] sm:$0xff] %v382
                %v384 = vld [vmem:[%s228 + $0x268] sm:$0xff]
                %385 = vst [vmem:[%s229 + $0x268] sm:$0xff] %v384
                %v386 = vld [vmem:[%s228 + $0x270] sm:$0xff]
                %387 = vst [vmem:[%s229 + $0x270] sm:$0xff] %v386
                %v388 = vld [vmem:[%s228 + $0x278] sm:$0xff]
                %389 = vst [vmem:[%s229 + $0x278] sm:$0xff] %v388
                %v390 = vld [vmem:[%s228 + $0x280] sm:$0xff]
                %391 = vst [vmem:[%s229 + $0x280] sm:$0xff] %v390
                %v392 = vld [vmem:[%s228 + $0x288] sm:$0xff]
                %393 = vst [vmem:[%s229 + $0x288] sm:$0xff] %v392
                %v394 = vld [vmem:[%s228 + $0x290] sm:$0xff]
                %395 = vst [vmem:[%s229 + $0x290] sm:$0xff] %v394
                %v396 = vld [vmem:[%s228 + $0x298] sm:$0xff]
                %397 = vst [vmem:[%s229 + $0x298] sm:$0xff] %v396
                %v398 = vld [vmem:[%s228 + $0x2a0] sm:$0xff]
                %399 = vst [vmem:[%s229 + $0x2a0] sm:$0xff] %v398
                %v400 = vld [vmem:[%s228 + $0x2a8] sm:$0xff]
                %401 = vst [vmem:[%s229 + $0x2a8] sm:$0xff] %v400
                %v402 = vld [vmem:[%s228 + $0x2b0] sm:$0xff]
                %403 = vst [vmem:[%s229 + $0x2b0] sm:$0xff] %v402
                %v404 = vld [vmem:[%s228 + $0x2b8] sm:$0xff]
                %405 = vst [vmem:[%s229 + $0x2b8] sm:$0xff] %v404
                %v406 = vld [vmem:[%s228 + $0x2c0] sm:$0xff]
                %407 = vst [vmem:[%s229 + $0x2c0] sm:$0xff] %v406
                %v408 = vld [vmem:[%s228 + $0x2c8] sm:$0xff]
                %409 = vst [vmem:[%s229 + $0x2c8] sm:$0xff] %v408
                %v410 = vld [vmem:[%s228 + $0x2d0] sm:$0xff]
                %411 = vst [vmem:[%s229 + $0x2d0] sm:$0xff] %v410
                %v412 = vld [vmem:[%s228 + $0x2d8] sm:$0xff]
                %413 = vst [vmem:[%s229 + $0x2d8] sm:$0xff] %v412
                %v414 = vld [vmem:[%s228 + $0x2e0] sm:$0xff]
                %415 = vst [vmem:[%s229 + $0x2e0] sm:$0xff] %v414
                %v416 = vld [vmem:[%s228 + $0x2e8] sm:$0xff]
                %417 = vst [vmem:[%s229 + $0x2e8] sm:$0xff] %v416
                %v418 = vld [vmem:[%s228 + $0x2f0] sm:$0xff]
                %419 = vst [vmem:[%s229 + $0x2f0] sm:$0xff] %v418
                %v420 = vld [vmem:[%s228 + $0x2f8] sm:$0xff]
                %421 = vst [vmem:[%s229 + $0x2f8] sm:$0xff] %v420
              $region34: #{custom-call} parent=28 // loop_footer
                %s227 = sadd.s32 1, %s223
              $region35: #{custom-call} parent=28 // loop_footer_branch
                %222 = sbr.rel target = $region31
              $region36: #{custom-call} parent=28 // loop_exit
                _
            $region29: #{custom-call} parent=13 // pred_fallthru
              _
            // Predicated region
            $region37: #{custom-call} parent=13 // pred_check
              _
            $region38: #{custom-call} parent=13 // pred_check_branch
              %423 = sbr.rel target = $region40
            $region39: #{custom-call} parent=13 // pred_region
              _
            $region40: #{custom-call} parent=13 // pred_fallthru
              _
          $region14: #{custom-call} parent=9 // pred_fallthru
            _
          // Predicated region
          $region15: #{custom-call} parent=9 // pred_check
            _
          $region16: #{custom-call} parent=9 // pred_check_branch
            %18 = sbr.rel target = $region18
          $region17: #{custom-call} parent=9 // pred_region
            loop: start=0, step=1, limit=1
            $region19: #{custom-call} parent=17 // loop_pre_header
              _
            $region20: #{custom-call} parent=17 // loop_header
              %s21 = sphi 0, %s25
              %p22 = scmp.ge.s32.totalorder %s21, 1
              %s26 = sphi %s0, %s0
              %s27 = sphi [#allocation14], [#allocation14]
            $region21: #{custom-call} parent=17 // loop_header_branch
              %24 = sbr.rel (%p22) target = $region25
            $region22: #{custom-call} parent=17 // loop_body
              %v28 = vld [vmem:[%s26] sm:$0xff]
              %29 = vst [vmem:[%s27] sm:$0xff] %v28
              %v30 = vld [vmem:[%s26 + $0x8] sm:$0xff]
              %31 = vst [vmem:[%s27 + $0x8] sm:$0xff] %v30
              %v32 = vld [vmem:[%s26 + $0x10] sm:$0xff]
              %33 = vst [vmem:[%s27 + $0x10] sm:$0xff] %v32
              %v34 = vld [vmem:[%s26 + $0x18] sm:$0xff]
              %35 = vst [vmem:[%s27 + $0x18] sm:$0xff] %v34
              %v36 = vld [vmem:[%s26 + $0x20] sm:$0xff]
              %37 = vst [vmem:[%s27 + $0x20] sm:$0xff] %v36
              %v38 = vld [vmem:[%s26 + $0x28] sm:$0xff]
              %39 = vst [vmem:[%s27 + $0x28] sm:$0xff] %v38
              %v40 = vld [vmem:[%s26 + $0x30] sm:$0xff]
              %41 = vst [vmem:[%s27 + $0x30] sm:$0xff] %v40
              %v42 = vld [vmem:[%s26 + $0x38] sm:$0xff]
              %43 = vst [vmem:[%s27 + $0x38] sm:$0xff] %v42
              %v44 = vld [vmem:[%s26 + $0x40] sm:$0xff]
              %45 = vst [vmem:[%s27 + $0x40] sm:$0xff] %v44
              %v46 = vld [vmem:[%s26 + $0x48] sm:$0xff]
              %47 = vst [vmem:[%s27 + $0x48] sm:$0xff] %v46
              %v48 = vld [vmem:[%s26 + $0x50] sm:$0xff]
              %49 = vst [vmem:[%s27 + $0x50] sm:$0xff] %v48
              %v50 = vld [vmem:[%s26 + $0x58] sm:$0xff]
              %51 = vst [vmem:[%s27 + $0x58] sm:$0xff] %v50
              %v52 = vld [vmem:[%s26 + $0x60] sm:$0xff]
              %53 = vst [vmem:[%s27 + $0x60] sm:$0xff] %v52
              %v54 = vld [vmem:[%s26 + $0x68] sm:$0xff]
              %55 = vst [vmem:[%s27 + $0x68] sm:$0xff] %v54
              %v56 = vld [vmem:[%s26 + $0x70] sm:$0xff]
              %57 = vst [vmem:[%s27 + $0x70] sm:$0xff] %v56
              %v58 = vld [vmem:[%s26 + $0x78] sm:$0xff]
              %59 = vst [vmem:[%s27 + $0x78] sm:$0xff] %v58
              %v60 = vld [vmem:[%s26 + $0x80] sm:$0xff]
              %61 = vst [vmem:[%s27 + $0x80] sm:$0xff] %v60
              %v62 = vld [vmem:[%s26 + $0x88] sm:$0xff]
              %63 = vst [vmem:[%s27 + $0x88] sm:$0xff] %v62
              %v64 = vld [vmem:[%s26 + $0x90] sm:$0xff]
              %65 = vst [vmem:[%s27 + $0x90] sm:$0xff] %v64
              %v66 = vld [vmem:[%s26 + $0x98] sm:$0xff]
              %67 = vst [vmem:[%s27 + $0x98] sm:$0xff] %v66
              %v68 = vld [vmem:[%s26 + $0xa0] sm:$0xff]
              %69 = vst [vmem:[%s27 + $0xa0] sm:$0xff] %v68
              %v70 = vld [vmem:[%s26 + $0xa8] sm:$0xff]
              %71 = vst [vmem:[%s27 + $0xa8] sm:$0xff] %v70
              %v72 = vld [vmem:[%s26 + $0xb0] sm:$0xff]
              %73 = vst [vmem:[%s27 + $0xb0] sm:$0xff] %v72
              %v74 = vld [vmem:[%s26 + $0xb8] sm:$0xff]
              %75 = vst [vmem:[%s27 + $0xb8] sm:$0xff] %v74
              %v76 = vld [vmem:[%s26 + $0xc0] sm:$0xff]
              %77 = vst [vmem:[%s27 + $0xc0] sm:$0xff] %v76
              %v78 = vld [vmem:[%s26 + $0xc8] sm:$0xff]
              %79 = vst [vmem:[%s27 + $0xc8] sm:$0xff] %v78
              %v80 = vld [vmem:[%s26 + $0xd0] sm:$0xff]
              %81 = vst [vmem:[%s27 + $0xd0] sm:$0xff] %v80
              %v82 = vld [vmem:[%s26 + $0xd8] sm:$0xff]
              %83 = vst [vmem:[%s27 + $0xd8] sm:$0xff] %v82
              %v84 = vld [vmem:[%s26 + $0xe0] sm:$0xff]
              %85 = vst [vmem:[%s27 + $0xe0] sm:$0xff] %v84
              %v86 = vld [vmem:[%s26 + $0xe8] sm:$0xff]
              %87 = vst [vmem:[%s27 + $0xe8] sm:$0xff] %v86
              %v88 = vld [vmem:[%s26 + $0xf0] sm:$0xff]
              %89 = vst [vmem:[%s27 + $0xf0] sm:$0xff] %v88
              %v90 = vld [vmem:[%s26 + $0xf8] sm:$0xff]
              %91 = vst [vmem:[%s27 + $0xf8] sm:$0xff] %v90
              %v92 = vld [vmem:[%s26 + $0x100] sm:$0xff]
              %93 = vst [vmem:[%s27 + $0x100] sm:$0xff] %v92
              %v94 = vld [vmem:[%s26 + $0x108] sm:$0xff]
              %95 = vst [vmem:[%s27 + $0x108] sm:$0xff] %v94
              %v96 = vld [vmem:[%s26 + $0x110] sm:$0xff]
              %97 = vst [vmem:[%s27 + $0x110] sm:$0xff] %v96
              %v98 = vld [vmem:[%s26 + $0x118] sm:$0xff]
              %99 = vst [vmem:[%s27 + $0x118] sm:$0xff] %v98
              %v100 = vld [vmem:[%s26 + $0x120] sm:$0xff]
              %101 = vst [vmem:[%s27 + $0x120] sm:$0xff] %v100
              %v102 = vld [vmem:[%s26 + $0x128] sm:$0xff]
              %103 = vst [vmem:[%s27 + $0x128] sm:$0xff] %v102
              %v104 = vld [vmem:[%s26 + $0x130] sm:$0xff]
              %105 = vst [vmem:[%s27 + $0x130] sm:$0xff] %v104
              %v106 = vld [vmem:[%s26 + $0x138] sm:$0xff]
              %107 = vst [vmem:[%s27 + $0x138] sm:$0xff] %v106
              %v108 = vld [vmem:[%s26 + $0x140] sm:$0xff]
              %109 = vst [vmem:[%s27 + $0x140] sm:$0xff] %v108
              %v110 = vld [vmem:[%s26 + $0x148] sm:$0xff]
              %111 = vst [vmem:[%s27 + $0x148] sm:$0xff] %v110
              %v112 = vld [vmem:[%s26 + $0x150] sm:$0xff]
              %113 = vst [vmem:[%s27 + $0x150] sm:$0xff] %v112
              %v114 = vld [vmem:[%s26 + $0x158] sm:$0xff]
              %115 = vst [vmem:[%s27 + $0x158] sm:$0xff] %v114
              %v116 = vld [vmem:[%s26 + $0x160] sm:$0xff]
              %117 = vst [vmem:[%s27 + $0x160] sm:$0xff] %v116
              %v118 = vld [vmem:[%s26 + $0x168] sm:$0xff]
              %119 = vst [vmem:[%s27 + $0x168] sm:$0xff] %v118
              %v120 = vld [vmem:[%s26 + $0x170] sm:$0xff]
              %121 = vst [vmem:[%s27 + $0x170] sm:$0xff] %v120
              %v122 = vld [vmem:[%s26 + $0x178] sm:$0xff]
              %123 = vst [vmem:[%s27 + $0x178] sm:$0xff] %v122
              %v124 = vld [vmem:[%s26 + $0x180] sm:$0xff]
              %125 = vst [vmem:[%s27 + $0x180] sm:$0xff] %v124
              %v126 = vld [vmem:[%s26 + $0x188] sm:$0xff]
              %127 = vst [vmem:[%s27 + $0x188] sm:$0xff] %v126
              %v128 = vld [vmem:[%s26 + $0x190] sm:$0xff]
              %129 = vst [vmem:[%s27 + $0x190] sm:$0xff] %v128
              %v130 = vld [vmem:[%s26 + $0x198] sm:$0xff]
              %131 = vst [vmem:[%s27 + $0x198] sm:$0xff] %v130
              %v132 = vld [vmem:[%s26 + $0x1a0] sm:$0xff]
              %133 = vst [vmem:[%s27 + $0x1a0] sm:$0xff] %v132
              %v134 = vld [vmem:[%s26 + $0x1a8] sm:$0xff]
              %135 = vst [vmem:[%s27 + $0x1a8] sm:$0xff] %v134
              %v136 = vld [vmem:[%s26 + $0x1b0] sm:$0xff]
              %137 = vst [vmem:[%s27 + $0x1b0] sm:$0xff] %v136
              %v138 = vld [vmem:[%s26 + $0x1b8] sm:$0xff]
              %139 = vst [vmem:[%s27 + $0x1b8] sm:$0xff] %v138
              %v140 = vld [vmem:[%s26 + $0x1c0] sm:$0xff]
              %141 = vst [vmem:[%s27 + $0x1c0] sm:$0xff] %v140
              %v142 = vld [vmem:[%s26 + $0x1c8] sm:$0xff]
              %143 = vst [vmem:[%s27 + $0x1c8] sm:$0xff] %v142
              %v144 = vld [vmem:[%s26 + $0x1d0] sm:$0xff]
              %145 = vst [vmem:[%s27 + $0x1d0] sm:$0xff] %v144
              %v146 = vld [vmem:[%s26 + $0x1d8] sm:$0xff]
              %147 = vst [vmem:[%s27 + $0x1d8] sm:$0xff] %v146
              %v148 = vld [vmem:[%s26 + $0x1e0] sm:$0xff]
              %149 = vst [vmem:[%s27 + $0x1e0] sm:$0xff] %v148
              %v150 = vld [vmem:[%s26 + $0x1e8] sm:$0xff]
              %151 = vst [vmem:[%s27 + $0x1e8] sm:$0xff] %v150
              %v152 = vld [vmem:[%s26 + $0x1f0] sm:$0xff]
              %153 = vst [vmem:[%s27 + $0x1f0] sm:$0xff] %v152
              %v154 = vld [vmem:[%s26 + $0x1f8] sm:$0xff]
              %155 = vst [vmem:[%s27 + $0x1f8] sm:$0xff] %v154
              %v156 = vld [vmem:[%s26 + $0x200] sm:$0xff]
              %157 = vst [vmem:[%s27 + $0x200] sm:$0xff] %v156
              %v158 = vld [vmem:[%s26 + $0x208] sm:$0xff]
              %159 = vst [vmem:[%s27 + $0x208] sm:$0xff] %v158
              %v160 = vld [vmem:[%s26 + $0x210] sm:$0xff]
              %161 = vst [vmem:[%s27 + $0x210] sm:$0xff] %v160
              %v162 = vld [vmem:[%s26 + $0x218] sm:$0xff]
              %163 = vst [vmem:[%s27 + $0x218] sm:$0xff] %v162
              %v164 = vld [vmem:[%s26 + $0x220] sm:$0xff]
              %165 = vst [vmem:[%s27 + $0x220] sm:$0xff] %v164
              %v166 = vld [vmem:[%s26 + $0x228] sm:$0xff]
              %167 = vst [vmem:[%s27 + $0x228] sm:$0xff] %v166
              %v168 = vld [vmem:[%s26 + $0x230] sm:$0xff]
              %169 = vst [vmem:[%s27 + $0x230] sm:$0xff] %v168
              %v170 = vld [vmem:[%s26 + $0x238] sm:$0xff]
              %171 = vst [vmem:[%s27 + $0x238] sm:$0xff] %v170
              %v172 = vld [vmem:[%s26 + $0x240] sm:$0xff]
              %173 = vst [vmem:[%s27 + $0x240] sm:$0xff] %v172
              %v174 = vld [vmem:[%s26 + $0x248] sm:$0xff]
              %175 = vst [vmem:[%s27 + $0x248] sm:$0xff] %v174
              %v176 = vld [vmem:[%s26 + $0x250] sm:$0xff]
              %177 = vst [vmem:[%s27 + $0x250] sm:$0xff] %v176
              %v178 = vld [vmem:[%s26 + $0x258] sm:$0xff]
              %179 = vst [vmem:[%s27 + $0x258] sm:$0xff] %v178
              %v180 = vld [vmem:[%s26 + $0x260] sm:$0xff]
              %181 = vst [vmem:[%s27 + $0x260] sm:$0xff] %v180
              %v182 = vld [vmem:[%s26 + $0x268] sm:$0xff]
              %183 = vst [vmem:[%s27 + $0x268] sm:$0xff] %v182
              %v184 = vld [vmem:[%s26 + $0x270] sm:$0xff]
              %185 = vst [vmem:[%s27 + $0x270] sm:$0xff] %v184
              %v186 = vld [vmem:[%s26 + $0x278] sm:$0xff]
              %187 = vst [vmem:[%s27 + $0x278] sm:$0xff] %v186
              %v188 = vld [vmem:[%s26 + $0x280] sm:$0xff]
              %189 = vst [vmem:[%s27 + $0x280] sm:$0xff] %v188
              %v190 = vld [vmem:[%s26 + $0x288] sm:$0xff]
              %191 = vst [vmem:[%s27 + $0x288] sm:$0xff] %v190
              %v192 = vld [vmem:[%s26 + $0x290] sm:$0xff]
              %193 = vst [vmem:[%s27 + $0x290] sm:$0xff] %v192
              %v194 = vld [vmem:[%s26 + $0x298] sm:$0xff]
              %195 = vst [vmem:[%s27 + $0x298] sm:$0xff] %v194
              %v196 = vld [vmem:[%s26 + $0x2a0] sm:$0xff]
              %197 = vst [vmem:[%s27 + $0x2a0] sm:$0xff] %v196
              %v198 = vld [vmem:[%s26 + $0x2a8] sm:$0xff]
              %199 = vst [vmem:[%s27 + $0x2a8] sm:$0xff] %v198
              %v200 = vld [vmem:[%s26 + $0x2b0] sm:$0xff]
              %201 = vst [vmem:[%s27 + $0x2b0] sm:$0xff] %v200
              %v202 = vld [vmem:[%s26 + $0x2b8] sm:$0xff]
              %203 = vst [vmem:[%s27 + $0x2b8] sm:$0xff] %v202
              %v204 = vld [vmem:[%s26 + $0x2c0] sm:$0xff]
              %205 = vst [vmem:[%s27 + $0x2c0] sm:$0xff] %v204
              %v206 = vld [vmem:[%s26 + $0x2c8] sm:$0xff]
              %207 = vst [vmem:[%s27 + $0x2c8] sm:$0xff] %v206
              %v208 = vld [vmem:[%s26 + $0x2d0] sm:$0xff]
              %209 = vst [vmem:[%s27 + $0x2d0] sm:$0xff] %v208
              %v210 = vld [vmem:[%s26 + $0x2d8] sm:$0xff]
              %211 = vst [vmem:[%s27 + $0x2d8] sm:$0xff] %v210
              %v212 = vld [vmem:[%s26 + $0x2e0] sm:$0xff]
              %213 = vst [vmem:[%s27 + $0x2e0] sm:$0xff] %v212
              %v214 = vld [vmem:[%s26 + $0x2e8] sm:$0xff]
              %215 = vst [vmem:[%s27 + $0x2e8] sm:$0xff] %v214
              %v216 = vld [vmem:[%s26 + $0x2f0] sm:$0xff]
              %217 = vst [vmem:[%s27 + $0x2f0] sm:$0xff] %v216
              %v218 = vld [vmem:[%s26 + $0x2f8] sm:$0xff]
              %219 = vst [vmem:[%s27 + $0x2f8] sm:$0xff] %v218
            $region23: #{custom-call} parent=17 // loop_footer
              %s25 = sadd.s32 1, %s21
            $region24: #{custom-call} parent=17 // loop_footer_branch
              %20 = sbr.rel target = $region20
            $region25: #{custom-call} parent=17 // loop_exit
              _
          $region18: #{custom-call} parent=9 // pred_fallthru
            _
        $region10: #{custom-call} parent=5 // pred_fallthru
          _
        %424 = vnop
      $region6: #{custom-call} parent=2 // pred_fallthru
        _
      // Predicated region
      $region41: #{custom-call} parent=2 // pred_check
        _
      $region42: #{custom-call} parent=2 // pred_check_branch
        %426 = sbr.rel (0) target = $region44
      $region43: #{custom-call} parent=2 // pred_region
        _
      $region44: #{custom-call} parent=2 // pred_fallthru
        _
      %v427 = vlaneseq
      %v428 = vshrl.u32 %v427, 7
      %v430 = vld [vmem:[#allocation14] sm:$0xff]
      %vm431 = vcmp.lt.s32.totalorder %v430, 0
      %v432 = vsub.s32 2147483647, %v430
      %v433 = vsel %vm431, %v432, %v430
      %vm435 = vcmp.lt.s32.totalorder %v428, 768
      %v436 = vsel %vm435, %v433, 2147483648
      %437 = vst [vmem:[#allocation14] sm:$0xff] %v436
      %s438 = scalar_lea.vmem [#allocation14], 8
      %v439 = vld [vmem:[%s438] sm:$0xff]
      %vm440 = vcmp.lt.s32.totalorder %v439, 0
      %v441 = vsub.s32 2147483647, %v439
      %v442 = vsel %vm440, %v441, %v439
      %v443 = vadd.s32 %v428, 8
      %vm444 = vcmp.lt.s32.totalorder %v443, 768
      %v445 = vsel %vm444, %v442, 2147483648
      %446 = vst [vmem:[%s438] sm:$0xff] %v445
      %s447 = scalar_lea.vmem [#allocation14], 16
      %v448 = vld [vmem:[%s447] sm:$0xff]
      %vm449 = vcmp.lt.s32.totalorder %v448, 0
      %v450 = vsub.s32 2147483647, %v448
      %v451 = vsel %vm449, %v450, %v448
      %v452 = vadd.s32 %v428, 16
      %vm453 = vcmp.lt.s32.totalorder %v452, 768
      %v454 = vsel %vm453, %v451, 2147483648
      %455 = vst [vmem:[%s447] sm:$0xff] %v454
      %s456 = scalar_lea.vmem [#allocation14], 24
      %v457 = vld [vmem:[%s456] sm:$0xff]
      %vm458 = vcmp.lt.s32.totalorder %v457, 0
      %v459 = vsub.s32 2147483647, %v457
      %v460 = vsel %vm458, %v459, %v457
      %v461 = vadd.s32 %v428, 24
      %vm462 = vcmp.lt.s32.totalorder %v461, 768
      %v463 = vsel %vm462, %v460, 2147483648
      %464 = vst [vmem:[%s456] sm:$0xff] %v463
      %s465 = scalar_lea.vmem [#allocation14], 32
      %v466 = vld [vmem:[%s465] sm:$0xff]
      %vm467 = vcmp.lt.s32.totalorder %v466, 0
      %v468 = vsub.s32 2147483647, %v466
      %v469 = vsel %vm467, %v468, %v466
      %v470 = vadd.s32 %v428, 32
      %vm471 = vcmp.lt.s32.totalorder %v470, 768
      %v472 = vsel %vm471, %v469, 2147483648
      %473 = vst [vmem:[%s465] sm:$0xff] %v472
      %s474 = scalar_lea.vmem [#allocation14], 40
      %v475 = vld [vmem:[%s474] sm:$0xff]
      %vm476 = vcmp.lt.s32.totalorder %v475, 0
      %v477 = vsub.s32 2147483647, %v475
      %v478 = vsel %vm476, %v477, %v475
      %v479 = vadd.s32 %v428, 40
      %vm480 = vcmp.lt.s32.totalorder %v479, 768
      %v481 = vsel %vm480, %v478, 2147483648
      %482 = vst [vmem:[%s474] sm:$0xff] %v481
      %s483 = scalar_lea.vmem [#allocation14], 48
      %v484 = vld [vmem:[%s483] sm:$0xff]
      %vm485 = vcmp.lt.s32.totalorder %v484, 0
      %v486 = vsub.s32 2147483647, %v484
      %v487 = vsel %vm485, %v486, %v484
      %v488 = vadd.s32 %v428, 48
      %vm489 = vcmp.lt.s32.totalorder %v488, 768
      %v490 = vsel %vm489, %v487, 2147483648
      %491 = vst [vmem:[%s483] sm:$0xff] %v490
      %s492 = scalar_lea.vmem [#allocation14], 56
      %v493 = vld [vmem:[%s492] sm:$0xff]
      %vm494 = vcmp.lt.s32.totalorder %v493, 0
      %v495 = vsub.s32 2147483647, %v493
      %v496 = vsel %vm494, %v495, %v493
      %v497 = vadd.s32 %v428, 56
      %vm498 = vcmp.lt.s32.totalorder %v497, 768
      %v499 = vsel %vm498, %v496, 2147483648
      %500 = vst [vmem:[%s492] sm:$0xff] %v499
      %s501 = scalar_lea.vmem [#allocation14], 64
      %v502 = vld [vmem:[%s501] sm:$0xff]
      %vm503 = vcmp.lt.s32.totalorder %v502, 0
      %v504 = vsub.s32 2147483647, %v502
      %v505 = vsel %vm503, %v504, %v502
      %v506 = vadd.s32 %v428, 64
      %vm507 = vcmp.lt.s32.totalorder %v506, 768
      %v508 = vsel %vm507, %v505, 2147483648
      %509 = vst [vmem:[%s501] sm:$0xff] %v508
      %s510 = scalar_lea.vmem [#allocation14], 72
      %v511 = vld [vmem:[%s510] sm:$0xff]
      %vm512 = vcmp.lt.s32.totalorder %v511, 0
      %v513 = vsub.s32 2147483647, %v511
      %v514 = vsel %vm512, %v513, %v511
      %v515 = vadd.s32 %v428, 72
      %vm516 = vcmp.lt.s32.totalorder %v515, 768
      %v517 = vsel %vm516, %v514, 2147483648
      %518 = vst [vmem:[%s510] sm:$0xff] %v517
      %s519 = scalar_lea.vmem [#allocation14], 80
      %v520 = vld [vmem:[%s519] sm:$0xff]
      %vm521 = vcmp.lt.s32.totalorder %v520, 0
      %v522 = vsub.s32 2147483647, %v520
      %v523 = vsel %vm521, %v522, %v520
      %v524 = vadd.s32 %v428, 80
      %vm525 = vcmp.lt.s32.totalorder %v524, 768
      %v526 = vsel %vm525, %v523, 2147483648
      %527 = vst [vmem:[%s519] sm:$0xff] %v526
      %s528 = scalar_lea.vmem [#allocation14], 88
      %v529 = vld [vmem:[%s528] sm:$0xff]
      %vm530 = vcmp.lt.s32.totalorder %v529, 0
      %v531 = vsub.s32 2147483647, %v529
      %v532 = vsel %vm530, %v531, %v529
      %v533 = vadd.s32 %v428, 88
      %vm534 = vcmp.lt.s32.totalorder %v533, 768
      %v535 = vsel %vm534, %v532, 2147483648
      %536 = vst [vmem:[%s528] sm:$0xff] %v535
      %s537 = scalar_lea.vmem [#allocation14], 96
      %v538 = vld [vmem:[%s537] sm:$0xff]
      %vm539 = vcmp.lt.s32.totalorder %v538, 0
      %v540 = vsub.s32 2147483647, %v538
      %v541 = vsel %vm539, %v540, %v538
      %v542 = vadd.s32 %v428, 96
      %vm543 = vcmp.lt.s32.totalorder %v542, 768
      %v544 = vsel %vm543, %v541, 2147483648
      %545 = vst [vmem:[%s537] sm:$0xff] %v544
      %s546 = scalar_lea.vmem [#allocation14], 104
      %v547 = vld [vmem:[%s546] sm:$0xff]
      %vm548 = vcmp.lt.s32.totalorder %v547, 0
      %v549 = vsub.s32 2147483647, %v547
      %v550 = vsel %vm548, %v549, %v547
      %v551 = vadd.s32 %v428, 104
      %vm552 = vcmp.lt.s32.totalorder %v551, 768
      %v553 = vsel %vm552, %v550, 2147483648
      %554 = vst [vmem:[%s546] sm:$0xff] %v553
      %s555 = scalar_lea.vmem [#allocation14], 112
      %v556 = vld [vmem:[%s555] sm:$0xff]
      %vm557 = vcmp.lt.s32.totalorder %v556, 0
      %v558 = vsub.s32 2147483647, %v556
      %v559 = vsel %vm557, %v558, %v556
      %v560 = vadd.s32 %v428, 112
      %vm561 = vcmp.lt.s32.totalorder %v560, 768
      %v562 = vsel %vm561, %v559, 2147483648
      %563 = vst [vmem:[%s555] sm:$0xff] %v562
      %s564 = scalar_lea.vmem [#allocation14], 120
      %v565 = vld [vmem:[%s564] sm:$0xff]
      %vm566 = vcmp.lt.s32.totalorder %v565, 0
      %v567 = vsub.s32 2147483647, %v565
      %v568 = vsel %vm566, %v567, %v565
      %v569 = vadd.s32 %v428, 120
      %vm570 = vcmp.lt.s32.totalorder %v569, 768
      %v571 = vsel %vm570, %v568, 2147483648
      %572 = vst [vmem:[%s564] sm:$0xff] %v571
      %s573 = scalar_lea.vmem [#allocation14], 128
      %v574 = vld [vmem:[%s573] sm:$0xff]
      %vm575 = vcmp.lt.s32.totalorder %v574, 0
      %v576 = vsub.s32 2147483647, %v574
      %v577 = vsel %vm575, %v576, %v574
      %v578 = vadd.s32 %v428, 128
      %vm579 = vcmp.lt.s32.totalorder %v578, 768
      %v580 = vsel %vm579, %v577, 2147483648
      %581 = vst [vmem:[%s573] sm:$0xff] %v580
      %s582 = scalar_lea.vmem [#allocation14], 136
      %v583 = vld [vmem:[%s582] sm:$0xff]
      %vm584 = vcmp.lt.s32.totalorder %v583, 0
      %v585 = vsub.s32 2147483647, %v583
      %v586 = vsel %vm584, %v585, %v583
      %v587 = vadd.s32 %v428, 136
      %vm588 = vcmp.lt.s32.totalorder %v587, 768
      %v589 = vsel %vm588, %v586, 2147483648
      %590 = vst [vmem:[%s582] sm:$0xff] %v589
      %s591 = scalar_lea.vmem [#allocation14], 144
      %v592 = vld [vmem:[%s591] sm:$0xff]
      %vm593 = vcmp.lt.s32.totalorder %v592, 0
      %v594 = vsub.s32 2147483647, %v592
      %v595 = vsel %vm593, %v594, %v592
      %v596 = vadd.s32 %v428, 144
      %vm597 = vcmp.lt.s32.totalorder %v596, 768
      %v598 = vsel %vm597, %v595, 2147483648
      %599 = vst [vmem:[%s591] sm:$0xff] %v598
      %s600 = scalar_lea.vmem [#allocation14], 152
      %v601 = vld [vmem:[%s600] sm:$0xff]
      %vm602 = vcmp.lt.s32.totalorder %v601, 0
      %v603 = vsub.s32 2147483647, %v601
      %v604 = vsel %vm602, %v603, %v601
      %v605 = vadd.s32 %v428, 152
      %vm606 = vcmp.lt.s32.totalorder %v605, 768
      %v607 = vsel %vm606, %v604, 2147483648
      %608 = vst [vmem:[%s600] sm:$0xff] %v607
      %s609 = scalar_lea.vmem [#allocation14], 160
      %v610 = vld [vmem:[%s609] sm:$0xff]
      %vm611 = vcmp.lt.s32.totalorder %v610, 0
      %v612 = vsub.s32 2147483647, %v610
      %v613 = vsel %vm611, %v612, %v610
      %v614 = vadd.s32 %v428, 160
      %vm615 = vcmp.lt.s32.totalorder %v614, 768
      %v616 = vsel %vm615, %v613, 2147483648
      %617 = vst [vmem:[%s609] sm:$0xff] %v616
      %s618 = scalar_lea.vmem [#allocation14], 168
      %v619 = vld [vmem:[%s618] sm:$0xff]
      %vm620 = vcmp.lt.s32.totalorder %v619, 0
      %v621 = vsub.s32 2147483647, %v619
      %v622 = vsel %vm620, %v621, %v619
      %v623 = vadd.s32 %v428, 168
      %vm624 = vcmp.lt.s32.totalorder %v623, 768
      %v625 = vsel %vm624, %v622, 2147483648
      %626 = vst [vmem:[%s618] sm:$0xff] %v625
      %s627 = scalar_lea.vmem [#allocation14], 176
      %v628 = vld [vmem:[%s627] sm:$0xff]
      %vm629 = vcmp.lt.s32.totalorder %v628, 0
      %v630 = vsub.s32 2147483647, %v628
      %v631 = vsel %vm629, %v630, %v628
      %v632 = vadd.s32 %v428, 176
      %vm633 = vcmp.lt.s32.totalorder %v632, 768
      %v634 = vsel %vm633, %v631, 2147483648
      %635 = vst [vmem:[%s627] sm:$0xff] %v634
      %s636 = scalar_lea.vmem [#allocation14], 184
      %v637 = vld [vmem:[%s636] sm:$0xff]
      %vm638 = vcmp.lt.s32.totalorder %v637, 0
      %v639 = vsub.s32 2147483647, %v637
      %v640 = vsel %vm638, %v639, %v637
      %v641 = vadd.s32 %v428, 184
      %vm642 = vcmp.lt.s32.totalorder %v641, 768
      %v643 = vsel %vm642, %v640, 2147483648
      %644 = vst [vmem:[%s636] sm:$0xff] %v643
      %s645 = scalar_lea.vmem [#allocation14], 192
      %v646 = vld [vmem:[%s645] sm:$0xff]
      %vm647 = vcmp.lt.s32.totalorder %v646, 0
      %v648 = vsub.s32 2147483647, %v646
      %v649 = vsel %vm647, %v648, %v646
      %v650 = vadd.s32 %v428, 192
      %vm651 = vcmp.lt.s32.totalorder %v650, 768
      %v652 = vsel %vm651, %v649, 2147483648
      %653 = vst [vmem:[%s645] sm:$0xff] %v652
      %s654 = scalar_lea.vmem [#allocation14], 200
      %v655 = vld [vmem:[%s654] sm:$0xff]
      %vm656 = vcmp.lt.s32.totalorder %v655, 0
      %v657 = vsub.s32 2147483647, %v655
      %v658 = vsel %vm656, %v657, %v655
      %v659 = vadd.s32 %v428, 200
      %vm660 = vcmp.lt.s32.totalorder %v659, 768
      %v661 = vsel %vm660, %v658, 2147483648
      %662 = vst [vmem:[%s654] sm:$0xff] %v661
      %s663 = scalar_lea.vmem [#allocation14], 208
      %v664 = vld [vmem:[%s663] sm:$0xff]
      %vm665 = vcmp.lt.s32.totalorder %v664, 0
      %v666 = vsub.s32 2147483647, %v664
      %v667 = vsel %vm665, %v666, %v664
      %v668 = vadd.s32 %v428, 208
      %vm669 = vcmp.lt.s32.totalorder %v668, 768
      %v670 = vsel %vm669, %v667, 2147483648
      %671 = vst [vmem:[%s663] sm:$0xff] %v670
      %s672 = scalar_lea.vmem [#allocation14], 216
      %v673 = vld [vmem:[%s672] sm:$0xff]
      %vm674 = vcmp.lt.s32.totalorder %v673, 0
      %v675 = vsub.s32 2147483647, %v673
      %v676 = vsel %vm674, %v675, %v673
      %v677 = vadd.s32 %v428, 216
      %vm678 = vcmp.lt.s32.totalorder %v677, 768
      %v679 = vsel %vm678, %v676, 2147483648
      %680 = vst [vmem:[%s672] sm:$0xff] %v679
      %s681 = scalar_lea.vmem [#allocation14], 224
      %v682 = vld [vmem:[%s681] sm:$0xff]
      %vm683 = vcmp.lt.s32.totalorder %v682, 0
      %v684 = vsub.s32 2147483647, %v682
      %v685 = vsel %vm683, %v684, %v682
      %v686 = vadd.s32 %v428, 224
      %vm687 = vcmp.lt.s32.totalorder %v686, 768
      %v688 = vsel %vm687, %v685, 2147483648
      %689 = vst [vmem:[%s681] sm:$0xff] %v688
      %s690 = scalar_lea.vmem [#allocation14], 232
      %v691 = vld [vmem:[%s690] sm:$0xff]
      %vm692 = vcmp.lt.s32.totalorder %v691, 0
      %v693 = vsub.s32 2147483647, %v691
      %v694 = vsel %vm692, %v693, %v691
      %v695 = vadd.s32 %v428, 232
      %vm696 = vcmp.lt.s32.totalorder %v695, 768
      %v697 = vsel %vm696, %v694, 2147483648
      %698 = vst [vmem:[%s690] sm:$0xff] %v697
      %s699 = scalar_lea.vmem [#allocation14], 240
      %v700 = vld [vmem:[%s699] sm:$0xff]
      %vm701 = vcmp.lt.s32.totalorder %v700, 0
      %v702 = vsub.s32 2147483647, %v700
      %v703 = vsel %vm701, %v702, %v700
      %v704 = vadd.s32 %v428, 240
      %vm705 = vcmp.lt.s32.totalorder %v704, 768
      %v706 = vsel %vm705, %v703, 2147483648
      %707 = vst [vmem:[%s699] sm:$0xff] %v706
      %s708 = scalar_lea.vmem [#allocation14], 248
      %v709 = vld [vmem:[%s708] sm:$0xff]
      %vm710 = vcmp.lt.s32.totalorder %v709, 0
      %v711 = vsub.s32 2147483647, %v709
      %v712 = vsel %vm710, %v711, %v709
      %v713 = vadd.s32 %v428, 248
      %vm714 = vcmp.lt.s32.totalorder %v713, 768
      %v715 = vsel %vm714, %v712, 2147483648
      %716 = vst [vmem:[%s708] sm:$0xff] %v715
      %s717 = scalar_lea.vmem [#allocation14], 256
      %v718 = vld [vmem:[%s717] sm:$0xff]
      %vm719 = vcmp.lt.s32.totalorder %v718, 0
      %v720 = vsub.s32 2147483647, %v718
      %v721 = vsel %vm719, %v720, %v718
      %v722 = vadd.s32 %v428, 256
      %vm723 = vcmp.lt.s32.totalorder %v722, 768
      %v724 = vsel %vm723, %v721, 2147483648
      %725 = vst [vmem:[%s717] sm:$0xff] %v724
      %s726 = scalar_lea.vmem [#allocation14], 264
      %v727 = vld [vmem:[%s726] sm:$0xff]
      %vm728 = vcmp.lt.s32.totalorder %v727, 0
      %v729 = vsub.s32 2147483647, %v727
      %v730 = vsel %vm728, %v729, %v727
      %v731 = vadd.s32 %v428, 264
      %vm732 = vcmp.lt.s32.totalorder %v731, 768
      %v733 = vsel %vm732, %v730, 2147483648
      %734 = vst [vmem:[%s726] sm:$0xff] %v733
      %s735 = scalar_lea.vmem [#allocation14], 272
      %v736 = vld [vmem:[%s735] sm:$0xff]
      %vm737 = vcmp.lt.s32.totalorder %v736, 0
      %v738 = vsub.s32 2147483647, %v736
      %v739 = vsel %vm737, %v738, %v736
      %v740 = vadd.s32 %v428, 272
      %vm741 = vcmp.lt.s32.totalorder %v740, 768
      %v742 = vsel %vm741, %v739, 2147483648
      %743 = vst [vmem:[%s735] sm:$0xff] %v742
      %s744 = scalar_lea.vmem [#allocation14], 280
      %v745 = vld [vmem:[%s744] sm:$0xff]
      %vm746 = vcmp.lt.s32.totalorder %v745, 0
      %v747 = vsub.s32 2147483647, %v745
      %v748 = vsel %vm746, %v747, %v745
      %v749 = vadd.s32 %v428, 280
      %vm750 = vcmp.lt.s32.totalorder %v749, 768
      %v751 = vsel %vm750, %v748, 2147483648
      %752 = vst [vmem:[%s744] sm:$0xff] %v751
      %s753 = scalar_lea.vmem [#allocation14], 288
      %v754 = vld [vmem:[%s753] sm:$0xff]
      %vm755 = vcmp.lt.s32.totalorder %v754, 0
      %v756 = vsub.s32 2147483647, %v754
      %v757 = vsel %vm755, %v756, %v754
      %v758 = vadd.s32 %v428, 288
      %vm759 = vcmp.lt.s32.totalorder %v758, 768
      %v760 = vsel %vm759, %v757, 2147483648
      %761 = vst [vmem:[%s753] sm:$0xff] %v760
      %s762 = scalar_lea.vmem [#allocation14], 296
      %v763 = vld [vmem:[%s762] sm:$0xff]
      %vm764 = vcmp.lt.s32.totalorder %v763, 0
      %v765 = vsub.s32 2147483647, %v763
      %v766 = vsel %vm764, %v765, %v763
      %v767 = vadd.s32 %v428, 296
      %vm768 = vcmp.lt.s32.totalorder %v767, 768
      %v769 = vsel %vm768, %v766, 2147483648
      %770 = vst [vmem:[%s762] sm:$0xff] %v769
      %s771 = scalar_lea.vmem [#allocation14], 304
      %v772 = vld [vmem:[%s771] sm:$0xff]
      %vm773 = vcmp.lt.s32.totalorder %v772, 0
      %v774 = vsub.s32 2147483647, %v772
      %v775 = vsel %vm773, %v774, %v772
      %v776 = vadd.s32 %v428, 304
      %vm777 = vcmp.lt.s32.totalorder %v776, 768
      %v778 = vsel %vm777, %v775, 2147483648
      %779 = vst [vmem:[%s771] sm:$0xff] %v778
      %s780 = scalar_lea.vmem [#allocation14], 312
      %v781 = vld [vmem:[%s780] sm:$0xff]
      %vm782 = vcmp.lt.s32.totalorder %v781, 0
      %v783 = vsub.s32 2147483647, %v781
      %v784 = vsel %vm782, %v783, %v781
      %v785 = vadd.s32 %v428, 312
      %vm786 = vcmp.lt.s32.totalorder %v785, 768
      %v787 = vsel %vm786, %v784, 2147483648
      %788 = vst [vmem:[%s780] sm:$0xff] %v787
      %s789 = scalar_lea.vmem [#allocation14], 320
      %v790 = vld [vmem:[%s789] sm:$0xff]
      %vm791 = vcmp.lt.s32.totalorder %v790, 0
      %v792 = vsub.s32 2147483647, %v790
      %v793 = vsel %vm791, %v792, %v790
      %v794 = vadd.s32 %v428, 320
      %vm795 = vcmp.lt.s32.totalorder %v794, 768
      %v796 = vsel %vm795, %v793, 2147483648
      %797 = vst [vmem:[%s789] sm:$0xff] %v796
      %s798 = scalar_lea.vmem [#allocation14], 328
      %v799 = vld [vmem:[%s798] sm:$0xff]
      %vm800 = vcmp.lt.s32.totalorder %v799, 0
      %v801 = vsub.s32 2147483647, %v799
      %v802 = vsel %vm800, %v801, %v799
      %v803 = vadd.s32 %v428, 328
      %vm804 = vcmp.lt.s32.totalorder %v803, 768
      %v805 = vsel %vm804, %v802, 2147483648
      %806 = vst [vmem:[%s798] sm:$0xff] %v805
      %s807 = scalar_lea.vmem [#allocation14], 336
      %v808 = vld [vmem:[%s807] sm:$0xff]
      %vm809 = vcmp.lt.s32.totalorder %v808, 0
      %v810 = vsub.s32 2147483647, %v808
      %v811 = vsel %vm809, %v810, %v808
      %v812 = vadd.s32 %v428, 336
      %vm813 = vcmp.lt.s32.totalorder %v812, 768
      %v814 = vsel %vm813, %v811, 2147483648
      %815 = vst [vmem:[%s807] sm:$0xff] %v814
      %s816 = scalar_lea.vmem [#allocation14], 344
      %v817 = vld [vmem:[%s816] sm:$0xff]
      %vm818 = vcmp.lt.s32.totalorder %v817, 0
      %v819 = vsub.s32 2147483647, %v817
      %v820 = vsel %vm818, %v819, %v817
      %v821 = vadd.s32 %v428, 344
      %vm822 = vcmp.lt.s32.totalorder %v821, 768
      %v823 = vsel %vm822, %v820, 2147483648
      %824 = vst [vmem:[%s816] sm:$0xff] %v823
      %s825 = scalar_lea.vmem [#allocation14], 352
      %v826 = vld [vmem:[%s825] sm:$0xff]
      %vm827 = vcmp.lt.s32.totalorder %v826, 0
      %v828 = vsub.s32 2147483647, %v826
      %v829 = vsel %vm827, %v828, %v826
      %v830 = vadd.s32 %v428, 352
      %vm831 = vcmp.lt.s32.totalorder %v830, 768
      %v832 = vsel %vm831, %v829, 2147483648
      %833 = vst [vmem:[%s825] sm:$0xff] %v832
      %s834 = scalar_lea.vmem [#allocation14], 360
      %v835 = vld [vmem:[%s834] sm:$0xff]
      %vm836 = vcmp.lt.s32.totalorder %v835, 0
      %v837 = vsub.s32 2147483647, %v835
      %v838 = vsel %vm836, %v837, %v835
      %v839 = vadd.s32 %v428, 360
      %vm840 = vcmp.lt.s32.totalorder %v839, 768
      %v841 = vsel %vm840, %v838, 2147483648
      %842 = vst [vmem:[%s834] sm:$0xff] %v841
      %s843 = scalar_lea.vmem [#allocation14], 368
      %v844 = vld [vmem:[%s843] sm:$0xff]
      %vm845 = vcmp.lt.s32.totalorder %v844, 0
      %v846 = vsub.s32 2147483647, %v844
      %v847 = vsel %vm845, %v846, %v844
      %v848 = vadd.s32 %v428, 368
      %vm849 = vcmp.lt.s32.totalorder %v848, 768
      %v850 = vsel %vm849, %v847, 2147483648
      %851 = vst [vmem:[%s843] sm:$0xff] %v850
      %s852 = scalar_lea.vmem [#allocation14], 376
      %v853 = vld [vmem:[%s852] sm:$0xff]
      %vm854 = vcmp.lt.s32.totalorder %v853, 0
      %v855 = vsub.s32 2147483647, %v853
      %v856 = vsel %vm854, %v855, %v853
      %v857 = vadd.s32 %v428, 376
      %vm858 = vcmp.lt.s32.totalorder %v857, 768
      %v859 = vsel %vm858, %v856, 2147483648
      %860 = vst [vmem:[%s852] sm:$0xff] %v859
      %s861 = scalar_lea.vmem [#allocation14], 384
      %v862 = vld [vmem:[%s861] sm:$0xff]
      %vm863 = vcmp.lt.s32.totalorder %v862, 0
      %v864 = vsub.s32 2147483647, %v862
      %v865 = vsel %vm863, %v864, %v862
      %v866 = vadd.s32 %v428, 384
      %vm867 = vcmp.lt.s32.totalorder %v866, 768
      %v868 = vsel %vm867, %v865, 2147483648
      %869 = vst [vmem:[%s861] sm:$0xff] %v868
      %s870 = scalar_lea.vmem [#allocation14], 392
      %v871 = vld [vmem:[%s870] sm:$0xff]
      %vm872 = vcmp.lt.s32.totalorder %v871, 0
      %v873 = vsub.s32 2147483647, %v871
      %v874 = vsel %vm872, %v873, %v871
      %v875 = vadd.s32 %v428, 392
      %vm876 = vcmp.lt.s32.totalorder %v875, 768
      %v877 = vsel %vm876, %v874, 2147483648
      %878 = vst [vmem:[%s870] sm:$0xff] %v877
      %s879 = scalar_lea.vmem [#allocation14], 400
      %v880 = vld [vmem:[%s879] sm:$0xff]
      %vm881 = vcmp.lt.s32.totalorder %v880, 0
      %v882 = vsub.s32 2147483647, %v880
      %v883 = vsel %vm881, %v882, %v880
      %v884 = vadd.s32 %v428, 400
      %vm885 = vcmp.lt.s32.totalorder %v884, 768
      %v886 = vsel %vm885, %v883, 2147483648
      %887 = vst [vmem:[%s879] sm:$0xff] %v886
      %s888 = scalar_lea.vmem [#allocation14], 408
      %v889 = vld [vmem:[%s888] sm:$0xff]
      %vm890 = vcmp.lt.s32.totalorder %v889, 0
      %v891 = vsub.s32 2147483647, %v889
      %v892 = vsel %vm890, %v891, %v889
      %v893 = vadd.s32 %v428, 408
      %vm894 = vcmp.lt.s32.totalorder %v893, 768
      %v895 = vsel %vm894, %v892, 2147483648
      %896 = vst [vmem:[%s888] sm:$0xff] %v895
      %s897 = scalar_lea.vmem [#allocation14], 416
      %v898 = vld [vmem:[%s897] sm:$0xff]
      %vm899 = vcmp.lt.s32.totalorder %v898, 0
      %v900 = vsub.s32 2147483647, %v898
      %v901 = vsel %vm899, %v900, %v898
      %v902 = vadd.s32 %v428, 416
      %vm903 = vcmp.lt.s32.totalorder %v902, 768
      %v904 = vsel %vm903, %v901, 2147483648
      %905 = vst [vmem:[%s897] sm:$0xff] %v904
      %s906 = scalar_lea.vmem [#allocation14], 424
      %v907 = vld [vmem:[%s906] sm:$0xff]
      %vm908 = vcmp.lt.s32.totalorder %v907, 0
      %v909 = vsub.s32 2147483647, %v907
      %v910 = vsel %vm908, %v909, %v907
      %v911 = vadd.s32 %v428, 424
      %vm912 = vcmp.lt.s32.totalorder %v911, 768
      %v913 = vsel %vm912, %v910, 2147483648
      %914 = vst [vmem:[%s906] sm:$0xff] %v913
      %s915 = scalar_lea.vmem [#allocation14], 432
      %v916 = vld [vmem:[%s915] sm:$0xff]
      %vm917 = vcmp.lt.s32.totalorder %v916, 0
      %v918 = vsub.s32 2147483647, %v916
      %v919 = vsel %vm917, %v918, %v916
      %v920 = vadd.s32 %v428, 432
      %vm921 = vcmp.lt.s32.totalorder %v920, 768
      %v922 = vsel %vm921, %v919, 2147483648
      %923 = vst [vmem:[%s915] sm:$0xff] %v922
      %s924 = scalar_lea.vmem [#allocation14], 440
      %v925 = vld [vmem:[%s924] sm:$0xff]
      %vm926 = vcmp.lt.s32.totalorder %v925, 0
      %v927 = vsub.s32 2147483647, %v925
      %v928 = vsel %vm926, %v927, %v925
      %v929 = vadd.s32 %v428, 440
      %vm930 = vcmp.lt.s32.totalorder %v929, 768
      %v931 = vsel %vm930, %v928, 2147483648
      %932 = vst [vmem:[%s924] sm:$0xff] %v931
      %s933 = scalar_lea.vmem [#allocation14], 448
      %v934 = vld [vmem:[%s933] sm:$0xff]
      %vm935 = vcmp.lt.s32.totalorder %v934, 0
      %v936 = vsub.s32 2147483647, %v934
      %v937 = vsel %vm935, %v936, %v934
      %v938 = vadd.s32 %v428, 448
      %vm939 = vcmp.lt.s32.totalorder %v938, 768
      %v940 = vsel %vm939, %v937, 2147483648
      %941 = vst [vmem:[%s933] sm:$0xff] %v940
      %s942 = scalar_lea.vmem [#allocation14], 456
      %v943 = vld [vmem:[%s942] sm:$0xff]
      %vm944 = vcmp.lt.s32.totalorder %v943, 0
      %v945 = vsub.s32 2147483647, %v943
      %v946 = vsel %vm944, %v945, %v943
      %v947 = vadd.s32 %v428, 456
      %vm948 = vcmp.lt.s32.totalorder %v947, 768
      %v949 = vsel %vm948, %v946, 2147483648
      %950 = vst [vmem:[%s942] sm:$0xff] %v949
      %s951 = scalar_lea.vmem [#allocation14], 464
      %v952 = vld [vmem:[%s951] sm:$0xff]
      %vm953 = vcmp.lt.s32.totalorder %v952, 0
      %v954 = vsub.s32 2147483647, %v952
      %v955 = vsel %vm953, %v954, %v952
      %v956 = vadd.s32 %v428, 464
      %vm957 = vcmp.lt.s32.totalorder %v956, 768
      %v958 = vsel %vm957, %v955, 2147483648
      %959 = vst [vmem:[%s951] sm:$0xff] %v958
      %s960 = scalar_lea.vmem [#allocation14], 472
      %v961 = vld [vmem:[%s960] sm:$0xff]
      %vm962 = vcmp.lt.s32.totalorder %v961, 0
      %v963 = vsub.s32 2147483647, %v961
      %v964 = vsel %vm962, %v963, %v961
      %v965 = vadd.s32 %v428, 472
      %vm966 = vcmp.lt.s32.totalorder %v965, 768
      %v967 = vsel %vm966, %v964, 2147483648
      %968 = vst [vmem:[%s960] sm:$0xff] %v967
      %s969 = scalar_lea.vmem [#allocation14], 480
      %v970 = vld [vmem:[%s969] sm:$0xff]
      %vm971 = vcmp.lt.s32.totalorder %v970, 0
      %v972 = vsub.s32 2147483647, %v970
      %v973 = vsel %vm971, %v972, %v970
      %v974 = vadd.s32 %v428, 480
      %vm975 = vcmp.lt.s32.totalorder %v974, 768
      %v976 = vsel %vm975, %v973, 2147483648
      %977 = vst [vmem:[%s969] sm:$0xff] %v976
      %s978 = scalar_lea.vmem [#allocation14], 488
      %v979 = vld [vmem:[%s978] sm:$0xff]
      %vm980 = vcmp.lt.s32.totalorder %v979, 0
      %v981 = vsub.s32 2147483647, %v979
      %v982 = vsel %vm980, %v981, %v979
      %v983 = vadd.s32 %v428, 488
      %vm984 = vcmp.lt.s32.totalorder %v983, 768
      %v985 = vsel %vm984, %v982, 2147483648
      %986 = vst [vmem:[%s978] sm:$0xff] %v985
      %s987 = scalar_lea.vmem [#allocation14], 496
      %v988 = vld [vmem:[%s987] sm:$0xff]
      %vm989 = vcmp.lt.s32.totalorder %v988, 0
      %v990 = vsub.s32 2147483647, %v988
      %v991 = vsel %vm989, %v990, %v988
      %v992 = vadd.s32 %v428, 496
      %vm993 = vcmp.lt.s32.totalorder %v992, 768
      %v994 = vsel %vm993, %v991, 2147483648
      %995 = vst [vmem:[%s987] sm:$0xff] %v994
      %s996 = scalar_lea.vmem [#allocation14], 504
      %v997 = vld [vmem:[%s996] sm:$0xff]
      %vm998 = vcmp.lt.s32.totalorder %v997, 0
      %v999 = vsub.s32 2147483647, %v997
      %v1000 = vsel %vm998, %v999, %v997
      %v1001 = vadd.s32 %v428, 504
      %vm1002 = vcmp.lt.s32.totalorder %v1001, 768
      %v1003 = vsel %vm1002, %v1000, 2147483648
      %1004 = vst [vmem:[%s996] sm:$0xff] %v1003
      %s1005 = scalar_lea.vmem [#allocation14], 512
      %v1006 = vld [vmem:[%s1005] sm:$0xff]
      %vm1007 = vcmp.lt.s32.totalorder %v1006, 0
      %v1008 = vsub.s32 2147483647, %v1006
      %v1009 = vsel %vm1007, %v1008, %v1006
      %v1010 = vadd.s32 %v428, 512
      %vm1011 = vcmp.lt.s32.totalorder %v1010, 768
      %v1012 = vsel %vm1011, %v1009, 2147483648
      %1013 = vst [vmem:[%s1005] sm:$0xff] %v1012
      %s1014 = scalar_lea.vmem [#allocation14], 520
      %v1015 = vld [vmem:[%s1014] sm:$0xff]
      %vm1016 = vcmp.lt.s32.totalorder %v1015, 0
      %v1017 = vsub.s32 2147483647, %v1015
      %v1018 = vsel %vm1016, %v1017, %v1015
      %v1019 = vadd.s32 %v428, 520
      %vm1020 = vcmp.lt.s32.totalorder %v1019, 768
      %v1021 = vsel %vm1020, %v1018, 2147483648
      %1022 = vst [vmem:[%s1014] sm:$0xff] %v1021
      %s1023 = scalar_lea.vmem [#allocation14], 528
      %v1024 = vld [vmem:[%s1023] sm:$0xff]
      %vm1025 = vcmp.lt.s32.totalorder %v1024, 0
      %v1026 = vsub.s32 2147483647, %v1024
      %v1027 = vsel %vm1025, %v1026, %v1024
      %v1028 = vadd.s32 %v428, 528
      %vm1029 = vcmp.lt.s32.totalorder %v1028, 768
      %v1030 = vsel %vm1029, %v1027, 2147483648
      %1031 = vst [vmem:[%s1023] sm:$0xff] %v1030
      %s1032 = scalar_lea.vmem [#allocation14], 536
      %v1033 = vld [vmem:[%s1032] sm:$0xff]
      %vm1034 = vcmp.lt.s32.totalorder %v1033, 0
      %v1035 = vsub.s32 2147483647, %v1033
      %v1036 = vsel %vm1034, %v1035, %v1033
      %v1037 = vadd.s32 %v428, 536
      %vm1038 = vcmp.lt.s32.totalorder %v1037, 768
      %v1039 = vsel %vm1038, %v1036, 2147483648
      %1040 = vst [vmem:[%s1032] sm:$0xff] %v1039
      %s1041 = scalar_lea.vmem [#allocation14], 544
      %v1042 = vld [vmem:[%s1041] sm:$0xff]
      %vm1043 = vcmp.lt.s32.totalorder %v1042, 0
      %v1044 = vsub.s32 2147483647, %v1042
      %v1045 = vsel %vm1043, %v1044, %v1042
      %v1046 = vadd.s32 %v428, 544
      %vm1047 = vcmp.lt.s32.totalorder %v1046, 768
      %v1048 = vsel %vm1047, %v1045, 2147483648
      %1049 = vst [vmem:[%s1041] sm:$0xff] %v1048
      %s1050 = scalar_lea.vmem [#allocation14], 552
      %v1051 = vld [vmem:[%s1050] sm:$0xff]
      %vm1052 = vcmp.lt.s32.totalorder %v1051, 0
      %v1053 = vsub.s32 2147483647, %v1051
      %v1054 = vsel %vm1052, %v1053, %v1051
      %v1055 = vadd.s32 %v428, 552
      %vm1056 = vcmp.lt.s32.totalorder %v1055, 768
      %v1057 = vsel %vm1056, %v1054, 2147483648
      %1058 = vst [vmem:[%s1050] sm:$0xff] %v1057
      %s1059 = scalar_lea.vmem [#allocation14], 560
      %v1060 = vld [vmem:[%s1059] sm:$0xff]
      %vm1061 = vcmp.lt.s32.totalorder %v1060, 0
      %v1062 = vsub.s32 2147483647, %v1060
      %v1063 = vsel %vm1061, %v1062, %v1060
      %v1064 = vadd.s32 %v428, 560
      %vm1065 = vcmp.lt.s32.totalorder %v1064, 768
      %v1066 = vsel %vm1065, %v1063, 2147483648
      %1067 = vst [vmem:[%s1059] sm:$0xff] %v1066
      %s1068 = scalar_lea.vmem [#allocation14], 568
      %v1069 = vld [vmem:[%s1068] sm:$0xff]
      %vm1070 = vcmp.lt.s32.totalorder %v1069, 0
      %v1071 = vsub.s32 2147483647, %v1069
      %v1072 = vsel %vm1070, %v1071, %v1069
      %v1073 = vadd.s32 %v428, 568
      %vm1074 = vcmp.lt.s32.totalorder %v1073, 768
      %v1075 = vsel %vm1074, %v1072, 2147483648
      %1076 = vst [vmem:[%s1068] sm:$0xff] %v1075
      %s1077 = scalar_lea.vmem [#allocation14], 576
      %v1078 = vld [vmem:[%s1077] sm:$0xff]
      %vm1079 = vcmp.lt.s32.totalorder %v1078, 0
      %v1080 = vsub.s32 2147483647, %v1078
      %v1081 = vsel %vm1079, %v1080, %v1078
      %v1082 = vadd.s32 %v428, 576
      %vm1083 = vcmp.lt.s32.totalorder %v1082, 768
      %v1084 = vsel %vm1083, %v1081, 2147483648
      %1085 = vst [vmem:[%s1077] sm:$0xff] %v1084
      %s1086 = scalar_lea.vmem [#allocation14], 584
      %v1087 = vld [vmem:[%s1086] sm:$0xff]
      %vm1088 = vcmp.lt.s32.totalorder %v1087, 0
      %v1089 = vsub.s32 2147483647, %v1087
      %v1090 = vsel %vm1088, %v1089, %v1087
      %v1091 = vadd.s32 %v428, 584
      %vm1092 = vcmp.lt.s32.totalorder %v1091, 768
      %v1093 = vsel %vm1092, %v1090, 2147483648
      %1094 = vst [vmem:[%s1086] sm:$0xff] %v1093
      %s1095 = scalar_lea.vmem [#allocation14], 592
      %v1096 = vld [vmem:[%s1095] sm:$0xff]
      %vm1097 = vcmp.lt.s32.totalorder %v1096, 0
      %v1098 = vsub.s32 2147483647, %v1096
      %v1099 = vsel %vm1097, %v1098, %v1096
      %v1100 = vadd.s32 %v428, 592
      %vm1101 = vcmp.lt.s32.totalorder %v1100, 768
      %v1102 = vsel %vm1101, %v1099, 2147483648
      %1103 = vst [vmem:[%s1095] sm:$0xff] %v1102
      %s1104 = scalar_lea.vmem [#allocation14], 600
      %v1105 = vld [vmem:[%s1104] sm:$0xff]
      %vm1106 = vcmp.lt.s32.totalorder %v1105, 0
      %v1107 = vsub.s32 2147483647, %v1105
      %v1108 = vsel %vm1106, %v1107, %v1105
      %v1109 = vadd.s32 %v428, 600
      %vm1110 = vcmp.lt.s32.totalorder %v1109, 768
      %v1111 = vsel %vm1110, %v1108, 2147483648
      %1112 = vst [vmem:[%s1104] sm:$0xff] %v1111
      %s1113 = scalar_lea.vmem [#allocation14], 608
      %v1114 = vld [vmem:[%s1113] sm:$0xff]
      %vm1115 = vcmp.lt.s32.totalorder %v1114, 0
      %v1116 = vsub.s32 2147483647, %v1114
      %v1117 = vsel %vm1115, %v1116, %v1114
      %v1118 = vadd.s32 %v428, 608
      %vm1119 = vcmp.lt.s32.totalorder %v1118, 768
      %v1120 = vsel %vm1119, %v1117, 2147483648
      %1121 = vst [vmem:[%s1113] sm:$0xff] %v1120
      %s1122 = scalar_lea.vmem [#allocation14], 616
      %v1123 = vld [vmem:[%s1122] sm:$0xff]
      %vm1124 = vcmp.lt.s32.totalorder %v1123, 0
      %v1125 = vsub.s32 2147483647, %v1123
      %v1126 = vsel %vm1124, %v1125, %v1123
      %v1127 = vadd.s32 %v428, 616
      %vm1128 = vcmp.lt.s32.totalorder %v1127, 768
      %v1129 = vsel %vm1128, %v1126, 2147483648
      %1130 = vst [vmem:[%s1122] sm:$0xff] %v1129
      %s1131 = scalar_lea.vmem [#allocation14], 624
      %v1132 = vld [vmem:[%s1131] sm:$0xff]
      %vm1133 = vcmp.lt.s32.totalorder %v1132, 0
      %v1134 = vsub.s32 2147483647, %v1132
      %v1135 = vsel %vm1133, %v1134, %v1132
      %v1136 = vadd.s32 %v428, 624
      %vm1137 = vcmp.lt.s32.totalorder %v1136, 768
      %v1138 = vsel %vm1137, %v1135, 2147483648
      %1139 = vst [vmem:[%s1131] sm:$0xff] %v1138
      %s1140 = scalar_lea.vmem [#allocation14], 632
      %v1141 = vld [vmem:[%s1140] sm:$0xff]
      %vm1142 = vcmp.lt.s32.totalorder %v1141, 0
      %v1143 = vsub.s32 2147483647, %v1141
      %v1144 = vsel %vm1142, %v1143, %v1141
      %v1145 = vadd.s32 %v428, 632
      %vm1146 = vcmp.lt.s32.totalorder %v1145, 768
      %v1147 = vsel %vm1146, %v1144, 2147483648
      %1148 = vst [vmem:[%s1140] sm:$0xff] %v1147
      %s1149 = scalar_lea.vmem [#allocation14], 640
      %v1150 = vld [vmem:[%s1149] sm:$0xff]
      %vm1151 = vcmp.lt.s32.totalorder %v1150, 0
      %v1152 = vsub.s32 2147483647, %v1150
      %v1153 = vsel %vm1151, %v1152, %v1150
      %v1154 = vadd.s32 %v428, 640
      %vm1155 = vcmp.lt.s32.totalorder %v1154, 768
      %v1156 = vsel %vm1155, %v1153, 2147483648
      %1157 = vst [vmem:[%s1149] sm:$0xff] %v1156
      %s1158 = scalar_lea.vmem [#allocation14], 648
      %v1159 = vld [vmem:[%s1158] sm:$0xff]
      %vm1160 = vcmp.lt.s32.totalorder %v1159, 0
      %v1161 = vsub.s32 2147483647, %v1159
      %v1162 = vsel %vm1160, %v1161, %v1159
      %v1163 = vadd.s32 %v428, 648
      %vm1164 = vcmp.lt.s32.totalorder %v1163, 768
      %v1165 = vsel %vm1164, %v1162, 2147483648
      %1166 = vst [vmem:[%s1158] sm:$0xff] %v1165
      %s1167 = scalar_lea.vmem [#allocation14], 656
      %v1168 = vld [vmem:[%s1167] sm:$0xff]
      %vm1169 = vcmp.lt.s32.totalorder %v1168, 0
      %v1170 = vsub.s32 2147483647, %v1168
      %v1171 = vsel %vm1169, %v1170, %v1168
      %v1172 = vadd.s32 %v428, 656
      %vm1173 = vcmp.lt.s32.totalorder %v1172, 768
      %v1174 = vsel %vm1173, %v1171, 2147483648
      %1175 = vst [vmem:[%s1167] sm:$0xff] %v1174
      %s1176 = scalar_lea.vmem [#allocation14], 664
      %v1177 = vld [vmem:[%s1176] sm:$0xff]
      %vm1178 = vcmp.lt.s32.totalorder %v1177, 0
      %v1179 = vsub.s32 2147483647, %v1177
      %v1180 = vsel %vm1178, %v1179, %v1177
      %v1181 = vadd.s32 %v428, 664
      %vm1182 = vcmp.lt.s32.totalorder %v1181, 768
      %v1183 = vsel %vm1182, %v1180, 2147483648
      %1184 = vst [vmem:[%s1176] sm:$0xff] %v1183
      %s1185 = scalar_lea.vmem [#allocation14], 672
      %v1186 = vld [vmem:[%s1185] sm:$0xff]
      %vm1187 = vcmp.lt.s32.totalorder %v1186, 0
      %v1188 = vsub.s32 2147483647, %v1186
      %v1189 = vsel %vm1187, %v1188, %v1186
      %v1190 = vadd.s32 %v428, 672
      %vm1191 = vcmp.lt.s32.totalorder %v1190, 768
      %v1192 = vsel %vm1191, %v1189, 2147483648
      %1193 = vst [vmem:[%s1185] sm:$0xff] %v1192
      %s1194 = scalar_lea.vmem [#allocation14], 680
      %v1195 = vld [vmem:[%s1194] sm:$0xff]
      %vm1196 = vcmp.lt.s32.totalorder %v1195, 0
      %v1197 = vsub.s32 2147483647, %v1195
      %v1198 = vsel %vm1196, %v1197, %v1195
      %v1199 = vadd.s32 %v428, 680
      %vm1200 = vcmp.lt.s32.totalorder %v1199, 768
      %v1201 = vsel %vm1200, %v1198, 2147483648
      %1202 = vst [vmem:[%s1194] sm:$0xff] %v1201
      %s1203 = scalar_lea.vmem [#allocation14], 688
      %v1204 = vld [vmem:[%s1203] sm:$0xff]
      %vm1205 = vcmp.lt.s32.totalorder %v1204, 0
      %v1206 = vsub.s32 2147483647, %v1204
      %v1207 = vsel %vm1205, %v1206, %v1204
      %v1208 = vadd.s32 %v428, 688
      %vm1209 = vcmp.lt.s32.totalorder %v1208, 768
      %v1210 = vsel %vm1209, %v1207, 2147483648
      %1211 = vst [vmem:[%s1203] sm:$0xff] %v1210
      %s1212 = scalar_lea.vmem [#allocation14], 696
      %v1213 = vld [vmem:[%s1212] sm:$0xff]
      %vm1214 = vcmp.lt.s32.totalorder %v1213, 0
      %v1215 = vsub.s32 2147483647, %v1213
      %v1216 = vsel %vm1214, %v1215, %v1213
      %v1217 = vadd.s32 %v428, 696
      %vm1218 = vcmp.lt.s32.totalorder %v1217, 768
      %v1219 = vsel %vm1218, %v1216, 2147483648
      %1220 = vst [vmem:[%s1212] sm:$0xff] %v1219
      %s1221 = scalar_lea.vmem [#allocation14], 704
      %v1222 = vld [vmem:[%s1221] sm:$0xff]
      %vm1223 = vcmp.lt.s32.totalorder %v1222, 0
      %v1224 = vsub.s32 2147483647, %v1222
      %v1225 = vsel %vm1223, %v1224, %v1222
      %v1226 = vadd.s32 %v428, 704
      %vm1227 = vcmp.lt.s32.totalorder %v1226, 768
      %v1228 = vsel %vm1227, %v1225, 2147483648
      %1229 = vst [vmem:[%s1221] sm:$0xff] %v1228
      %s1230 = scalar_lea.vmem [#allocation14], 712
      %v1231 = vld [vmem:[%s1230] sm:$0xff]
      %vm1232 = vcmp.lt.s32.totalorder %v1231, 0
      %v1233 = vsub.s32 2147483647, %v1231
      %v1234 = vsel %vm1232, %v1233, %v1231
      %v1235 = vadd.s32 %v428, 712
      %vm1236 = vcmp.lt.s32.totalorder %v1235, 768
      %v1237 = vsel %vm1236, %v1234, 2147483648
      %1238 = vst [vmem:[%s1230] sm:$0xff] %v1237
      %s1239 = scalar_lea.vmem [#allocation14], 720
      %v1240 = vld [vmem:[%s1239] sm:$0xff]
      %vm1241 = vcmp.lt.s32.totalorder %v1240, 0
      %v1242 = vsub.s32 2147483647, %v1240
      %v1243 = vsel %vm1241, %v1242, %v1240
      %v1244 = vadd.s32 %v428, 720
      %vm1245 = vcmp.lt.s32.totalorder %v1244, 768
      %v1246 = vsel %vm1245, %v1243, 2147483648
      %1247 = vst [vmem:[%s1239] sm:$0xff] %v1246
      %s1248 = scalar_lea.vmem [#allocation14], 728
      %v1249 = vld [vmem:[%s1248] sm:$0xff]
      %vm1250 = vcmp.lt.s32.totalorder %v1249, 0
      %v1251 = vsub.s32 2147483647, %v1249
      %v1252 = vsel %vm1250, %v1251, %v1249
      %v1253 = vadd.s32 %v428, 728
      %vm1254 = vcmp.lt.s32.totalorder %v1253, 768
      %v1255 = vsel %vm1254, %v1252, 2147483648
      %1256 = vst [vmem:[%s1248] sm:$0xff] %v1255
      %s1257 = scalar_lea.vmem [#allocation14], 736
      %v1258 = vld [vmem:[%s1257] sm:$0xff]
      %vm1259 = vcmp.lt.s32.totalorder %v1258, 0
      %v1260 = vsub.s32 2147483647, %v1258
      %v1261 = vsel %vm1259, %v1260, %v1258
      %v1262 = vadd.s32 %v428, 736
      %vm1263 = vcmp.lt.s32.totalorder %v1262, 768
      %v1264 = vsel %vm1263, %v1261, 2147483648
      %1265 = vst [vmem:[%s1257] sm:$0xff] %v1264
      %s1266 = scalar_lea.vmem [#allocation14], 744
      %v1267 = vld [vmem:[%s1266] sm:$0xff]
      %vm1268 = vcmp.lt.s32.totalorder %v1267, 0
      %v1269 = vsub.s32 2147483647, %v1267
      %v1270 = vsel %vm1268, %v1269, %v1267
      %v1271 = vadd.s32 %v428, 744
      %vm1272 = vcmp.lt.s32.totalorder %v1271, 768
      %v1273 = vsel %vm1272, %v1270, 2147483648
      %1274 = vst [vmem:[%s1266] sm:$0xff] %v1273
      %s1275 = scalar_lea.vmem [#allocation14], 752
      %v1276 = vld [vmem:[%s1275] sm:$0xff]
      %vm1277 = vcmp.lt.s32.totalorder %v1276, 0
      %v1278 = vsub.s32 2147483647, %v1276
      %v1279 = vsel %vm1277, %v1278, %v1276
      %v1280 = vadd.s32 %v428, 752
      %vm1281 = vcmp.lt.s32.totalorder %v1280, 768
      %v1282 = vsel %vm1281, %v1279, 2147483648
      %1283 = vst [vmem:[%s1275] sm:$0xff] %v1282
      %s1284 = scalar_lea.vmem [#allocation14], 760
      %v1285 = vld [vmem:[%s1284] sm:$0xff]
      %vm1286 = vcmp.lt.s32.totalorder %v1285, 0
      %v1287 = vsub.s32 2147483647, %v1285
      %v1288 = vsel %vm1286, %v1287, %v1285
      %v1289 = vadd.s32 %v428, 760
      %vm1290 = vcmp.lt.s32.totalorder %v1289, 768
      %v1291 = vsel %vm1290, %v1288, 2147483648
      %1292 = vst [vmem:[%s1284] sm:$0xff] %v1291
      %v1293 = vlaneseq
      %v1294 = vshrl.u32 %v1293, 7
      %1297 = vst [vmem:[#allocation15] sm:$0xff] %v1294
      %v1298 = vadd.s32 %v1294, 8
      %s1299 = scalar_lea.vmem [#allocation15], 8
      %1300 = vst [vmem:[%s1299] sm:$0xff] %v1298
      %v1301 = vadd.s32 %v1294, 16
      %s1302 = scalar_lea.vmem [#allocation15], 16
      %1303 = vst [vmem:[%s1302] sm:$0xff] %v1301
      %v1304 = vadd.s32 %v1294, 24
      %s1305 = scalar_lea.vmem [#allocation15], 24
      %1306 = vst [vmem:[%s1305] sm:$0xff] %v1304
      %v1307 = vadd.s32 %v1294, 32
      %s1308 = scalar_lea.vmem [#allocation15], 32
      %1309 = vst [vmem:[%s1308] sm:$0xff] %v1307
      %v1310 = vadd.s32 %v1294, 40
      %s1311 = scalar_lea.vmem [#allocation15], 40
      %1312 = vst [vmem:[%s1311] sm:$0xff] %v1310
      %v1313 = vadd.s32 %v1294, 48
      %s1314 = scalar_lea.vmem [#allocation15], 48
      %1315 = vst [vmem:[%s1314] sm:$0xff] %v1313
      %v1316 = vadd.s32 %v1294, 56
      %s1317 = scalar_lea.vmem [#allocation15], 56
      %1318 = vst [vmem:[%s1317] sm:$0xff] %v1316
      %v1319 = vadd.s32 %v1294, 64
      %s1320 = scalar_lea.vmem [#allocation15], 64
      %1321 = vst [vmem:[%s1320] sm:$0xff] %v1319
      %v1322 = vadd.s32 %v1294, 72
      %s1323 = scalar_lea.vmem [#allocation15], 72
      %1324 = vst [vmem:[%s1323] sm:$0xff] %v1322
      %v1325 = vadd.s32 %v1294, 80
      %s1326 = scalar_lea.vmem [#allocation15], 80
      %1327 = vst [vmem:[%s1326] sm:$0xff] %v1325
      %v1328 = vadd.s32 %v1294, 88
      %s1329 = scalar_lea.vmem [#allocation15], 88
      %1330 = vst [vmem:[%s1329] sm:$0xff] %v1328
      %v1331 = vadd.s32 %v1294, 96
      %s1332 = scalar_lea.vmem [#allocation15], 96
      %1333 = vst [vmem:[%s1332] sm:$0xff] %v1331
      %v1334 = vadd.s32 %v1294, 104
      %s1335 = scalar_lea.vmem [#allocation15], 104
      %1336 = vst [vmem:[%s1335] sm:$0xff] %v1334
      %v1337 = vadd.s32 %v1294, 112
      %s1338 = scalar_lea.vmem [#allocation15], 112
      %1339 = vst [vmem:[%s1338] sm:$0xff] %v1337
      %v1340 = vadd.s32 %v1294, 120
      %s1341 = scalar_lea.vmem [#allocation15], 120
      %1342 = vst [vmem:[%s1341] sm:$0xff] %v1340
      %v1343 = vadd.s32 %v1294, 128
      %s1344 = scalar_lea.vmem [#allocation15], 128
      %1345 = vst [vmem:[%s1344] sm:$0xff] %v1343
      %v1346 = vadd.s32 %v1294, 136
      %s1347 = scalar_lea.vmem [#allocation15], 136
      %1348 = vst [vmem:[%s1347] sm:$0xff] %v1346
      %v1349 = vadd.s32 %v1294, 144
      %s1350 = scalar_lea.vmem [#allocation15], 144
      %1351 = vst [vmem:[%s1350] sm:$0xff] %v1349
      %v1352 = vadd.s32 %v1294, 152
      %s1353 = scalar_lea.vmem [#allocation15], 152
      %1354 = vst [vmem:[%s1353] sm:$0xff] %v1352
      %v1355 = vadd.s32 %v1294, 160
      %s1356 = scalar_lea.vmem [#allocation15], 160
      %1357 = vst [vmem:[%s1356] sm:$0xff] %v1355
      %v1358 = vadd.s32 %v1294, 168
      %s1359 = scalar_lea.vmem [#allocation15], 168
      %1360 = vst [vmem:[%s1359] sm:$0xff] %v1358
      %v1361 = vadd.s32 %v1294, 176
      %s1362 = scalar_lea.vmem [#allocation15], 176
      %1363 = vst [vmem:[%s1362] sm:$0xff] %v1361
      %v1364 = vadd.s32 %v1294, 184
      %s1365 = scalar_lea.vmem [#allocation15], 184
      %1366 = vst [vmem:[%s1365] sm:$0xff] %v1364
      %v1367 = vadd.s32 %v1294, 192
      %s1368 = scalar_lea.vmem [#allocation15], 192
      %1369 = vst [vmem:[%s1368] sm:$0xff] %v1367
      %v1370 = vadd.s32 %v1294, 200
      %s1371 = scalar_lea.vmem [#allocation15], 200
      %1372 = vst [vmem:[%s1371] sm:$0xff] %v1370
      %v1373 = vadd.s32 %v1294, 208
      %s1374 = scalar_lea.vmem [#allocation15], 208
      %1375 = vst [vmem:[%s1374] sm:$0xff] %v1373
      %v1376 = vadd.s32 %v1294, 216
      %s1377 = scalar_lea.vmem [#allocation15], 216
      %1378 = vst [vmem:[%s1377] sm:$0xff] %v1376
      %v1379 = vadd.s32 %v1294, 224
      %s1380 = scalar_lea.vmem [#allocation15], 224
      %1381 = vst [vmem:[%s1380] sm:$0xff] %v1379
      %v1382 = vadd.s32 %v1294, 232
      %s1383 = scalar_lea.vmem [#allocation15], 232
      %1384 = vst [vmem:[%s1383] sm:$0xff] %v1382
      %v1385 = vadd.s32 %v1294, 240
      %s1386 = scalar_lea.vmem [#allocation15], 240
      %1387 = vst [vmem:[%s1386] sm:$0xff] %v1385
      %v1388 = vadd.s32 %v1294, 248
      %s1389 = scalar_lea.vmem [#allocation15], 248
      %1390 = vst [vmem:[%s1389] sm:$0xff] %v1388
      %v1391 = vadd.s32 %v1294, 256
      %s1392 = scalar_lea.vmem [#allocation15], 256
      %1393 = vst [vmem:[%s1392] sm:$0xff] %v1391
      %v1394 = vadd.s32 %v1294, 264
      %s1395 = scalar_lea.vmem [#allocation15], 264
      %1396 = vst [vmem:[%s1395] sm:$0xff] %v1394
      %v1397 = vadd.s32 %v1294, 272
      %s1398 = scalar_lea.vmem [#allocation15], 272
      %1399 = vst [vmem:[%s1398] sm:$0xff] %v1397
      %v1400 = vadd.s32 %v1294, 280
      %s1401 = scalar_lea.vmem [#allocation15], 280
      %1402 = vst [vmem:[%s1401] sm:$0xff] %v1400
      %v1403 = vadd.s32 %v1294, 288
      %s1404 = scalar_lea.vmem [#allocation15], 288
      %1405 = vst [vmem:[%s1404] sm:$0xff] %v1403
      %v1406 = vadd.s32 %v1294, 296
      %s1407 = scalar_lea.vmem [#allocation15], 296
      %1408 = vst [vmem:[%s1407] sm:$0xff] %v1406
      %v1409 = vadd.s32 %v1294, 304
      %s1410 = scalar_lea.vmem [#allocation15], 304
      %1411 = vst [vmem:[%s1410] sm:$0xff] %v1409
      %v1412 = vadd.s32 %v1294, 312
      %s1413 = scalar_lea.vmem [#allocation15], 312
      %1414 = vst [vmem:[%s1413] sm:$0xff] %v1412
      %v1415 = vadd.s32 %v1294, 320
      %s1416 = scalar_lea.vmem [#allocation15], 320
      %1417 = vst [vmem:[%s1416] sm:$0xff] %v1415
      %v1418 = vadd.s32 %v1294, 328
      %s1419 = scalar_lea.vmem [#allocation15], 328
      %1420 = vst [vmem:[%s1419] sm:$0xff] %v1418
      %v1421 = vadd.s32 %v1294, 336
      %s1422 = scalar_lea.vmem [#allocation15], 336
      %1423 = vst [vmem:[%s1422] sm:$0xff] %v1421
      %v1424 = vadd.s32 %v1294, 344
      %s1425 = scalar_lea.vmem [#allocation15], 344
      %1426 = vst [vmem:[%s1425] sm:$0xff] %v1424
      %v1427 = vadd.s32 %v1294, 352
      %s1428 = scalar_lea.vmem [#allocation15], 352
      %1429 = vst [vmem:[%s1428] sm:$0xff] %v1427
      %v1430 = vadd.s32 %v1294, 360
      %s1431 = scalar_lea.vmem [#allocation15], 360
      %1432 = vst [vmem:[%s1431] sm:$0xff] %v1430
      %v1433 = vadd.s32 %v1294, 368
      %s1434 = scalar_lea.vmem [#allocation15], 368
      %1435 = vst [vmem:[%s1434] sm:$0xff] %v1433
      %v1436 = vadd.s32 %v1294, 376
      %s1437 = scalar_lea.vmem [#allocation15], 376
      %1438 = vst [vmem:[%s1437] sm:$0xff] %v1436
      %v1439 = vadd.s32 %v1294, 384
      %s1440 = scalar_lea.vmem [#allocation15], 384
      %1441 = vst [vmem:[%s1440] sm:$0xff] %v1439
      %v1442 = vadd.s32 %v1294, 392
      %s1443 = scalar_lea.vmem [#allocation15], 392
      %1444 = vst [vmem:[%s1443] sm:$0xff] %v1442
      %v1445 = vadd.s32 %v1294, 400
      %s1446 = scalar_lea.vmem [#allocation15], 400
      %1447 = vst [vmem:[%s1446] sm:$0xff] %v1445
      %v1448 = vadd.s32 %v1294, 408
      %s1449 = scalar_lea.vmem [#allocation15], 408
      %1450 = vst [vmem:[%s1449] sm:$0xff] %v1448
      %v1451 = vadd.s32 %v1294, 416
      %s1452 = scalar_lea.vmem [#allocation15], 416
      %1453 = vst [vmem:[%s1452] sm:$0xff] %v1451
      %v1454 = vadd.s32 %v1294, 424
      %s1455 = scalar_lea.vmem [#allocation15], 424
      %1456 = vst [vmem:[%s1455] sm:$0xff] %v1454
      %v1457 = vadd.s32 %v1294, 432
      %s1458 = scalar_lea.vmem [#allocation15], 432
      %1459 = vst [vmem:[%s1458] sm:$0xff] %v1457
      %v1460 = vadd.s32 %v1294, 440
      %s1461 = scalar_lea.vmem [#allocation15], 440
      %1462 = vst [vmem:[%s1461] sm:$0xff] %v1460
      %v1463 = vadd.s32 %v1294, 448
      %s1464 = scalar_lea.vmem [#allocation15], 448
      %1465 = vst [vmem:[%s1464] sm:$0xff] %v1463
      %v1466 = vadd.s32 %v1294, 456
      %s1467 = scalar_lea.vmem [#allocation15], 456
      %1468 = vst [vmem:[%s1467] sm:$0xff] %v1466
      %v1469 = vadd.s32 %v1294, 464
      %s1470 = scalar_lea.vmem [#allocation15], 464
      %1471 = vst [vmem:[%s1470] sm:$0xff] %v1469
      %v1472 = vadd.s32 %v1294, 472
      %s1473 = scalar_lea.vmem [#allocation15], 472
      %1474 = vst [vmem:[%s1473] sm:$0xff] %v1472
      %v1475 = vadd.s32 %v1294, 480
      %s1476 = scalar_lea.vmem [#allocation15], 480
      %1477 = vst [vmem:[%s1476] sm:$0xff] %v1475
      %v1478 = vadd.s32 %v1294, 488
      %s1479 = scalar_lea.vmem [#allocation15], 488
      %1480 = vst [vmem:[%s1479] sm:$0xff] %v1478
      %v1481 = vadd.s32 %v1294, 496
      %s1482 = scalar_lea.vmem [#allocation15], 496
      %1483 = vst [vmem:[%s1482] sm:$0xff] %v1481
      %v1484 = vadd.s32 %v1294, 504
      %s1485 = scalar_lea.vmem [#allocation15], 504
      %1486 = vst [vmem:[%s1485] sm:$0xff] %v1484
      %v1487 = vadd.s32 %v1294, 512
      %s1488 = scalar_lea.vmem [#allocation15], 512
      %1489 = vst [vmem:[%s1488] sm:$0xff] %v1487
      %v1490 = vadd.s32 %v1294, 520
      %s1491 = scalar_lea.vmem [#allocation15], 520
      %1492 = vst [vmem:[%s1491] sm:$0xff] %v1490
      %v1493 = vadd.s32 %v1294, 528
      %s1494 = scalar_lea.vmem [#allocation15], 528
      %1495 = vst [vmem:[%s1494] sm:$0xff] %v1493
      %v1496 = vadd.s32 %v1294, 536
      %s1497 = scalar_lea.vmem [#allocation15], 536
      %1498 = vst [vmem:[%s1497] sm:$0xff] %v1496
      %v1499 = vadd.s32 %v1294, 544
      %s1500 = scalar_lea.vmem [#allocation15], 544
      %1501 = vst [vmem:[%s1500] sm:$0xff] %v1499
      %v1502 = vadd.s32 %v1294, 552
      %s1503 = scalar_lea.vmem [#allocation15], 552
      %1504 = vst [vmem:[%s1503] sm:$0xff] %v1502
      %v1505 = vadd.s32 %v1294, 560
      %s1506 = scalar_lea.vmem [#allocation15], 560
      %1507 = vst [vmem:[%s1506] sm:$0xff] %v1505
      %v1508 = vadd.s32 %v1294, 568
      %s1509 = scalar_lea.vmem [#allocation15], 568
      %1510 = vst [vmem:[%s1509] sm:$0xff] %v1508
      %v1511 = vadd.s32 %v1294, 576
      %s1512 = scalar_lea.vmem [#allocation15], 576
      %1513 = vst [vmem:[%s1512] sm:$0xff] %v1511
      %v1514 = vadd.s32 %v1294, 584
      %s1515 = scalar_lea.vmem [#allocation15], 584
      %1516 = vst [vmem:[%s1515] sm:$0xff] %v1514
      %v1517 = vadd.s32 %v1294, 592
      %s1518 = scalar_lea.vmem [#allocation15], 592
      %1519 = vst [vmem:[%s1518] sm:$0xff] %v1517
      %v1520 = vadd.s32 %v1294, 600
      %s1521 = scalar_lea.vmem [#allocation15], 600
      %1522 = vst [vmem:[%s1521] sm:$0xff] %v1520
      %v1523 = vadd.s32 %v1294, 608
      %s1524 = scalar_lea.vmem [#allocation15], 608
      %1525 = vst [vmem:[%s1524] sm:$0xff] %v1523
      %v1526 = vadd.s32 %v1294, 616
      %s1527 = scalar_lea.vmem [#allocation15], 616
      %1528 = vst [vmem:[%s1527] sm:$0xff] %v1526
      %v1529 = vadd.s32 %v1294, 624
      %s1530 = scalar_lea.vmem [#allocation15], 624
      %1531 = vst [vmem:[%s1530] sm:$0xff] %v1529
      %v1532 = vadd.s32 %v1294, 632
      %s1533 = scalar_lea.vmem [#allocation15], 632
      %1534 = vst [vmem:[%s1533] sm:$0xff] %v1532
      %v1535 = vadd.s32 %v1294, 640
      %s1536 = scalar_lea.vmem [#allocation15], 640
      %1537 = vst [vmem:[%s1536] sm:$0xff] %v1535
      %v1538 = vadd.s32 %v1294, 648
      %s1539 = scalar_lea.vmem [#allocation15], 648
      %1540 = vst [vmem:[%s1539] sm:$0xff] %v1538
      %v1541 = vadd.s32 %v1294, 656
      %s1542 = scalar_lea.vmem [#allocation15], 656
      %1543 = vst [vmem:[%s1542] sm:$0xff] %v1541
      %v1544 = vadd.s32 %v1294, 664
      %s1545 = scalar_lea.vmem [#allocation15], 664
      %1546 = vst [vmem:[%s1545] sm:$0xff] %v1544
      %v1547 = vadd.s32 %v1294, 672
      %s1548 = scalar_lea.vmem [#allocation15], 672
      %1549 = vst [vmem:[%s1548] sm:$0xff] %v1547
      %v1550 = vadd.s32 %v1294, 680
      %s1551 = scalar_lea.vmem [#allocation15], 680
      %1552 = vst [vmem:[%s1551] sm:$0xff] %v1550
      %v1553 = vadd.s32 %v1294, 688
      %s1554 = scalar_lea.vmem [#allocation15], 688
      %1555 = vst [vmem:[%s1554] sm:$0xff] %v1553
      %v1556 = vadd.s32 %v1294, 696
      %s1557 = scalar_lea.vmem [#allocation15], 696
      %1558 = vst [vmem:[%s1557] sm:$0xff] %v1556
      %v1559 = vadd.s32 %v1294, 704
      %s1560 = scalar_lea.vmem [#allocation15], 704
      %1561 = vst [vmem:[%s1560] sm:$0xff] %v1559
      %v1562 = vadd.s32 %v1294, 712
      %s1563 = scalar_lea.vmem [#allocation15], 712
      %1564 = vst [vmem:[%s1563] sm:$0xff] %v1562
      %v1565 = vadd.s32 %v1294, 720
      %s1566 = scalar_lea.vmem [#allocation15], 720
      %1567 = vst [vmem:[%s1566] sm:$0xff] %v1565
      %v1568 = vadd.s32 %v1294, 728
      %s1569 = scalar_lea.vmem [#allocation15], 728
      %1570 = vst [vmem:[%s1569] sm:$0xff] %v1568
      %v1571 = vadd.s32 %v1294, 736
      %s1572 = scalar_lea.vmem [#allocation15], 736
      %1573 = vst [vmem:[%s1572] sm:$0xff] %v1571
      %v1574 = vadd.s32 %v1294, 744
      %s1575 = scalar_lea.vmem [#allocation15], 744
      %1576 = vst [vmem:[%s1575] sm:$0xff] %v1574
      %v1577 = vadd.s32 %v1294, 752
      %s1578 = scalar_lea.vmem [#allocation15], 752
      %1579 = vst [vmem:[%s1578] sm:$0xff] %v1577
      %v1580 = vadd.s32 %v1294, 760
      %s1581 = scalar_lea.vmem [#allocation15], 760
      %1582 = vst [vmem:[%s1581] sm:$0xff] %v1580
      %1583 = xla_tuple [#allocation14], [#allocation15]
      %1584 = vst [vmem:[#allocation11] sm:$0xff] 2147483648
      %1585 = vst [vmem:[#allocation13] sm:$0xff] 2147483647
      %1586 = xla_tuple [#allocation11], [#allocation13]
      loop: start=0, step=1, limit=8
      $region45: #{custom-call} parent=2 // loop_pre_header
        _
      $region46: #{custom-call} parent=2 // loop_header
        %s1588 = sphi 0, %s1592
        %p1589 = scmp.ge.s32.totalorder %s1588, 8
      $region47: #{custom-call} parent=2 // loop_header_branch
        %1591 = sbr.rel (%p1589) target = $region51
      $region48: #{custom-call} parent=2 // loop_body
        %v1593 = vld [vmem:[#allocation14] sm:$0xff]
        %v1594 = vld [vmem:[#allocation15] sm:$0xff]
        %1595 = xla_tuple %v1593, %v1594
        %s1596 = scalar_lea.vmem [#allocation14], 8
        %v1597 = vld [vmem:[%s1596] sm:$0xff]
        %s1598 = scalar_lea.vmem [#allocation15], 8
        %v1599 = vld [vmem:[%s1598] sm:$0xff]
        %1600 = xla_tuple %v1597, %v1599
        %vm1601 = vcmp.gt.s32.totalorder %v1597, %v1593
        %vm1602 = vcmp.eq.s32.totalorder %v1597, %v1593
        %vm1603 = vcmp.lt.s32.totalorder %v1599, %v1594
        %vm1604 = vmand %vm1602, %vm1603
        %vm1605 = vmor %vm1601, %vm1604
        %v1606 = vsel %vm1605, %v1597, %v1593
        %v1607 = vsel %vm1605, %v1599, %v1594
        %1608 = xla_tuple %v1606, %v1607
        %s1609 = scalar_lea.vmem [#allocation14], 16
        %v1610 = vld [vmem:[%s1609] sm:$0xff]
        %s1611 = scalar_lea.vmem [#allocation15], 16
        %v1612 = vld [vmem:[%s1611] sm:$0xff]
        %1613 = xla_tuple %v1610, %v1612
        %vm1614 = vcmp.gt.s32.totalorder %v1610, %v1606
        %vm1615 = vcmp.eq.s32.totalorder %v1610, %v1606
        %vm1616 = vcmp.lt.s32.totalorder %v1612, %v1607
        %vm1617 = vmand %vm1615, %vm1616
        %vm1618 = vmor %vm1614, %vm1617
        %v1619 = vsel %vm1618, %v1610, %v1606
        %v1620 = vsel %vm1618, %v1612, %v1607
        %1621 = xla_tuple %v1619, %v1620
        %s1622 = scalar_lea.vmem [#allocation14], 24
        %v1623 = vld [vmem:[%s1622] sm:$0xff]
        %s1624 = scalar_lea.vmem [#allocation15], 24
        %v1625 = vld [vmem:[%s1624] sm:$0xff]
        %1626 = xla_tuple %v1623, %v1625
        %vm1627 = vcmp.gt.s32.totalorder %v1623, %v1619
        %vm1628 = vcmp.eq.s32.totalorder %v1623, %v1619
        %vm1629 = vcmp.lt.s32.totalorder %v1625, %v1620
        %vm1630 = vmand %vm1628, %vm1629
        %vm1631 = vmor %vm1627, %vm1630
        %v1632 = vsel %vm1631, %v1623, %v1619
        %v1633 = vsel %vm1631, %v1625, %v1620
        %1634 = xla_tuple %v1632, %v1633
        %s1635 = scalar_lea.vmem [#allocation14], 32
        %v1636 = vld [vmem:[%s1635] sm:$0xff]
        %s1637 = scalar_lea.vmem [#allocation15], 32
        %v1638 = vld [vmem:[%s1637] sm:$0xff]
        %1639 = xla_tuple %v1636, %v1638
        %vm1640 = vcmp.gt.s32.totalorder %v1636, %v1632
        %vm1641 = vcmp.eq.s32.totalorder %v1636, %v1632
        %vm1642 = vcmp.lt.s32.totalorder %v1638, %v1633
        %vm1643 = vmand %vm1641, %vm1642
        %vm1644 = vmor %vm1640, %vm1643
        %v1645 = vsel %vm1644, %v1636, %v1632
        %v1646 = vsel %vm1644, %v1638, %v1633
        %1647 = xla_tuple %v1645, %v1646
        %s1648 = scalar_lea.vmem [#allocation14], 40
        %v1649 = vld [vmem:[%s1648] sm:$0xff]
        %s1650 = scalar_lea.vmem [#allocation15], 40
        %v1651 = vld [vmem:[%s1650] sm:$0xff]
        %1652 = xla_tuple %v1649, %v1651
        %vm1653 = vcmp.gt.s32.totalorder %v1649, %v1645
        %vm1654 = vcmp.eq.s32.totalorder %v1649, %v1645
        %vm1655 = vcmp.lt.s32.totalorder %v1651, %v1646
        %vm1656 = vmand %vm1654, %vm1655
        %vm1657 = vmor %vm1653, %vm1656
        %v1658 = vsel %vm1657, %v1649, %v1645
        %v1659 = vsel %vm1657, %v1651, %v1646
        %1660 = xla_tuple %v1658, %v1659
        %s1661 = scalar_lea.vmem [#allocation14], 48
        %v1662 = vld [vmem:[%s1661] sm:$0xff]
        %s1663 = scalar_lea.vmem [#allocation15], 48
        %v1664 = vld [vmem:[%s1663] sm:$0xff]
        %1665 = xla_tuple %v1662, %v1664
        %vm1666 = vcmp.gt.s32.totalorder %v1662, %v1658
        %vm1667 = vcmp.eq.s32.totalorder %v1662, %v1658
        %vm1668 = vcmp.lt.s32.totalorder %v1664, %v1659
        %vm1669 = vmand %vm1667, %vm1668
        %vm1670 = vmor %vm1666, %vm1669
        %v1671 = vsel %vm1670, %v1662, %v1658
        %v1672 = vsel %vm1670, %v1664, %v1659
        %1673 = xla_tuple %v1671, %v1672
        %s1674 = scalar_lea.vmem [#allocation14], 56
        %v1675 = vld [vmem:[%s1674] sm:$0xff]
        %s1676 = scalar_lea.vmem [#allocation15], 56
        %v1677 = vld [vmem:[%s1676] sm:$0xff]
        %1678 = xla_tuple %v1675, %v1677
        %vm1679 = vcmp.gt.s32.totalorder %v1675, %v1671
        %vm1680 = vcmp.eq.s32.totalorder %v1675, %v1671
        %vm1681 = vcmp.lt.s32.totalorder %v1677, %v1672
        %vm1682 = vmand %vm1680, %vm1681
        %vm1683 = vmor %vm1679, %vm1682
        %v1684 = vsel %vm1683, %v1675, %v1671
        %v1685 = vsel %vm1683, %v1677, %v1672
        %1686 = xla_tuple %v1684, %v1685
        %s1687 = scalar_lea.vmem [#allocation14], 64
        %v1688 = vld [vmem:[%s1687] sm:$0xff]
        %s1689 = scalar_lea.vmem [#allocation15], 64
        %v1690 = vld [vmem:[%s1689] sm:$0xff]
        %1691 = xla_tuple %v1688, %v1690
        %vm1692 = vcmp.gt.s32.totalorder %v1688, %v1684
        %vm1693 = vcmp.eq.s32.totalorder %v1688, %v1684
        %vm1694 = vcmp.lt.s32.totalorder %v1690, %v1685
        %vm1695 = vmand %vm1693, %vm1694
        %vm1696 = vmor %vm1692, %vm1695
        %v1697 = vsel %vm1696, %v1688, %v1684
        %v1698 = vsel %vm1696, %v1690, %v1685
        %1699 = xla_tuple %v1697, %v1698
        %s1700 = scalar_lea.vmem [#allocation14], 72
        %v1701 = vld [vmem:[%s1700] sm:$0xff]
        %s1702 = scalar_lea.vmem [#allocation15], 72
        %v1703 = vld [vmem:[%s1702] sm:$0xff]
        %1704 = xla_tuple %v1701, %v1703
        %vm1705 = vcmp.gt.s32.totalorder %v1701, %v1697
        %vm1706 = vcmp.eq.s32.totalorder %v1701, %v1697
        %vm1707 = vcmp.lt.s32.totalorder %v1703, %v1698
        %vm1708 = vmand %vm1706, %vm1707
        %vm1709 = vmor %vm1705, %vm1708
        %v1710 = vsel %vm1709, %v1701, %v1697
        %v1711 = vsel %vm1709, %v1703, %v1698
        %1712 = xla_tuple %v1710, %v1711
        %s1713 = scalar_lea.vmem [#allocation14], 80
        %v1714 = vld [vmem:[%s1713] sm:$0xff]
        %s1715 = scalar_lea.vmem [#allocation15], 80
        %v1716 = vld [vmem:[%s1715] sm:$0xff]
        %1717 = xla_tuple %v1714, %v1716
        %vm1718 = vcmp.gt.s32.totalorder %v1714, %v1710
        %vm1719 = vcmp.eq.s32.totalorder %v1714, %v1710
        %vm1720 = vcmp.lt.s32.totalorder %v1716, %v1711
        %vm1721 = vmand %vm1719, %vm1720
        %vm1722 = vmor %vm1718, %vm1721
        %v1723 = vsel %vm1722, %v1714, %v1710
        %v1724 = vsel %vm1722, %v1716, %v1711
        %1725 = xla_tuple %v1723, %v1724
        %s1726 = scalar_lea.vmem [#allocation14], 88
        %v1727 = vld [vmem:[%s1726] sm:$0xff]
        %s1728 = scalar_lea.vmem [#allocation15], 88
        %v1729 = vld [vmem:[%s1728] sm:$0xff]
        %1730 = xla_tuple %v1727, %v1729
        %vm1731 = vcmp.gt.s32.totalorder %v1727, %v1723
        %vm1732 = vcmp.eq.s32.totalorder %v1727, %v1723
        %vm1733 = vcmp.lt.s32.totalorder %v1729, %v1724
        %vm1734 = vmand %vm1732, %vm1733
        %vm1735 = vmor %vm1731, %vm1734
        %v1736 = vsel %vm1735, %v1727, %v1723
        %v1737 = vsel %vm1735, %v1729, %v1724
        %1738 = xla_tuple %v1736, %v1737
        %s1739 = scalar_lea.vmem [#allocation14], 96
        %v1740 = vld [vmem:[%s1739] sm:$0xff]
        %s1741 = scalar_lea.vmem [#allocation15], 96
        %v1742 = vld [vmem:[%s1741] sm:$0xff]
        %1743 = xla_tuple %v1740, %v1742
        %vm1744 = vcmp.gt.s32.totalorder %v1740, %v1736
        %vm1745 = vcmp.eq.s32.totalorder %v1740, %v1736
        %vm1746 = vcmp.lt.s32.totalorder %v1742, %v1737
        %vm1747 = vmand %vm1745, %vm1746
        %vm1748 = vmor %vm1744, %vm1747
        %v1749 = vsel %vm1748, %v1740, %v1736
        %v1750 = vsel %vm1748, %v1742, %v1737
        %1751 = xla_tuple %v1749, %v1750
        %s1752 = scalar_lea.vmem [#allocation14], 104
        %v1753 = vld [vmem:[%s1752] sm:$0xff]
        %s1754 = scalar_lea.vmem [#allocation15], 104
        %v1755 = vld [vmem:[%s1754] sm:$0xff]
        %1756 = xla_tuple %v1753, %v1755
        %vm1757 = vcmp.gt.s32.totalorder %v1753, %v1749
        %vm1758 = vcmp.eq.s32.totalorder %v1753, %v1749
        %vm1759 = vcmp.lt.s32.totalorder %v1755, %v1750
        %vm1760 = vmand %vm1758, %vm1759
        %vm1761 = vmor %vm1757, %vm1760
        %v1762 = vsel %vm1761, %v1753, %v1749
        %v1763 = vsel %vm1761, %v1755, %v1750
        %1764 = xla_tuple %v1762, %v1763
        %s1765 = scalar_lea.vmem [#allocation14], 112
        %v1766 = vld [vmem:[%s1765] sm:$0xff]
        %s1767 = scalar_lea.vmem [#allocation15], 112
        %v1768 = vld [vmem:[%s1767] sm:$0xff]
        %1769 = xla_tuple %v1766, %v1768
        %vm1770 = vcmp.gt.s32.totalorder %v1766, %v1762
        %vm1771 = vcmp.eq.s32.totalorder %v1766, %v1762
        %vm1772 = vcmp.lt.s32.totalorder %v1768, %v1763
        %vm1773 = vmand %vm1771, %vm1772
        %vm1774 = vmor %vm1770, %vm1773
        %v1775 = vsel %vm1774, %v1766, %v1762
        %v1776 = vsel %vm1774, %v1768, %v1763
        %1777 = xla_tuple %v1775, %v1776
        %s1778 = scalar_lea.vmem [#allocation14], 120
        %v1779 = vld [vmem:[%s1778] sm:$0xff]
        %s1780 = scalar_lea.vmem [#allocation15], 120
        %v1781 = vld [vmem:[%s1780] sm:$0xff]
        %1782 = xla_tuple %v1779, %v1781
        %vm1783 = vcmp.gt.s32.totalorder %v1779, %v1775
        %vm1784 = vcmp.eq.s32.totalorder %v1779, %v1775
        %vm1785 = vcmp.lt.s32.totalorder %v1781, %v1776
        %vm1786 = vmand %vm1784, %vm1785
        %vm1787 = vmor %vm1783, %vm1786
        %v1788 = vsel %vm1787, %v1779, %v1775
        %v1789 = vsel %vm1787, %v1781, %v1776
        %1790 = xla_tuple %v1788, %v1789
        %s1791 = scalar_lea.vmem [#allocation14], 128
        %v1792 = vld [vmem:[%s1791] sm:$0xff]
        %s1793 = scalar_lea.vmem [#allocation15], 128
        %v1794 = vld [vmem:[%s1793] sm:$0xff]
        %1795 = xla_tuple %v1792, %v1794
        %vm1796 = vcmp.gt.s32.totalorder %v1792, %v1788
        %vm1797 = vcmp.eq.s32.totalorder %v1792, %v1788
        %vm1798 = vcmp.lt.s32.totalorder %v1794, %v1789
        %vm1799 = vmand %vm1797, %vm1798
        %vm1800 = vmor %vm1796, %vm1799
        %v1801 = vsel %vm1800, %v1792, %v1788
        %v1802 = vsel %vm1800, %v1794, %v1789
        %1803 = xla_tuple %v1801, %v1802
        %s1804 = scalar_lea.vmem [#allocation14], 136
        %v1805 = vld [vmem:[%s1804] sm:$0xff]
        %s1806 = scalar_lea.vmem [#allocation15], 136
        %v1807 = vld [vmem:[%s1806] sm:$0xff]
        %1808 = xla_tuple %v1805, %v1807
        %vm1809 = vcmp.gt.s32.totalorder %v1805, %v1801
        %vm1810 = vcmp.eq.s32.totalorder %v1805, %v1801
        %vm1811 = vcmp.lt.s32.totalorder %v1807, %v1802
        %vm1812 = vmand %vm1810, %vm1811
        %vm1813 = vmor %vm1809, %vm1812
        %v1814 = vsel %vm1813, %v1805, %v1801
        %v1815 = vsel %vm1813, %v1807, %v1802
        %1816 = xla_tuple %v1814, %v1815
        %s1817 = scalar_lea.vmem [#allocation14], 144
        %v1818 = vld [vmem:[%s1817] sm:$0xff]
        %s1819 = scalar_lea.vmem [#allocation15], 144
        %v1820 = vld [vmem:[%s1819] sm:$0xff]
        %1821 = xla_tuple %v1818, %v1820
        %vm1822 = vcmp.gt.s32.totalorder %v1818, %v1814
        %vm1823 = vcmp.eq.s32.totalorder %v1818, %v1814
        %vm1824 = vcmp.lt.s32.totalorder %v1820, %v1815
        %vm1825 = vmand %vm1823, %vm1824
        %vm1826 = vmor %vm1822, %vm1825
        %v1827 = vsel %vm1826, %v1818, %v1814
        %v1828 = vsel %vm1826, %v1820, %v1815
        %1829 = xla_tuple %v1827, %v1828
        %s1830 = scalar_lea.vmem [#allocation14], 152
        %v1831 = vld [vmem:[%s1830] sm:$0xff]
        %s1832 = scalar_lea.vmem [#allocation15], 152
        %v1833 = vld [vmem:[%s1832] sm:$0xff]
        %1834 = xla_tuple %v1831, %v1833
        %vm1835 = vcmp.gt.s32.totalorder %v1831, %v1827
        %vm1836 = vcmp.eq.s32.totalorder %v1831, %v1827
        %vm1837 = vcmp.lt.s32.totalorder %v1833, %v1828
        %vm1838 = vmand %vm1836, %vm1837
        %vm1839 = vmor %vm1835, %vm1838
        %v1840 = vsel %vm1839, %v1831, %v1827
        %v1841 = vsel %vm1839, %v1833, %v1828
        %1842 = xla_tuple %v1840, %v1841
        %s1843 = scalar_lea.vmem [#allocation14], 160
        %v1844 = vld [vmem:[%s1843] sm:$0xff]
        %s1845 = scalar_lea.vmem [#allocation15], 160
        %v1846 = vld [vmem:[%s1845] sm:$0xff]
        %1847 = xla_tuple %v1844, %v1846
        %vm1848 = vcmp.gt.s32.totalorder %v1844, %v1840
        %vm1849 = vcmp.eq.s32.totalorder %v1844, %v1840
        %vm1850 = vcmp.lt.s32.totalorder %v1846, %v1841
        %vm1851 = vmand %vm1849, %vm1850
        %vm1852 = vmor %vm1848, %vm1851
        %v1853 = vsel %vm1852, %v1844, %v1840
        %v1854 = vsel %vm1852, %v1846, %v1841
        %1855 = xla_tuple %v1853, %v1854
        %s1856 = scalar_lea.vmem [#allocation14], 168
        %v1857 = vld [vmem:[%s1856] sm:$0xff]
        %s1858 = scalar_lea.vmem [#allocation15], 168
        %v1859 = vld [vmem:[%s1858] sm:$0xff]
        %1860 = xla_tuple %v1857, %v1859
        %vm1861 = vcmp.gt.s32.totalorder %v1857, %v1853
        %vm1862 = vcmp.eq.s32.totalorder %v1857, %v1853
        %vm1863 = vcmp.lt.s32.totalorder %v1859, %v1854
        %vm1864 = vmand %vm1862, %vm1863
        %vm1865 = vmor %vm1861, %vm1864
        %v1866 = vsel %vm1865, %v1857, %v1853
        %v1867 = vsel %vm1865, %v1859, %v1854
        %1868 = xla_tuple %v1866, %v1867
        %s1869 = scalar_lea.vmem [#allocation14], 176
        %v1870 = vld [vmem:[%s1869] sm:$0xff]
        %s1871 = scalar_lea.vmem [#allocation15], 176
        %v1872 = vld [vmem:[%s1871] sm:$0xff]
        %1873 = xla_tuple %v1870, %v1872
        %vm1874 = vcmp.gt.s32.totalorder %v1870, %v1866
        %vm1875 = vcmp.eq.s32.totalorder %v1870, %v1866
        %vm1876 = vcmp.lt.s32.totalorder %v1872, %v1867
        %vm1877 = vmand %vm1875, %vm1876
        %vm1878 = vmor %vm1874, %vm1877
        %v1879 = vsel %vm1878, %v1870, %v1866
        %v1880 = vsel %vm1878, %v1872, %v1867
        %1881 = xla_tuple %v1879, %v1880
        %s1882 = scalar_lea.vmem [#allocation14], 184
        %v1883 = vld [vmem:[%s1882] sm:$0xff]
        %s1884 = scalar_lea.vmem [#allocation15], 184
        %v1885 = vld [vmem:[%s1884] sm:$0xff]
        %1886 = xla_tuple %v1883, %v1885
        %vm1887 = vcmp.gt.s32.totalorder %v1883, %v1879
        %vm1888 = vcmp.eq.s32.totalorder %v1883, %v1879
        %vm1889 = vcmp.lt.s32.totalorder %v1885, %v1880
        %vm1890 = vmand %vm1888, %vm1889
        %vm1891 = vmor %vm1887, %vm1890
        %v1892 = vsel %vm1891, %v1883, %v1879
        %v1893 = vsel %vm1891, %v1885, %v1880
        %1894 = xla_tuple %v1892, %v1893
        %s1895 = scalar_lea.vmem [#allocation14], 192
        %v1896 = vld [vmem:[%s1895] sm:$0xff]
        %s1897 = scalar_lea.vmem [#allocation15], 192
        %v1898 = vld [vmem:[%s1897] sm:$0xff]
        %1899 = xla_tuple %v1896, %v1898
        %vm1900 = vcmp.gt.s32.totalorder %v1896, %v1892
        %vm1901 = vcmp.eq.s32.totalorder %v1896, %v1892
        %vm1902 = vcmp.lt.s32.totalorder %v1898, %v1893
        %vm1903 = vmand %vm1901, %vm1902
        %vm1904 = vmor %vm1900, %vm1903
        %v1905 = vsel %vm1904, %v1896, %v1892
        %v1906 = vsel %vm1904, %v1898, %v1893
        %1907 = xla_tuple %v1905, %v1906
        %s1908 = scalar_lea.vmem [#allocation14], 200
        %v1909 = vld [vmem:[%s1908] sm:$0xff]
        %s1910 = scalar_lea.vmem [#allocation15], 200
        %v1911 = vld [vmem:[%s1910] sm:$0xff]
        %1912 = xla_tuple %v1909, %v1911
        %vm1913 = vcmp.gt.s32.totalorder %v1909, %v1905
        %vm1914 = vcmp.eq.s32.totalorder %v1909, %v1905
        %vm1915 = vcmp.lt.s32.totalorder %v1911, %v1906
        %vm1916 = vmand %vm1914, %vm1915
        %vm1917 = vmor %vm1913, %vm1916
        %v1918 = vsel %vm1917, %v1909, %v1905
        %v1919 = vsel %vm1917, %v1911, %v1906
        %1920 = xla_tuple %v1918, %v1919
        %s1921 = scalar_lea.vmem [#allocation14], 208
        %v1922 = vld [vmem:[%s1921] sm:$0xff]
        %s1923 = scalar_lea.vmem [#allocation15], 208
        %v1924 = vld [vmem:[%s1923] sm:$0xff]
        %1925 = xla_tuple %v1922, %v1924
        %vm1926 = vcmp.gt.s32.totalorder %v1922, %v1918
        %vm1927 = vcmp.eq.s32.totalorder %v1922, %v1918
        %vm1928 = vcmp.lt.s32.totalorder %v1924, %v1919
        %vm1929 = vmand %vm1927, %vm1928
        %vm1930 = vmor %vm1926, %vm1929
        %v1931 = vsel %vm1930, %v1922, %v1918
        %v1932 = vsel %vm1930, %v1924, %v1919
        %1933 = xla_tuple %v1931, %v1932
        %s1934 = scalar_lea.vmem [#allocation14], 216
        %v1935 = vld [vmem:[%s1934] sm:$0xff]
        %s1936 = scalar_lea.vmem [#allocation15], 216
        %v1937 = vld [vmem:[%s1936] sm:$0xff]
        %1938 = xla_tuple %v1935, %v1937
        %vm1939 = vcmp.gt.s32.totalorder %v1935, %v1931
        %vm1940 = vcmp.eq.s32.totalorder %v1935, %v1931
        %vm1941 = vcmp.lt.s32.totalorder %v1937, %v1932
        %vm1942 = vmand %vm1940, %vm1941
        %vm1943 = vmor %vm1939, %vm1942
        %v1944 = vsel %vm1943, %v1935, %v1931
        %v1945 = vsel %vm1943, %v1937, %v1932
        %1946 = xla_tuple %v1944, %v1945
        %s1947 = scalar_lea.vmem [#allocation14], 224
        %v1948 = vld [vmem:[%s1947] sm:$0xff]
        %s1949 = scalar_lea.vmem [#allocation15], 224
        %v1950 = vld [vmem:[%s1949] sm:$0xff]
        %1951 = xla_tuple %v1948, %v1950
        %vm1952 = vcmp.gt.s32.totalorder %v1948, %v1944
        %vm1953 = vcmp.eq.s32.totalorder %v1948, %v1944
        %vm1954 = vcmp.lt.s32.totalorder %v1950, %v1945
        %vm1955 = vmand %vm1953, %vm1954
        %vm1956 = vmor %vm1952, %vm1955
        %v1957 = vsel %vm1956, %v1948, %v1944
        %v1958 = vsel %vm1956, %v1950, %v1945
        %1959 = xla_tuple %v1957, %v1958
        %s1960 = scalar_lea.vmem [#allocation14], 232
        %v1961 = vld [vmem:[%s1960] sm:$0xff]
        %s1962 = scalar_lea.vmem [#allocation15], 232
        %v1963 = vld [vmem:[%s1962] sm:$0xff]
        %1964 = xla_tuple %v1961, %v1963
        %vm1965 = vcmp.gt.s32.totalorder %v1961, %v1957
        %vm1966 = vcmp.eq.s32.totalorder %v1961, %v1957
        %vm1967 = vcmp.lt.s32.totalorder %v1963, %v1958
        %vm1968 = vmand %vm1966, %vm1967
        %vm1969 = vmor %vm1965, %vm1968
        %v1970 = vsel %vm1969, %v1961, %v1957
        %v1971 = vsel %vm1969, %v1963, %v1958
        %1972 = xla_tuple %v1970, %v1971
        %s1973 = scalar_lea.vmem [#allocation14], 240
        %v1974 = vld [vmem:[%s1973] sm:$0xff]
        %s1975 = scalar_lea.vmem [#allocation15], 240
        %v1976 = vld [vmem:[%s1975] sm:$0xff]
        %1977 = xla_tuple %v1974, %v1976
        %vm1978 = vcmp.gt.s32.totalorder %v1974, %v1970
        %vm1979 = vcmp.eq.s32.totalorder %v1974, %v1970
        %vm1980 = vcmp.lt.s32.totalorder %v1976, %v1971
        %vm1981 = vmand %vm1979, %vm1980
        %vm1982 = vmor %vm1978, %vm1981
        %v1983 = vsel %vm1982, %v1974, %v1970
        %v1984 = vsel %vm1982, %v1976, %v1971
        %1985 = xla_tuple %v1983, %v1984
        %s1986 = scalar_lea.vmem [#allocation14], 248
        %v1987 = vld [vmem:[%s1986] sm:$0xff]
        %s1988 = scalar_lea.vmem [#allocation15], 248
        %v1989 = vld [vmem:[%s1988] sm:$0xff]
        %1990 = xla_tuple %v1987, %v1989
        %vm1991 = vcmp.gt.s32.totalorder %v1987, %v1983
        %vm1992 = vcmp.eq.s32.totalorder %v1987, %v1983
        %vm1993 = vcmp.lt.s32.totalorder %v1989, %v1984
        %vm1994 = vmand %vm1992, %vm1993
        %vm1995 = vmor %vm1991, %vm1994
        %v1996 = vsel %vm1995, %v1987, %v1983
        %v1997 = vsel %vm1995, %v1989, %v1984
        %1998 = xla_tuple %v1996, %v1997
        %s1999 = scalar_lea.vmem [#allocation14], 256
        %v2000 = vld [vmem:[%s1999] sm:$0xff]
        %s2001 = scalar_lea.vmem [#allocation15], 256
        %v2002 = vld [vmem:[%s2001] sm:$0xff]
        %2003 = xla_tuple %v2000, %v2002
        %vm2004 = vcmp.gt.s32.totalorder %v2000, %v1996
        %vm2005 = vcmp.eq.s32.totalorder %v2000, %v1996
        %vm2006 = vcmp.lt.s32.totalorder %v2002, %v1997
        %vm2007 = vmand %vm2005, %vm2006
        %vm2008 = vmor %vm2004, %vm2007
        %v2009 = vsel %vm2008, %v2000, %v1996
        %v2010 = vsel %vm2008, %v2002, %v1997
        %2011 = xla_tuple %v2009, %v2010
        %s2012 = scalar_lea.vmem [#allocation14], 264
        %v2013 = vld [vmem:[%s2012] sm:$0xff]
        %s2014 = scalar_lea.vmem [#allocation15], 264
        %v2015 = vld [vmem:[%s2014] sm:$0xff]
        %2016 = xla_tuple %v2013, %v2015
        %vm2017 = vcmp.gt.s32.totalorder %v2013, %v2009
        %vm2018 = vcmp.eq.s32.totalorder %v2013, %v2009
        %vm2019 = vcmp.lt.s32.totalorder %v2015, %v2010
        %vm2020 = vmand %vm2018, %vm2019
        %vm2021 = vmor %vm2017, %vm2020
        %v2022 = vsel %vm2021, %v2013, %v2009
        %v2023 = vsel %vm2021, %v2015, %v2010
        %2024 = xla_tuple %v2022, %v2023
        %s2025 = scalar_lea.vmem [#allocation14], 272
        %v2026 = vld [vmem:[%s2025] sm:$0xff]
        %s2027 = scalar_lea.vmem [#allocation15], 272
        %v2028 = vld [vmem:[%s2027] sm:$0xff]
        %2029 = xla_tuple %v2026, %v2028
        %vm2030 = vcmp.gt.s32.totalorder %v2026, %v2022
        %vm2031 = vcmp.eq.s32.totalorder %v2026, %v2022
        %vm2032 = vcmp.lt.s32.totalorder %v2028, %v2023
        %vm2033 = vmand %vm2031, %vm2032
        %vm2034 = vmor %vm2030, %vm2033
        %v2035 = vsel %vm2034, %v2026, %v2022
        %v2036 = vsel %vm2034, %v2028, %v2023
        %2037 = xla_tuple %v2035, %v2036
        %s2038 = scalar_lea.vmem [#allocation14], 280
        %v2039 = vld [vmem:[%s2038] sm:$0xff]
        %s2040 = scalar_lea.vmem [#allocation15], 280
        %v2041 = vld [vmem:[%s2040] sm:$0xff]
        %2042 = xla_tuple %v2039, %v2041
        %vm2043 = vcmp.gt.s32.totalorder %v2039, %v2035
        %vm2044 = vcmp.eq.s32.totalorder %v2039, %v2035
        %vm2045 = vcmp.lt.s32.totalorder %v2041, %v2036
        %vm2046 = vmand %vm2044, %vm2045
        %vm2047 = vmor %vm2043, %vm2046
        %v2048 = vsel %vm2047, %v2039, %v2035
        %v2049 = vsel %vm2047, %v2041, %v2036
        %2050 = xla_tuple %v2048, %v2049
        %s2051 = scalar_lea.vmem [#allocation14], 288
        %v2052 = vld [vmem:[%s2051] sm:$0xff]
        %s2053 = scalar_lea.vmem [#allocation15], 288
        %v2054 = vld [vmem:[%s2053] sm:$0xff]
        %2055 = xla_tuple %v2052, %v2054
        %vm2056 = vcmp.gt.s32.totalorder %v2052, %v2048
        %vm2057 = vcmp.eq.s32.totalorder %v2052, %v2048
        %vm2058 = vcmp.lt.s32.totalorder %v2054, %v2049
        %vm2059 = vmand %vm2057, %vm2058
        %vm2060 = vmor %vm2056, %vm2059
        %v2061 = vsel %vm2060, %v2052, %v2048
        %v2062 = vsel %vm2060, %v2054, %v2049
        %2063 = xla_tuple %v2061, %v2062
        %s2064 = scalar_lea.vmem [#allocation14], 296
        %v2065 = vld [vmem:[%s2064] sm:$0xff]
        %s2066 = scalar_lea.vmem [#allocation15], 296
        %v2067 = vld [vmem:[%s2066] sm:$0xff]
        %2068 = xla_tuple %v2065, %v2067
        %vm2069 = vcmp.gt.s32.totalorder %v2065, %v2061
        %vm2070 = vcmp.eq.s32.totalorder %v2065, %v2061
        %vm2071 = vcmp.lt.s32.totalorder %v2067, %v2062
        %vm2072 = vmand %vm2070, %vm2071
        %vm2073 = vmor %vm2069, %vm2072
        %v2074 = vsel %vm2073, %v2065, %v2061
        %v2075 = vsel %vm2073, %v2067, %v2062
        %2076 = xla_tuple %v2074, %v2075
        %s2077 = scalar_lea.vmem [#allocation14], 304
        %v2078 = vld [vmem:[%s2077] sm:$0xff]
        %s2079 = scalar_lea.vmem [#allocation15], 304
        %v2080 = vld [vmem:[%s2079] sm:$0xff]
        %2081 = xla_tuple %v2078, %v2080
        %vm2082 = vcmp.gt.s32.totalorder %v2078, %v2074
        %vm2083 = vcmp.eq.s32.totalorder %v2078, %v2074
        %vm2084 = vcmp.lt.s32.totalorder %v2080, %v2075
        %vm2085 = vmand %vm2083, %vm2084
        %vm2086 = vmor %vm2082, %vm2085
        %v2087 = vsel %vm2086, %v2078, %v2074
        %v2088 = vsel %vm2086, %v2080, %v2075
        %2089 = xla_tuple %v2087, %v2088
        %s2090 = scalar_lea.vmem [#allocation14], 312
        %v2091 = vld [vmem:[%s2090] sm:$0xff]
        %s2092 = scalar_lea.vmem [#allocation15], 312
        %v2093 = vld [vmem:[%s2092] sm:$0xff]
        %2094 = xla_tuple %v2091, %v2093
        %vm2095 = vcmp.gt.s32.totalorder %v2091, %v2087
        %vm2096 = vcmp.eq.s32.totalorder %v2091, %v2087
        %vm2097 = vcmp.lt.s32.totalorder %v2093, %v2088
        %vm2098 = vmand %vm2096, %vm2097
        %vm2099 = vmor %vm2095, %vm2098
        %v2100 = vsel %vm2099, %v2091, %v2087
        %v2101 = vsel %vm2099, %v2093, %v2088
        %2102 = xla_tuple %v2100, %v2101
        %s2103 = scalar_lea.vmem [#allocation14], 320
        %v2104 = vld [vmem:[%s2103] sm:$0xff]
        %s2105 = scalar_lea.vmem [#allocation15], 320
        %v2106 = vld [vmem:[%s2105] sm:$0xff]
        %2107 = xla_tuple %v2104, %v2106
        %vm2108 = vcmp.gt.s32.totalorder %v2104, %v2100
        %vm2109 = vcmp.eq.s32.totalorder %v2104, %v2100
        %vm2110 = vcmp.lt.s32.totalorder %v2106, %v2101
        %vm2111 = vmand %vm2109, %vm2110
        %vm2112 = vmor %vm2108, %vm2111
        %v2113 = vsel %vm2112, %v2104, %v2100
        %v2114 = vsel %vm2112, %v2106, %v2101
        %2115 = xla_tuple %v2113, %v2114
        %s2116 = scalar_lea.vmem [#allocation14], 328
        %v2117 = vld [vmem:[%s2116] sm:$0xff]
        %s2118 = scalar_lea.vmem [#allocation15], 328
        %v2119 = vld [vmem:[%s2118] sm:$0xff]
        %2120 = xla_tuple %v2117, %v2119
        %vm2121 = vcmp.gt.s32.totalorder %v2117, %v2113
        %vm2122 = vcmp.eq.s32.totalorder %v2117, %v2113
        %vm2123 = vcmp.lt.s32.totalorder %v2119, %v2114
        %vm2124 = vmand %vm2122, %vm2123
        %vm2125 = vmor %vm2121, %vm2124
        %v2126 = vsel %vm2125, %v2117, %v2113
        %v2127 = vsel %vm2125, %v2119, %v2114
        %2128 = xla_tuple %v2126, %v2127
        %s2129 = scalar_lea.vmem [#allocation14], 336
        %v2130 = vld [vmem:[%s2129] sm:$0xff]
        %s2131 = scalar_lea.vmem [#allocation15], 336
        %v2132 = vld [vmem:[%s2131] sm:$0xff]
        %2133 = xla_tuple %v2130, %v2132
        %vm2134 = vcmp.gt.s32.totalorder %v2130, %v2126
        %vm2135 = vcmp.eq.s32.totalorder %v2130, %v2126
        %vm2136 = vcmp.lt.s32.totalorder %v2132, %v2127
        %vm2137 = vmand %vm2135, %vm2136
        %vm2138 = vmor %vm2134, %vm2137
        %v2139 = vsel %vm2138, %v2130, %v2126
        %v2140 = vsel %vm2138, %v2132, %v2127
        %2141 = xla_tuple %v2139, %v2140
        %s2142 = scalar_lea.vmem [#allocation14], 344
        %v2143 = vld [vmem:[%s2142] sm:$0xff]
        %s2144 = scalar_lea.vmem [#allocation15], 344
        %v2145 = vld [vmem:[%s2144] sm:$0xff]
        %2146 = xla_tuple %v2143, %v2145
        %vm2147 = vcmp.gt.s32.totalorder %v2143, %v2139
        %vm2148 = vcmp.eq.s32.totalorder %v2143, %v2139
        %vm2149 = vcmp.lt.s32.totalorder %v2145, %v2140
        %vm2150 = vmand %vm2148, %vm2149
        %vm2151 = vmor %vm2147, %vm2150
        %v2152 = vsel %vm2151, %v2143, %v2139
        %v2153 = vsel %vm2151, %v2145, %v2140
        %2154 = xla_tuple %v2152, %v2153
        %s2155 = scalar_lea.vmem [#allocation14], 352
        %v2156 = vld [vmem:[%s2155] sm:$0xff]
        %s2157 = scalar_lea.vmem [#allocation15], 352
        %v2158 = vld [vmem:[%s2157] sm:$0xff]
        %2159 = xla_tuple %v2156, %v2158
        %vm2160 = vcmp.gt.s32.totalorder %v2156, %v2152
        %vm2161 = vcmp.eq.s32.totalorder %v2156, %v2152
        %vm2162 = vcmp.lt.s32.totalorder %v2158, %v2153
        %vm2163 = vmand %vm2161, %vm2162
        %vm2164 = vmor %vm2160, %vm2163
        %v2165 = vsel %vm2164, %v2156, %v2152
        %v2166 = vsel %vm2164, %v2158, %v2153
        %2167 = xla_tuple %v2165, %v2166
        %s2168 = scalar_lea.vmem [#allocation14], 360
        %v2169 = vld [vmem:[%s2168] sm:$0xff]
        %s2170 = scalar_lea.vmem [#allocation15], 360
        %v2171 = vld [vmem:[%s2170] sm:$0xff]
        %2172 = xla_tuple %v2169, %v2171
        %vm2173 = vcmp.gt.s32.totalorder %v2169, %v2165
        %vm2174 = vcmp.eq.s32.totalorder %v2169, %v2165
        %vm2175 = vcmp.lt.s32.totalorder %v2171, %v2166
        %vm2176 = vmand %vm2174, %vm2175
        %vm2177 = vmor %vm2173, %vm2176
        %v2178 = vsel %vm2177, %v2169, %v2165
        %v2179 = vsel %vm2177, %v2171, %v2166
        %2180 = xla_tuple %v2178, %v2179
        %s2181 = scalar_lea.vmem [#allocation14], 368
        %v2182 = vld [vmem:[%s2181] sm:$0xff]
        %s2183 = scalar_lea.vmem [#allocation15], 368
        %v2184 = vld [vmem:[%s2183] sm:$0xff]
        %2185 = xla_tuple %v2182, %v2184
        %vm2186 = vcmp.gt.s32.totalorder %v2182, %v2178
        %vm2187 = vcmp.eq.s32.totalorder %v2182, %v2178
        %vm2188 = vcmp.lt.s32.totalorder %v2184, %v2179
        %vm2189 = vmand %vm2187, %vm2188
        %vm2190 = vmor %vm2186, %vm2189
        %v2191 = vsel %vm2190, %v2182, %v2178
        %v2192 = vsel %vm2190, %v2184, %v2179
        %2193 = xla_tuple %v2191, %v2192
        %s2194 = scalar_lea.vmem [#allocation14], 376
        %v2195 = vld [vmem:[%s2194] sm:$0xff]
        %s2196 = scalar_lea.vmem [#allocation15], 376
        %v2197 = vld [vmem:[%s2196] sm:$0xff]
        %2198 = xla_tuple %v2195, %v2197
        %vm2199 = vcmp.gt.s32.totalorder %v2195, %v2191
        %vm2200 = vcmp.eq.s32.totalorder %v2195, %v2191
        %vm2201 = vcmp.lt.s32.totalorder %v2197, %v2192
        %vm2202 = vmand %vm2200, %vm2201
        %vm2203 = vmor %vm2199, %vm2202
        %v2204 = vsel %vm2203, %v2195, %v2191
        %v2205 = vsel %vm2203, %v2197, %v2192
        %2206 = xla_tuple %v2204, %v2205
        %s2207 = scalar_lea.vmem [#allocation14], 384
        %v2208 = vld [vmem:[%s2207] sm:$0xff]
        %s2209 = scalar_lea.vmem [#allocation15], 384
        %v2210 = vld [vmem:[%s2209] sm:$0xff]
        %2211 = xla_tuple %v2208, %v2210
        %vm2212 = vcmp.gt.s32.totalorder %v2208, %v2204
        %vm2213 = vcmp.eq.s32.totalorder %v2208, %v2204
        %vm2214 = vcmp.lt.s32.totalorder %v2210, %v2205
        %vm2215 = vmand %vm2213, %vm2214
        %vm2216 = vmor %vm2212, %vm2215
        %v2217 = vsel %vm2216, %v2208, %v2204
        %v2218 = vsel %vm2216, %v2210, %v2205
        %2219 = xla_tuple %v2217, %v2218
        %s2220 = scalar_lea.vmem [#allocation14], 392
        %v2221 = vld [vmem:[%s2220] sm:$0xff]
        %s2222 = scalar_lea.vmem [#allocation15], 392
        %v2223 = vld [vmem:[%s2222] sm:$0xff]
        %2224 = xla_tuple %v2221, %v2223
        %vm2225 = vcmp.gt.s32.totalorder %v2221, %v2217
        %vm2226 = vcmp.eq.s32.totalorder %v2221, %v2217
        %vm2227 = vcmp.lt.s32.totalorder %v2223, %v2218
        %vm2228 = vmand %vm2226, %vm2227
        %vm2229 = vmor %vm2225, %vm2228
        %v2230 = vsel %vm2229, %v2221, %v2217
        %v2231 = vsel %vm2229, %v2223, %v2218
        %2232 = xla_tuple %v2230, %v2231
        %s2233 = scalar_lea.vmem [#allocation14], 400
        %v2234 = vld [vmem:[%s2233] sm:$0xff]
        %s2235 = scalar_lea.vmem [#allocation15], 400
        %v2236 = vld [vmem:[%s2235] sm:$0xff]
        %2237 = xla_tuple %v2234, %v2236
        %vm2238 = vcmp.gt.s32.totalorder %v2234, %v2230
        %vm2239 = vcmp.eq.s32.totalorder %v2234, %v2230
        %vm2240 = vcmp.lt.s32.totalorder %v2236, %v2231
        %vm2241 = vmand %vm2239, %vm2240
        %vm2242 = vmor %vm2238, %vm2241
        %v2243 = vsel %vm2242, %v2234, %v2230
        %v2244 = vsel %vm2242, %v2236, %v2231
        %2245 = xla_tuple %v2243, %v2244
        %s2246 = scalar_lea.vmem [#allocation14], 408
        %v2247 = vld [vmem:[%s2246] sm:$0xff]
        %s2248 = scalar_lea.vmem [#allocation15], 408
        %v2249 = vld [vmem:[%s2248] sm:$0xff]
        %2250 = xla_tuple %v2247, %v2249
        %vm2251 = vcmp.gt.s32.totalorder %v2247, %v2243
        %vm2252 = vcmp.eq.s32.totalorder %v2247, %v2243
        %vm2253 = vcmp.lt.s32.totalorder %v2249, %v2244
        %vm2254 = vmand %vm2252, %vm2253
        %vm2255 = vmor %vm2251, %vm2254
        %v2256 = vsel %vm2255, %v2247, %v2243
        %v2257 = vsel %vm2255, %v2249, %v2244
        %2258 = xla_tuple %v2256, %v2257
        %s2259 = scalar_lea.vmem [#allocation14], 416
        %v2260 = vld [vmem:[%s2259] sm:$0xff]
        %s2261 = scalar_lea.vmem [#allocation15], 416
        %v2262 = vld [vmem:[%s2261] sm:$0xff]
        %2263 = xla_tuple %v2260, %v2262
        %vm2264 = vcmp.gt.s32.totalorder %v2260, %v2256
        %vm2265 = vcmp.eq.s32.totalorder %v2260, %v2256
        %vm2266 = vcmp.lt.s32.totalorder %v2262, %v2257
        %vm2267 = vmand %vm2265, %vm2266
        %vm2268 = vmor %vm2264, %vm2267
        %v2269 = vsel %vm2268, %v2260, %v2256
        %v2270 = vsel %vm2268, %v2262, %v2257
        %2271 = xla_tuple %v2269, %v2270
        %s2272 = scalar_lea.vmem [#allocation14], 424
        %v2273 = vld [vmem:[%s2272] sm:$0xff]
        %s2274 = scalar_lea.vmem [#allocation15], 424
        %v2275 = vld [vmem:[%s2274] sm:$0xff]
        %2276 = xla_tuple %v2273, %v2275
        %vm2277 = vcmp.gt.s32.totalorder %v2273, %v2269
        %vm2278 = vcmp.eq.s32.totalorder %v2273, %v2269
        %vm2279 = vcmp.lt.s32.totalorder %v2275, %v2270
        %vm2280 = vmand %vm2278, %vm2279
        %vm2281 = vmor %vm2277, %vm2280
        %v2282 = vsel %vm2281, %v2273, %v2269
        %v2283 = vsel %vm2281, %v2275, %v2270
        %2284 = xla_tuple %v2282, %v2283
        %s2285 = scalar_lea.vmem [#allocation14], 432
        %v2286 = vld [vmem:[%s2285] sm:$0xff]
        %s2287 = scalar_lea.vmem [#allocation15], 432
        %v2288 = vld [vmem:[%s2287] sm:$0xff]
        %2289 = xla_tuple %v2286, %v2288
        %vm2290 = vcmp.gt.s32.totalorder %v2286, %v2282
        %vm2291 = vcmp.eq.s32.totalorder %v2286, %v2282
        %vm2292 = vcmp.lt.s32.totalorder %v2288, %v2283
        %vm2293 = vmand %vm2291, %vm2292
        %vm2294 = vmor %vm2290, %vm2293
        %v2295 = vsel %vm2294, %v2286, %v2282
        %v2296 = vsel %vm2294, %v2288, %v2283
        %2297 = xla_tuple %v2295, %v2296
        %s2298 = scalar_lea.vmem [#allocation14], 440
        %v2299 = vld [vmem:[%s2298] sm:$0xff]
        %s2300 = scalar_lea.vmem [#allocation15], 440
        %v2301 = vld [vmem:[%s2300] sm:$0xff]
        %2302 = xla_tuple %v2299, %v2301
        %vm2303 = vcmp.gt.s32.totalorder %v2299, %v2295
        %vm2304 = vcmp.eq.s32.totalorder %v2299, %v2295
        %vm2305 = vcmp.lt.s32.totalorder %v2301, %v2296
        %vm2306 = vmand %vm2304, %vm2305
        %vm2307 = vmor %vm2303, %vm2306
        %v2308 = vsel %vm2307, %v2299, %v2295
        %v2309 = vsel %vm2307, %v2301, %v2296
        %2310 = xla_tuple %v2308, %v2309
        %s2311 = scalar_lea.vmem [#allocation14], 448
        %v2312 = vld [vmem:[%s2311] sm:$0xff]
        %s2313 = scalar_lea.vmem [#allocation15], 448
        %v2314 = vld [vmem:[%s2313] sm:$0xff]
        %2315 = xla_tuple %v2312, %v2314
        %vm2316 = vcmp.gt.s32.totalorder %v2312, %v2308
        %vm2317 = vcmp.eq.s32.totalorder %v2312, %v2308
        %vm2318 = vcmp.lt.s32.totalorder %v2314, %v2309
        %vm2319 = vmand %vm2317, %vm2318
        %vm2320 = vmor %vm2316, %vm2319
        %v2321 = vsel %vm2320, %v2312, %v2308
        %v2322 = vsel %vm2320, %v2314, %v2309
        %2323 = xla_tuple %v2321, %v2322
        %s2324 = scalar_lea.vmem [#allocation14], 456
        %v2325 = vld [vmem:[%s2324] sm:$0xff]
        %s2326 = scalar_lea.vmem [#allocation15], 456
        %v2327 = vld [vmem:[%s2326] sm:$0xff]
        %2328 = xla_tuple %v2325, %v2327
        %vm2329 = vcmp.gt.s32.totalorder %v2325, %v2321
        %vm2330 = vcmp.eq.s32.totalorder %v2325, %v2321
        %vm2331 = vcmp.lt.s32.totalorder %v2327, %v2322
        %vm2332 = vmand %vm2330, %vm2331
        %vm2333 = vmor %vm2329, %vm2332
        %v2334 = vsel %vm2333, %v2325, %v2321
        %v2335 = vsel %vm2333, %v2327, %v2322
        %2336 = xla_tuple %v2334, %v2335
        %s2337 = scalar_lea.vmem [#allocation14], 464
        %v2338 = vld [vmem:[%s2337] sm:$0xff]
        %s2339 = scalar_lea.vmem [#allocation15], 464
        %v2340 = vld [vmem:[%s2339] sm:$0xff]
        %2341 = xla_tuple %v2338, %v2340
        %vm2342 = vcmp.gt.s32.totalorder %v2338, %v2334
        %vm2343 = vcmp.eq.s32.totalorder %v2338, %v2334
        %vm2344 = vcmp.lt.s32.totalorder %v2340, %v2335
        %vm2345 = vmand %vm2343, %vm2344
        %vm2346 = vmor %vm2342, %vm2345
        %v2347 = vsel %vm2346, %v2338, %v2334
        %v2348 = vsel %vm2346, %v2340, %v2335
        %2349 = xla_tuple %v2347, %v2348
        %s2350 = scalar_lea.vmem [#allocation14], 472
        %v2351 = vld [vmem:[%s2350] sm:$0xff]
        %s2352 = scalar_lea.vmem [#allocation15], 472
        %v2353 = vld [vmem:[%s2352] sm:$0xff]
        %2354 = xla_tuple %v2351, %v2353
        %vm2355 = vcmp.gt.s32.totalorder %v2351, %v2347
        %vm2356 = vcmp.eq.s32.totalorder %v2351, %v2347
        %vm2357 = vcmp.lt.s32.totalorder %v2353, %v2348
        %vm2358 = vmand %vm2356, %vm2357
        %vm2359 = vmor %vm2355, %vm2358
        %v2360 = vsel %vm2359, %v2351, %v2347
        %v2361 = vsel %vm2359, %v2353, %v2348
        %2362 = xla_tuple %v2360, %v2361
        %s2363 = scalar_lea.vmem [#allocation14], 480
        %v2364 = vld [vmem:[%s2363] sm:$0xff]
        %s2365 = scalar_lea.vmem [#allocation15], 480
        %v2366 = vld [vmem:[%s2365] sm:$0xff]
        %2367 = xla_tuple %v2364, %v2366
        %vm2368 = vcmp.gt.s32.totalorder %v2364, %v2360
        %vm2369 = vcmp.eq.s32.totalorder %v2364, %v2360
        %vm2370 = vcmp.lt.s32.totalorder %v2366, %v2361
        %vm2371 = vmand %vm2369, %vm2370
        %vm2372 = vmor %vm2368, %vm2371
        %v2373 = vsel %vm2372, %v2364, %v2360
        %v2374 = vsel %vm2372, %v2366, %v2361
        %2375 = xla_tuple %v2373, %v2374
        %s2376 = scalar_lea.vmem [#allocation14], 488
        %v2377 = vld [vmem:[%s2376] sm:$0xff]
        %s2378 = scalar_lea.vmem [#allocation15], 488
        %v2379 = vld [vmem:[%s2378] sm:$0xff]
        %2380 = xla_tuple %v2377, %v2379
        %vm2381 = vcmp.gt.s32.totalorder %v2377, %v2373
        %vm2382 = vcmp.eq.s32.totalorder %v2377, %v2373
        %vm2383 = vcmp.lt.s32.totalorder %v2379, %v2374
        %vm2384 = vmand %vm2382, %vm2383
        %vm2385 = vmor %vm2381, %vm2384
        %v2386 = vsel %vm2385, %v2377, %v2373
        %v2387 = vsel %vm2385, %v2379, %v2374
        %2388 = xla_tuple %v2386, %v2387
        %s2389 = scalar_lea.vmem [#allocation14], 496
        %v2390 = vld [vmem:[%s2389] sm:$0xff]
        %s2391 = scalar_lea.vmem [#allocation15], 496
        %v2392 = vld [vmem:[%s2391] sm:$0xff]
        %2393 = xla_tuple %v2390, %v2392
        %vm2394 = vcmp.gt.s32.totalorder %v2390, %v2386
        %vm2395 = vcmp.eq.s32.totalorder %v2390, %v2386
        %vm2396 = vcmp.lt.s32.totalorder %v2392, %v2387
        %vm2397 = vmand %vm2395, %vm2396
        %vm2398 = vmor %vm2394, %vm2397
        %v2399 = vsel %vm2398, %v2390, %v2386
        %v2400 = vsel %vm2398, %v2392, %v2387
        %2401 = xla_tuple %v2399, %v2400
        %s2402 = scalar_lea.vmem [#allocation14], 504
        %v2403 = vld [vmem:[%s2402] sm:$0xff]
        %s2404 = scalar_lea.vmem [#allocation15], 504
        %v2405 = vld [vmem:[%s2404] sm:$0xff]
        %2406 = xla_tuple %v2403, %v2405
        %vm2407 = vcmp.gt.s32.totalorder %v2403, %v2399
        %vm2408 = vcmp.eq.s32.totalorder %v2403, %v2399
        %vm2409 = vcmp.lt.s32.totalorder %v2405, %v2400
        %vm2410 = vmand %vm2408, %vm2409
        %vm2411 = vmor %vm2407, %vm2410
        %v2412 = vsel %vm2411, %v2403, %v2399
        %v2413 = vsel %vm2411, %v2405, %v2400
        %2414 = xla_tuple %v2412, %v2413
        %s2415 = scalar_lea.vmem [#allocation14], 512
        %v2416 = vld [vmem:[%s2415] sm:$0xff]
        %s2417 = scalar_lea.vmem [#allocation15], 512
        %v2418 = vld [vmem:[%s2417] sm:$0xff]
        %2419 = xla_tuple %v2416, %v2418
        %vm2420 = vcmp.gt.s32.totalorder %v2416, %v2412
        %vm2421 = vcmp.eq.s32.totalorder %v2416, %v2412
        %vm2422 = vcmp.lt.s32.totalorder %v2418, %v2413
        %vm2423 = vmand %vm2421, %vm2422
        %vm2424 = vmor %vm2420, %vm2423
        %v2425 = vsel %vm2424, %v2416, %v2412
        %v2426 = vsel %vm2424, %v2418, %v2413
        %2427 = xla_tuple %v2425, %v2426
        %s2428 = scalar_lea.vmem [#allocation14], 520
        %v2429 = vld [vmem:[%s2428] sm:$0xff]
        %s2430 = scalar_lea.vmem [#allocation15], 520
        %v2431 = vld [vmem:[%s2430] sm:$0xff]
        %2432 = xla_tuple %v2429, %v2431
        %vm2433 = vcmp.gt.s32.totalorder %v2429, %v2425
        %vm2434 = vcmp.eq.s32.totalorder %v2429, %v2425
        %vm2435 = vcmp.lt.s32.totalorder %v2431, %v2426
        %vm2436 = vmand %vm2434, %vm2435
        %vm2437 = vmor %vm2433, %vm2436
        %v2438 = vsel %vm2437, %v2429, %v2425
        %v2439 = vsel %vm2437, %v2431, %v2426
        %2440 = xla_tuple %v2438, %v2439
        %s2441 = scalar_lea.vmem [#allocation14], 528
        %v2442 = vld [vmem:[%s2441] sm:$0xff]
        %s2443 = scalar_lea.vmem [#allocation15], 528
        %v2444 = vld [vmem:[%s2443] sm:$0xff]
        %2445 = xla_tuple %v2442, %v2444
        %vm2446 = vcmp.gt.s32.totalorder %v2442, %v2438
        %vm2447 = vcmp.eq.s32.totalorder %v2442, %v2438
        %vm2448 = vcmp.lt.s32.totalorder %v2444, %v2439
        %vm2449 = vmand %vm2447, %vm2448
        %vm2450 = vmor %vm2446, %vm2449
        %v2451 = vsel %vm2450, %v2442, %v2438
        %v2452 = vsel %vm2450, %v2444, %v2439
        %2453 = xla_tuple %v2451, %v2452
        %s2454 = scalar_lea.vmem [#allocation14], 536
        %v2455 = vld [vmem:[%s2454] sm:$0xff]
        %s2456 = scalar_lea.vmem [#allocation15], 536
        %v2457 = vld [vmem:[%s2456] sm:$0xff]
        %2458 = xla_tuple %v2455, %v2457
        %vm2459 = vcmp.gt.s32.totalorder %v2455, %v2451
        %vm2460 = vcmp.eq.s32.totalorder %v2455, %v2451
        %vm2461 = vcmp.lt.s32.totalorder %v2457, %v2452
        %vm2462 = vmand %vm2460, %vm2461
        %vm2463 = vmor %vm2459, %vm2462
        %v2464 = vsel %vm2463, %v2455, %v2451
        %v2465 = vsel %vm2463, %v2457, %v2452
        %2466 = xla_tuple %v2464, %v2465
        %s2467 = scalar_lea.vmem [#allocation14], 544
        %v2468 = vld [vmem:[%s2467] sm:$0xff]
        %s2469 = scalar_lea.vmem [#allocation15], 544
        %v2470 = vld [vmem:[%s2469] sm:$0xff]
        %2471 = xla_tuple %v2468, %v2470
        %vm2472 = vcmp.gt.s32.totalorder %v2468, %v2464
        %vm2473 = vcmp.eq.s32.totalorder %v2468, %v2464
        %vm2474 = vcmp.lt.s32.totalorder %v2470, %v2465
        %vm2475 = vmand %vm2473, %vm2474
        %vm2476 = vmor %vm2472, %vm2475
        %v2477 = vsel %vm2476, %v2468, %v2464
        %v2478 = vsel %vm2476, %v2470, %v2465
        %2479 = xla_tuple %v2477, %v2478
        %s2480 = scalar_lea.vmem [#allocation14], 552
        %v2481 = vld [vmem:[%s2480] sm:$0xff]
        %s2482 = scalar_lea.vmem [#allocation15], 552
        %v2483 = vld [vmem:[%s2482] sm:$0xff]
        %2484 = xla_tuple %v2481, %v2483
        %vm2485 = vcmp.gt.s32.totalorder %v2481, %v2477
        %vm2486 = vcmp.eq.s32.totalorder %v2481, %v2477
        %vm2487 = vcmp.lt.s32.totalorder %v2483, %v2478
        %vm2488 = vmand %vm2486, %vm2487
        %vm2489 = vmor %vm2485, %vm2488
        %v2490 = vsel %vm2489, %v2481, %v2477
        %v2491 = vsel %vm2489, %v2483, %v2478
        %2492 = xla_tuple %v2490, %v2491
        %s2493 = scalar_lea.vmem [#allocation14], 560
        %v2494 = vld [vmem:[%s2493] sm:$0xff]
        %s2495 = scalar_lea.vmem [#allocation15], 560
        %v2496 = vld [vmem:[%s2495] sm:$0xff]
        %2497 = xla_tuple %v2494, %v2496
        %vm2498 = vcmp.gt.s32.totalorder %v2494, %v2490
        %vm2499 = vcmp.eq.s32.totalorder %v2494, %v2490
        %vm2500 = vcmp.lt.s32.totalorder %v2496, %v2491
        %vm2501 = vmand %vm2499, %vm2500
        %vm2502 = vmor %vm2498, %vm2501
        %v2503 = vsel %vm2502, %v2494, %v2490
        %v2504 = vsel %vm2502, %v2496, %v2491
        %2505 = xla_tuple %v2503, %v2504
        %s2506 = scalar_lea.vmem [#allocation14], 568
        %v2507 = vld [vmem:[%s2506] sm:$0xff]
        %s2508 = scalar_lea.vmem [#allocation15], 568
        %v2509 = vld [vmem:[%s2508] sm:$0xff]
        %2510 = xla_tuple %v2507, %v2509
        %vm2511 = vcmp.gt.s32.totalorder %v2507, %v2503
        %vm2512 = vcmp.eq.s32.totalorder %v2507, %v2503
        %vm2513 = vcmp.lt.s32.totalorder %v2509, %v2504
        %vm2514 = vmand %vm2512, %vm2513
        %vm2515 = vmor %vm2511, %vm2514
        %v2516 = vsel %vm2515, %v2507, %v2503
        %v2517 = vsel %vm2515, %v2509, %v2504
        %2518 = xla_tuple %v2516, %v2517
        %s2519 = scalar_lea.vmem [#allocation14], 576
        %v2520 = vld [vmem:[%s2519] sm:$0xff]
        %s2521 = scalar_lea.vmem [#allocation15], 576
        %v2522 = vld [vmem:[%s2521] sm:$0xff]
        %2523 = xla_tuple %v2520, %v2522
        %vm2524 = vcmp.gt.s32.totalorder %v2520, %v2516
        %vm2525 = vcmp.eq.s32.totalorder %v2520, %v2516
        %vm2526 = vcmp.lt.s32.totalorder %v2522, %v2517
        %vm2527 = vmand %vm2525, %vm2526
        %vm2528 = vmor %vm2524, %vm2527
        %v2529 = vsel %vm2528, %v2520, %v2516
        %v2530 = vsel %vm2528, %v2522, %v2517
        %2531 = xla_tuple %v2529, %v2530
        %s2532 = scalar_lea.vmem [#allocation14], 584
        %v2533 = vld [vmem:[%s2532] sm:$0xff]
        %s2534 = scalar_lea.vmem [#allocation15], 584
        %v2535 = vld [vmem:[%s2534] sm:$0xff]
        %2536 = xla_tuple %v2533, %v2535
        %vm2537 = vcmp.gt.s32.totalorder %v2533, %v2529
        %vm2538 = vcmp.eq.s32.totalorder %v2533, %v2529
        %vm2539 = vcmp.lt.s32.totalorder %v2535, %v2530
        %vm2540 = vmand %vm2538, %vm2539
        %vm2541 = vmor %vm2537, %vm2540
        %v2542 = vsel %vm2541, %v2533, %v2529
        %v2543 = vsel %vm2541, %v2535, %v2530
        %2544 = xla_tuple %v2542, %v2543
        %s2545 = scalar_lea.vmem [#allocation14], 592
        %v2546 = vld [vmem:[%s2545] sm:$0xff]
        %s2547 = scalar_lea.vmem [#allocation15], 592
        %v2548 = vld [vmem:[%s2547] sm:$0xff]
        %2549 = xla_tuple %v2546, %v2548
        %vm2550 = vcmp.gt.s32.totalorder %v2546, %v2542
        %vm2551 = vcmp.eq.s32.totalorder %v2546, %v2542
        %vm2552 = vcmp.lt.s32.totalorder %v2548, %v2543
        %vm2553 = vmand %vm2551, %vm2552
        %vm2554 = vmor %vm2550, %vm2553
        %v2555 = vsel %vm2554, %v2546, %v2542
        %v2556 = vsel %vm2554, %v2548, %v2543
        %2557 = xla_tuple %v2555, %v2556
        %s2558 = scalar_lea.vmem [#allocation14], 600
        %v2559 = vld [vmem:[%s2558] sm:$0xff]
        %s2560 = scalar_lea.vmem [#allocation15], 600
        %v2561 = vld [vmem:[%s2560] sm:$0xff]
        %2562 = xla_tuple %v2559, %v2561
        %vm2563 = vcmp.gt.s32.totalorder %v2559, %v2555
        %vm2564 = vcmp.eq.s32.totalorder %v2559, %v2555
        %vm2565 = vcmp.lt.s32.totalorder %v2561, %v2556
        %vm2566 = vmand %vm2564, %vm2565
        %vm2567 = vmor %vm2563, %vm2566
        %v2568 = vsel %vm2567, %v2559, %v2555
        %v2569 = vsel %vm2567, %v2561, %v2556
        %2570 = xla_tuple %v2568, %v2569
        %s2571 = scalar_lea.vmem [#allocation14], 608
        %v2572 = vld [vmem:[%s2571] sm:$0xff]
        %s2573 = scalar_lea.vmem [#allocation15], 608
        %v2574 = vld [vmem:[%s2573] sm:$0xff]
        %2575 = xla_tuple %v2572, %v2574
        %vm2576 = vcmp.gt.s32.totalorder %v2572, %v2568
        %vm2577 = vcmp.eq.s32.totalorder %v2572, %v2568
        %vm2578 = vcmp.lt.s32.totalorder %v2574, %v2569
        %vm2579 = vmand %vm2577, %vm2578
        %vm2580 = vmor %vm2576, %vm2579
        %v2581 = vsel %vm2580, %v2572, %v2568
        %v2582 = vsel %vm2580, %v2574, %v2569
        %2583 = xla_tuple %v2581, %v2582
        %s2584 = scalar_lea.vmem [#allocation14], 616
        %v2585 = vld [vmem:[%s2584] sm:$0xff]
        %s2586 = scalar_lea.vmem [#allocation15], 616
        %v2587 = vld [vmem:[%s2586] sm:$0xff]
        %2588 = xla_tuple %v2585, %v2587
        %vm2589 = vcmp.gt.s32.totalorder %v2585, %v2581
        %vm2590 = vcmp.eq.s32.totalorder %v2585, %v2581
        %vm2591 = vcmp.lt.s32.totalorder %v2587, %v2582
        %vm2592 = vmand %vm2590, %vm2591
        %vm2593 = vmor %vm2589, %vm2592
        %v2594 = vsel %vm2593, %v2585, %v2581
        %v2595 = vsel %vm2593, %v2587, %v2582
        %2596 = xla_tuple %v2594, %v2595
        %s2597 = scalar_lea.vmem [#allocation14], 624
        %v2598 = vld [vmem:[%s2597] sm:$0xff]
        %s2599 = scalar_lea.vmem [#allocation15], 624
        %v2600 = vld [vmem:[%s2599] sm:$0xff]
        %2601 = xla_tuple %v2598, %v2600
        %vm2602 = vcmp.gt.s32.totalorder %v2598, %v2594
        %vm2603 = vcmp.eq.s32.totalorder %v2598, %v2594
        %vm2604 = vcmp.lt.s32.totalorder %v2600, %v2595
        %vm2605 = vmand %vm2603, %vm2604
        %vm2606 = vmor %vm2602, %vm2605
        %v2607 = vsel %vm2606, %v2598, %v2594
        %v2608 = vsel %vm2606, %v2600, %v2595
        %2609 = xla_tuple %v2607, %v2608
        %s2610 = scalar_lea.vmem [#allocation14], 632
        %v2611 = vld [vmem:[%s2610] sm:$0xff]
        %s2612 = scalar_lea.vmem [#allocation15], 632
        %v2613 = vld [vmem:[%s2612] sm:$0xff]
        %2614 = xla_tuple %v2611, %v2613
        %vm2615 = vcmp.gt.s32.totalorder %v2611, %v2607
        %vm2616 = vcmp.eq.s32.totalorder %v2611, %v2607
        %vm2617 = vcmp.lt.s32.totalorder %v2613, %v2608
        %vm2618 = vmand %vm2616, %vm2617
        %vm2619 = vmor %vm2615, %vm2618
        %v2620 = vsel %vm2619, %v2611, %v2607
        %v2621 = vsel %vm2619, %v2613, %v2608
        %2622 = xla_tuple %v2620, %v2621
        %s2623 = scalar_lea.vmem [#allocation14], 640
        %v2624 = vld [vmem:[%s2623] sm:$0xff]
        %s2625 = scalar_lea.vmem [#allocation15], 640
        %v2626 = vld [vmem:[%s2625] sm:$0xff]
        %2627 = xla_tuple %v2624, %v2626
        %vm2628 = vcmp.gt.s32.totalorder %v2624, %v2620
        %vm2629 = vcmp.eq.s32.totalorder %v2624, %v2620
        %vm2630 = vcmp.lt.s32.totalorder %v2626, %v2621
        %vm2631 = vmand %vm2629, %vm2630
        %vm2632 = vmor %vm2628, %vm2631
        %v2633 = vsel %vm2632, %v2624, %v2620
        %v2634 = vsel %vm2632, %v2626, %v2621
        %2635 = xla_tuple %v2633, %v2634
        %s2636 = scalar_lea.vmem [#allocation14], 648
        %v2637 = vld [vmem:[%s2636] sm:$0xff]
        %s2638 = scalar_lea.vmem [#allocation15], 648
        %v2639 = vld [vmem:[%s2638] sm:$0xff]
        %2640 = xla_tuple %v2637, %v2639
        %vm2641 = vcmp.gt.s32.totalorder %v2637, %v2633
        %vm2642 = vcmp.eq.s32.totalorder %v2637, %v2633
        %vm2643 = vcmp.lt.s32.totalorder %v2639, %v2634
        %vm2644 = vmand %vm2642, %vm2643
        %vm2645 = vmor %vm2641, %vm2644
        %v2646 = vsel %vm2645, %v2637, %v2633
        %v2647 = vsel %vm2645, %v2639, %v2634
        %2648 = xla_tuple %v2646, %v2647
        %s2649 = scalar_lea.vmem [#allocation14], 656
        %v2650 = vld [vmem:[%s2649] sm:$0xff]
        %s2651 = scalar_lea.vmem [#allocation15], 656
        %v2652 = vld [vmem:[%s2651] sm:$0xff]
        %2653 = xla_tuple %v2650, %v2652
        %vm2654 = vcmp.gt.s32.totalorder %v2650, %v2646
        %vm2655 = vcmp.eq.s32.totalorder %v2650, %v2646
        %vm2656 = vcmp.lt.s32.totalorder %v2652, %v2647
        %vm2657 = vmand %vm2655, %vm2656
        %vm2658 = vmor %vm2654, %vm2657
        %v2659 = vsel %vm2658, %v2650, %v2646
        %v2660 = vsel %vm2658, %v2652, %v2647
        %2661 = xla_tuple %v2659, %v2660
        %s2662 = scalar_lea.vmem [#allocation14], 664
        %v2663 = vld [vmem:[%s2662] sm:$0xff]
        %s2664 = scalar_lea.vmem [#allocation15], 664
        %v2665 = vld [vmem:[%s2664] sm:$0xff]
        %2666 = xla_tuple %v2663, %v2665
        %vm2667 = vcmp.gt.s32.totalorder %v2663, %v2659
        %vm2668 = vcmp.eq.s32.totalorder %v2663, %v2659
        %vm2669 = vcmp.lt.s32.totalorder %v2665, %v2660
        %vm2670 = vmand %vm2668, %vm2669
        %vm2671 = vmor %vm2667, %vm2670
        %v2672 = vsel %vm2671, %v2663, %v2659
        %v2673 = vsel %vm2671, %v2665, %v2660
        %2674 = xla_tuple %v2672, %v2673
        %s2675 = scalar_lea.vmem [#allocation14], 672
        %v2676 = vld [vmem:[%s2675] sm:$0xff]
        %s2677 = scalar_lea.vmem [#allocation15], 672
        %v2678 = vld [vmem:[%s2677] sm:$0xff]
        %2679 = xla_tuple %v2676, %v2678
        %vm2680 = vcmp.gt.s32.totalorder %v2676, %v2672
        %vm2681 = vcmp.eq.s32.totalorder %v2676, %v2672
        %vm2682 = vcmp.lt.s32.totalorder %v2678, %v2673
        %vm2683 = vmand %vm2681, %vm2682
        %vm2684 = vmor %vm2680, %vm2683
        %v2685 = vsel %vm2684, %v2676, %v2672
        %v2686 = vsel %vm2684, %v2678, %v2673
        %2687 = xla_tuple %v2685, %v2686
        %s2688 = scalar_lea.vmem [#allocation14], 680
        %v2689 = vld [vmem:[%s2688] sm:$0xff]
        %s2690 = scalar_lea.vmem [#allocation15], 680
        %v2691 = vld [vmem:[%s2690] sm:$0xff]
        %2692 = xla_tuple %v2689, %v2691
        %vm2693 = vcmp.gt.s32.totalorder %v2689, %v2685
        %vm2694 = vcmp.eq.s32.totalorder %v2689, %v2685
        %vm2695 = vcmp.lt.s32.totalorder %v2691, %v2686
        %vm2696 = vmand %vm2694, %vm2695
        %vm2697 = vmor %vm2693, %vm2696
        %v2698 = vsel %vm2697, %v2689, %v2685
        %v2699 = vsel %vm2697, %v2691, %v2686
        %2700 = xla_tuple %v2698, %v2699
        %s2701 = scalar_lea.vmem [#allocation14], 688
        %v2702 = vld [vmem:[%s2701] sm:$0xff]
        %s2703 = scalar_lea.vmem [#allocation15], 688
        %v2704 = vld [vmem:[%s2703] sm:$0xff]
        %2705 = xla_tuple %v2702, %v2704
        %vm2706 = vcmp.gt.s32.totalorder %v2702, %v2698
        %vm2707 = vcmp.eq.s32.totalorder %v2702, %v2698
        %vm2708 = vcmp.lt.s32.totalorder %v2704, %v2699
        %vm2709 = vmand %vm2707, %vm2708
        %vm2710 = vmor %vm2706, %vm2709
        %v2711 = vsel %vm2710, %v2702, %v2698
        %v2712 = vsel %vm2710, %v2704, %v2699
        %2713 = xla_tuple %v2711, %v2712
        %s2714 = scalar_lea.vmem [#allocation14], 696
        %v2715 = vld [vmem:[%s2714] sm:$0xff]
        %s2716 = scalar_lea.vmem [#allocation15], 696
        %v2717 = vld [vmem:[%s2716] sm:$0xff]
        %2718 = xla_tuple %v2715, %v2717
        %vm2719 = vcmp.gt.s32.totalorder %v2715, %v2711
        %vm2720 = vcmp.eq.s32.totalorder %v2715, %v2711
        %vm2721 = vcmp.lt.s32.totalorder %v2717, %v2712
        %vm2722 = vmand %vm2720, %vm2721
        %vm2723 = vmor %vm2719, %vm2722
        %v2724 = vsel %vm2723, %v2715, %v2711
        %v2725 = vsel %vm2723, %v2717, %v2712
        %2726 = xla_tuple %v2724, %v2725
        %s2727 = scalar_lea.vmem [#allocation14], 704
        %v2728 = vld [vmem:[%s2727] sm:$0xff]
        %s2729 = scalar_lea.vmem [#allocation15], 704
        %v2730 = vld [vmem:[%s2729] sm:$0xff]
        %2731 = xla_tuple %v2728, %v2730
        %vm2732 = vcmp.gt.s32.totalorder %v2728, %v2724
        %vm2733 = vcmp.eq.s32.totalorder %v2728, %v2724
        %vm2734 = vcmp.lt.s32.totalorder %v2730, %v2725
        %vm2735 = vmand %vm2733, %vm2734
        %vm2736 = vmor %vm2732, %vm2735
        %v2737 = vsel %vm2736, %v2728, %v2724
        %v2738 = vsel %vm2736, %v2730, %v2725
        %2739 = xla_tuple %v2737, %v2738
        %s2740 = scalar_lea.vmem [#allocation14], 712
        %v2741 = vld [vmem:[%s2740] sm:$0xff]
        %s2742 = scalar_lea.vmem [#allocation15], 712
        %v2743 = vld [vmem:[%s2742] sm:$0xff]
        %2744 = xla_tuple %v2741, %v2743
        %vm2745 = vcmp.gt.s32.totalorder %v2741, %v2737
        %vm2746 = vcmp.eq.s32.totalorder %v2741, %v2737
        %vm2747 = vcmp.lt.s32.totalorder %v2743, %v2738
        %vm2748 = vmand %vm2746, %vm2747
        %vm2749 = vmor %vm2745, %vm2748
        %v2750 = vsel %vm2749, %v2741, %v2737
        %v2751 = vsel %vm2749, %v2743, %v2738
        %2752 = xla_tuple %v2750, %v2751
        %s2753 = scalar_lea.vmem [#allocation14], 720
        %v2754 = vld [vmem:[%s2753] sm:$0xff]
        %s2755 = scalar_lea.vmem [#allocation15], 720
        %v2756 = vld [vmem:[%s2755] sm:$0xff]
        %2757 = xla_tuple %v2754, %v2756
        %vm2758 = vcmp.gt.s32.totalorder %v2754, %v2750
        %vm2759 = vcmp.eq.s32.totalorder %v2754, %v2750
        %vm2760 = vcmp.lt.s32.totalorder %v2756, %v2751
        %vm2761 = vmand %vm2759, %vm2760
        %vm2762 = vmor %vm2758, %vm2761
        %v2763 = vsel %vm2762, %v2754, %v2750
        %v2764 = vsel %vm2762, %v2756, %v2751
        %2765 = xla_tuple %v2763, %v2764
        %s2766 = scalar_lea.vmem [#allocation14], 728
        %v2767 = vld [vmem:[%s2766] sm:$0xff]
        %s2768 = scalar_lea.vmem [#allocation15], 728
        %v2769 = vld [vmem:[%s2768] sm:$0xff]
        %2770 = xla_tuple %v2767, %v2769
        %vm2771 = vcmp.gt.s32.totalorder %v2767, %v2763
        %vm2772 = vcmp.eq.s32.totalorder %v2767, %v2763
        %vm2773 = vcmp.lt.s32.totalorder %v2769, %v2764
        %vm2774 = vmand %vm2772, %vm2773
        %vm2775 = vmor %vm2771, %vm2774
        %v2776 = vsel %vm2775, %v2767, %v2763
        %v2777 = vsel %vm2775, %v2769, %v2764
        %2778 = xla_tuple %v2776, %v2777
        %s2779 = scalar_lea.vmem [#allocation14], 736
        %v2780 = vld [vmem:[%s2779] sm:$0xff]
        %s2781 = scalar_lea.vmem [#allocation15], 736
        %v2782 = vld [vmem:[%s2781] sm:$0xff]
        %2783 = xla_tuple %v2780, %v2782
        %vm2784 = vcmp.gt.s32.totalorder %v2780, %v2776
        %vm2785 = vcmp.eq.s32.totalorder %v2780, %v2776
        %vm2786 = vcmp.lt.s32.totalorder %v2782, %v2777
        %vm2787 = vmand %vm2785, %vm2786
        %vm2788 = vmor %vm2784, %vm2787
        %v2789 = vsel %vm2788, %v2780, %v2776
        %v2790 = vsel %vm2788, %v2782, %v2777
        %2791 = xla_tuple %v2789, %v2790
        %s2792 = scalar_lea.vmem [#allocation14], 744
        %v2793 = vld [vmem:[%s2792] sm:$0xff]
        %s2794 = scalar_lea.vmem [#allocation15], 744
        %v2795 = vld [vmem:[%s2794] sm:$0xff]
        %2796 = xla_tuple %v2793, %v2795
        %vm2797 = vcmp.gt.s32.totalorder %v2793, %v2789
        %vm2798 = vcmp.eq.s32.totalorder %v2793, %v2789
        %vm2799 = vcmp.lt.s32.totalorder %v2795, %v2790
        %vm2800 = vmand %vm2798, %vm2799
        %vm2801 = vmor %vm2797, %vm2800
        %v2802 = vsel %vm2801, %v2793, %v2789
        %v2803 = vsel %vm2801, %v2795, %v2790
        %2804 = xla_tuple %v2802, %v2803
        %s2805 = scalar_lea.vmem [#allocation14], 752
        %v2806 = vld [vmem:[%s2805] sm:$0xff]
        %s2807 = scalar_lea.vmem [#allocation15], 752
        %v2808 = vld [vmem:[%s2807] sm:$0xff]
        %2809 = xla_tuple %v2806, %v2808
        %vm2810 = vcmp.gt.s32.totalorder %v2806, %v2802
        %vm2811 = vcmp.eq.s32.totalorder %v2806, %v2802
        %vm2812 = vcmp.lt.s32.totalorder %v2808, %v2803
        %vm2813 = vmand %vm2811, %vm2812
        %vm2814 = vmor %vm2810, %vm2813
        %v2815 = vsel %vm2814, %v2806, %v2802
        %v2816 = vsel %vm2814, %v2808, %v2803
        %2817 = xla_tuple %v2815, %v2816
        %s2818 = scalar_lea.vmem [#allocation14], 760
        %v2819 = vld [vmem:[%s2818] sm:$0xff]
        %s2820 = scalar_lea.vmem [#allocation15], 760
        %v2821 = vld [vmem:[%s2820] sm:$0xff]
        %2822 = xla_tuple %v2819, %v2821
        %vm2823 = vcmp.gt.s32.totalorder %v2819, %v2815
        %vm2824 = vcmp.eq.s32.totalorder %v2819, %v2815
        %vm2825 = vcmp.lt.s32.totalorder %v2821, %v2816
        %vm2826 = vmand %vm2824, %vm2825
        %vm2827 = vmor %vm2823, %vm2826
        %v2828 = vsel %vm2827, %v2819, %v2815
        %v2829 = vsel %vm2827, %v2821, %v2816
        %2830 = xla_tuple %v2828, %v2829
        %v2831 = vrot.slane %v2828, 1
        %v2832 = vrot.slane %v2829, 1
        %2833 = xla_tuple %v2831, %v2832
        %vm2834 = vcmp.gt.s32.totalorder %v2831, %v2828
        %vm2835 = vcmp.eq.s32.totalorder %v2831, %v2828
        %vm2836 = vcmp.lt.s32.totalorder %v2832, %v2829
        %vm2837 = vmand %vm2835, %vm2836
        %vm2838 = vmor %vm2834, %vm2837
        %v2839 = vsel %vm2838, %v2831, %v2828
        %v2840 = vsel %vm2838, %v2832, %v2829
        %2841 = xla_tuple %v2839, %v2840
        %v2842 = vrot.slane %v2839, 1
        %v2843 = vrot.slane %v2840, 1
        %2844 = xla_tuple %v2842, %v2843
        %vm2845 = vcmp.gt.s32.totalorder %v2842, %v2839
        %vm2846 = vcmp.eq.s32.totalorder %v2842, %v2839
        %vm2847 = vcmp.lt.s32.totalorder %v2843, %v2840
        %vm2848 = vmand %vm2846, %vm2847
        %vm2849 = vmor %vm2845, %vm2848
        %v2850 = vsel %vm2849, %v2842, %v2839
        %v2851 = vsel %vm2849, %v2843, %v2840
        %2852 = xla_tuple %v2850, %v2851
        %v2853 = vrot.slane %v2850, 1
        %v2854 = vrot.slane %v2851, 1
        %2855 = xla_tuple %v2853, %v2854
        %vm2856 = vcmp.gt.s32.totalorder %v2853, %v2850
        %vm2857 = vcmp.eq.s32.totalorder %v2853, %v2850
        %vm2858 = vcmp.lt.s32.totalorder %v2854, %v2851
        %vm2859 = vmand %vm2857, %vm2858
        %vm2860 = vmor %vm2856, %vm2859
        %v2861 = vsel %vm2860, %v2853, %v2850
        %v2862 = vsel %vm2860, %v2854, %v2851
        %2863 = xla_tuple %v2861, %v2862
        %v2864 = vrot.slane %v2861, 1
        %v2865 = vrot.slane %v2862, 1
        %2866 = xla_tuple %v2864, %v2865
        %vm2867 = vcmp.gt.s32.totalorder %v2864, %v2861
        %vm2868 = vcmp.eq.s32.totalorder %v2864, %v2861
        %vm2869 = vcmp.lt.s32.totalorder %v2865, %v2862
        %vm2870 = vmand %vm2868, %vm2869
        %vm2871 = vmor %vm2867, %vm2870
        %v2872 = vsel %vm2871, %v2864, %v2861
        %v2873 = vsel %vm2871, %v2865, %v2862
        %2874 = xla_tuple %v2872, %v2873
        %v2875 = vrot.slane %v2872, 1
        %v2876 = vrot.slane %v2873, 1
        %2877 = xla_tuple %v2875, %v2876
        %vm2878 = vcmp.gt.s32.totalorder %v2875, %v2872
        %vm2879 = vcmp.eq.s32.totalorder %v2875, %v2872
        %vm2880 = vcmp.lt.s32.totalorder %v2876, %v2873
        %vm2881 = vmand %vm2879, %vm2880
        %vm2882 = vmor %vm2878, %vm2881
        %v2883 = vsel %vm2882, %v2875, %v2872
        %v2884 = vsel %vm2882, %v2876, %v2873
        %2885 = xla_tuple %v2883, %v2884
        %v2886 = vrot.slane %v2883, 1
        %v2887 = vrot.slane %v2884, 1
        %2888 = xla_tuple %v2886, %v2887
        %vm2889 = vcmp.gt.s32.totalorder %v2886, %v2883
        %vm2890 = vcmp.eq.s32.totalorder %v2886, %v2883
        %vm2891 = vcmp.lt.s32.totalorder %v2887, %v2884
        %vm2892 = vmand %vm2890, %vm2891
        %vm2893 = vmor %vm2889, %vm2892
        %v2894 = vsel %vm2893, %v2886, %v2883
        %v2895 = vsel %vm2893, %v2887, %v2884
        %2896 = xla_tuple %v2894, %v2895
        %v2897 = vrot.slane %v2894, 1
        %v2898 = vrot.slane %v2895, 1
        %2899 = xla_tuple %v2897, %v2898
        %vm2900 = vcmp.gt.s32.totalorder %v2897, %v2894
        %vm2901 = vcmp.eq.s32.totalorder %v2897, %v2894
        %vm2902 = vcmp.lt.s32.totalorder %v2898, %v2895
        %vm2903 = vmand %vm2901, %vm2902
        %vm2904 = vmor %vm2900, %vm2903
        %v2905 = vsel %vm2904, %v2897, %v2894
        %v2906 = vsel %vm2904, %v2898, %v2895
        %2907 = xla_tuple %v2905, %v2906
        %s2908 = scalar_lea.vmem [#allocation11], %s1588
        %2909 = vst [vmem:[%s2908] sm:$0x1] %v2905
        %s2910 = scalar_lea.vmem [#allocation13], %s1588
        %2911 = vst [vmem:[%s2910] sm:$0x1] %v2906
        %2912 = xla_tuple %2909, %2911
        %2913 = vxpose.xlu0.b32.start [1/16] %v2906, 128
        %2914 = vxpose.xlu0.b32.cont [2/16] 0.0, 128
        %2915 = vxpose.xlu0.b32.cont [3/16] 0.0, 128
        %2916 = vxpose.xlu0.b32.cont [4/16] 0.0, 128
        %2917 = vxpose.xlu0.b32.cont [5/16] 0.0, 128
        %2918 = vxpose.xlu0.b32.cont [6/16] 0.0, 128
        %2919 = vxpose.xlu0.b32.cont [7/16] 0.0, 128
        %2920 = vxpose.xlu0.b32.cont [8/16] 0.0, 128
        %2921 = vxpose.xlu0.b32.cont [9/16] 0.0, 128
        %2922 = vxpose.xlu0.b32.cont [10/16] 0.0, 128
        %2923 = vxpose.xlu0.b32.cont [11/16] 0.0, 128
        %2924 = vxpose.xlu0.b32.cont [12/16] 0.0, 128
        %2925 = vxpose.xlu0.b32.cont [13/16] 0.0, 128
        %2926 = vxpose.xlu0.b32.cont [14/16] 0.0, 128
        %2927 = vxpose.xlu0.b32.cont [15/16] 0.0, 128
        %2928 = vxpose.xlu0.b32.end [16/16] 0.0, 128
        %v2929 = vpop.trf.xlu0
        %v2930 = vpop.trf.xlu0
        %v2931 = vpop.trf.xlu0
        %v2932 = vpop.trf.xlu0
        %v2933 = vpop.trf.xlu0
        %v2934 = vpop.trf.xlu0
        %v2935 = vpop.trf.xlu0
        %v2936 = vpop.trf.xlu0
        %v2937 = vpop.trf.xlu0
        %v2938 = vpop.trf.xlu0
        %v2939 = vpop.trf.xlu0
        %v2940 = vpop.trf.xlu0
        %v2941 = vpop.trf.xlu0
        %v2942 = vpop.trf.xlu0
        %v2943 = vpop.trf.xlu0
        %v2944 = vpop.trf.xlu0
        %s2945 = vtos %v2929
        %s2946 = sshrl.u32 %s2945, 3
        %p2947 = scmp.lt.s32.totalorder %s2945, 0
        %s2948 = ssub.s32 0, %s2945
        %s2949 = scalar_select %p2947, %s2948, %s2945
        %s2950 = sand.u32 %s2949, 7
        %s2951 = ssub.s32 0, %s2950
        %s2952 = scalar_select %p2947, %s2951, %s2950
        %v2953 = vlaneseq
        %s2954 = smul.u32 %s2952, 128
        %v2955 = vstv %s2954
        %vm2957 = vcmp.eq.s32.totalorder %v2953, %v2955
        %s2958 = smul.addr %s2946, 8
        %s2959 = scalar_lea.vmem [#allocation14], %s2958
        %2960 = vst.msk [vmem:[%s2959] sm:$0xff] %vm2957, 2147483648
        %s2961 = smul.addr %s2946, 8
        %s2962 = scalar_lea.vmem [#allocation15], %s2961
        %2963 = vst.msk [vmem:[%s2962] sm:$0xff] %vm2957, 2147483647
        %2964 = xla_tuple %2960, %2963
        %v2965 = vrot.slane %v2929, 1
        %s2966 = vtos %v2965
        %s2967 = sshrl.u32 %s2966, 3
        %p2968 = scmp.lt.s32.totalorder %s2966, 0
        %s2969 = ssub.s32 0, %s2966
        %s2970 = scalar_select %p2968, %s2969, %s2966
        %s2971 = sand.u32 %s2970, 7
        %s2972 = ssub.s32 0, %s2971
        %s2973 = scalar_select %p2968, %s2972, %s2971
        %v2974 = vlaneseq
        %s2975 = smul.u32 %s2973, 128
        %v2976 = vstv %s2975
        %v2977 = vadd.s32 %v2976, 1
        %vm2978 = vcmp.eq.s32.totalorder %v2974, %v2977
        %s2979 = smul.addr %s2967, 8
        %s2980 = scalar_lea.vmem [#allocation14], %s2979
        %2981 = vst.msk [vmem:[%s2980] sm:$0xff] %vm2978, 2147483648
        %s2982 = smul.addr %s2967, 8
        %s2983 = scalar_lea.vmem [#allocation15], %s2982
        %2984 = vst.msk [vmem:[%s2983] sm:$0xff] %vm2978, 2147483647
        %2985 = xla_tuple %2981, %2984
        %v2986 = vrot.slane %v2965, 1
        %s2987 = vtos %v2930
        %s2988 = sshrl.u32 %s2987, 3
        %p2989 = scmp.lt.s32.totalorder %s2987, 0
        %s2990 = ssub.s32 0, %s2987
        %s2991 = scalar_select %p2989, %s2990, %s2987
        %s2992 = sand.u32 %s2991, 7
        %s2993 = ssub.s32 0, %s2992
        %s2994 = scalar_select %p2989, %s2993, %s2992
        %v2995 = vlaneseq
        %s2996 = smul.u32 %s2994, 128
        %v2997 = vstv %s2996
        %v2998 = vadd.s32 %v2997, 8
        %vm2999 = vcmp.eq.s32.totalorder %v2995, %v2998
        %s3000 = smul.addr %s2988, 8
        %s3001 = scalar_lea.vmem [#allocation14], %s3000
        %3002 = vst.msk [vmem:[%s3001] sm:$0xff] %vm2999, 2147483648
        %s3003 = smul.addr %s2988, 8
        %s3004 = scalar_lea.vmem [#allocation15], %s3003
        %3005 = vst.msk [vmem:[%s3004] sm:$0xff] %vm2999, 2147483647
        %3006 = xla_tuple %3002, %3005
        %v3007 = vrot.slane %v2930, 1
        %s3008 = vtos %v3007
        %s3009 = sshrl.u32 %s3008, 3
        %p3010 = scmp.lt.s32.totalorder %s3008, 0
        %s3011 = ssub.s32 0, %s3008
        %s3012 = scalar_select %p3010, %s3011, %s3008
        %s3013 = sand.u32 %s3012, 7
        %s3014 = ssub.s32 0, %s3013
        %s3015 = scalar_select %p3010, %s3014, %s3013
        %v3016 = vlaneseq
        %s3017 = smul.u32 %s3015, 128
        %v3018 = vstv %s3017
        %v3019 = vadd.s32 %v3018, 9
        %vm3020 = vcmp.eq.s32.totalorder %v3016, %v3019
        %s3021 = smul.addr %s3009, 8
        %s3022 = scalar_lea.vmem [#allocation14], %s3021
        %3023 = vst.msk [vmem:[%s3022] sm:$0xff] %vm3020, 2147483648
        %s3024 = smul.addr %s3009, 8
        %s3025 = scalar_lea.vmem [#allocation15], %s3024
        %3026 = vst.msk [vmem:[%s3025] sm:$0xff] %vm3020, 2147483647
        %3027 = xla_tuple %3023, %3026
        %v3028 = vrot.slane %v3007, 1
        %s3029 = vtos %v2931
        %s3030 = sshrl.u32 %s3029, 3
        %p3031 = scmp.lt.s32.totalorder %s3029, 0
        %s3032 = ssub.s32 0, %s3029
        %s3033 = scalar_select %p3031, %s3032, %s3029
        %s3034 = sand.u32 %s3033, 7
        %s3035 = ssub.s32 0, %s3034
        %s3036 = scalar_select %p3031, %s3035, %s3034
        %v3037 = vlaneseq
        %s3038 = smul.u32 %s3036, 128
        %v3039 = vstv %s3038
        %v3040 = vadd.s32 %v3039, 16
        %vm3041 = vcmp.eq.s32.totalorder %v3037, %v3040
        %s3042 = smul.addr %s3030, 8
        %s3043 = scalar_lea.vmem [#allocation14], %s3042
        %3044 = vst.msk [vmem:[%s3043] sm:$0xff] %vm3041, 2147483648
        %s3045 = smul.addr %s3030, 8
        %s3046 = scalar_lea.vmem [#allocation15], %s3045
        %3047 = vst.msk [vmem:[%s3046] sm:$0xff] %vm3041, 2147483647
        %3048 = xla_tuple %3044, %3047
        %v3049 = vrot.slane %v2931, 1
        %s3050 = vtos %v3049
        %s3051 = sshrl.u32 %s3050, 3
        %p3052 = scmp.lt.s32.totalorder %s3050, 0
        %s3053 = ssub.s32 0, %s3050
        %s3054 = scalar_select %p3052, %s3053, %s3050
        %s3055 = sand.u32 %s3054, 7
        %s3056 = ssub.s32 0, %s3055
        %s3057 = scalar_select %p3052, %s3056, %s3055
        %v3058 = vlaneseq
        %s3059 = smul.u32 %s3057, 128
        %v3060 = vstv %s3059
        %v3061 = vadd.s32 %v3060, 17
        %vm3062 = vcmp.eq.s32.totalorder %v3058, %v3061
        %s3063 = smul.addr %s3051, 8
        %s3064 = scalar_lea.vmem [#allocation14], %s3063
        %3065 = vst.msk [vmem:[%s3064] sm:$0xff] %vm3062, 2147483648
        %s3066 = smul.addr %s3051, 8
        %s3067 = scalar_lea.vmem [#allocation15], %s3066
        %3068 = vst.msk [vmem:[%s3067] sm:$0xff] %vm3062, 2147483647
        %3069 = xla_tuple %3065, %3068
        %v3070 = vrot.slane %v3049, 1
        %s3071 = vtos %v2932
        %s3072 = sshrl.u32 %s3071, 3
        %p3073 = scmp.lt.s32.totalorder %s3071, 0
        %s3074 = ssub.s32 0, %s3071
        %s3075 = scalar_select %p3073, %s3074, %s3071
        %s3076 = sand.u32 %s3075, 7
        %s3077 = ssub.s32 0, %s3076
        %s3078 = scalar_select %p3073, %s3077, %s3076
        %v3079 = vlaneseq
        %s3080 = smul.u32 %s3078, 128
        %v3081 = vstv %s3080
        %v3082 = vadd.s32 %v3081, 24
        %vm3083 = vcmp.eq.s32.totalorder %v3079, %v3082
        %s3084 = smul.addr %s3072, 8
        %s3085 = scalar_lea.vmem [#allocation14], %s3084
        %3086 = vst.msk [vmem:[%s3085] sm:$0xff] %vm3083, 2147483648
        %s3087 = smul.addr %s3072, 8
        %s3088 = scalar_lea.vmem [#allocation15], %s3087
        %3089 = vst.msk [vmem:[%s3088] sm:$0xff] %vm3083, 2147483647
        %3090 = xla_tuple %3086, %3089
        %v3091 = vrot.slane %v2932, 1
        %s3092 = vtos %v3091
        %s3093 = sshrl.u32 %s3092, 3
        %p3094 = scmp.lt.s32.totalorder %s3092, 0
        %s3095 = ssub.s32 0, %s3092
        %s3096 = scalar_select %p3094, %s3095, %s3092
        %s3097 = sand.u32 %s3096, 7
        %s3098 = ssub.s32 0, %s3097
        %s3099 = scalar_select %p3094, %s3098, %s3097
        %v3100 = vlaneseq
        %s3101 = smul.u32 %s3099, 128
        %v3102 = vstv %s3101
        %v3103 = vadd.s32 %v3102, 25
        %vm3104 = vcmp.eq.s32.totalorder %v3100, %v3103
        %s3105 = smul.addr %s3093, 8
        %s3106 = scalar_lea.vmem [#allocation14], %s3105
        %3107 = vst.msk [vmem:[%s3106] sm:$0xff] %vm3104, 2147483648
        %s3108 = smul.addr %s3093, 8
        %s3109 = scalar_lea.vmem [#allocation15], %s3108
        %3110 = vst.msk [vmem:[%s3109] sm:$0xff] %vm3104, 2147483647
        %3111 = xla_tuple %3107, %3110
        %v3112 = vrot.slane %v3091, 1
        %s3113 = vtos %v2933
        %s3114 = sshrl.u32 %s3113, 3
        %p3115 = scmp.lt.s32.totalorder %s3113, 0
        %s3116 = ssub.s32 0, %s3113
        %s3117 = scalar_select %p3115, %s3116, %s3113
        %s3118 = sand.u32 %s3117, 7
        %s3119 = ssub.s32 0, %s3118
        %s3120 = scalar_select %p3115, %s3119, %s3118
        %v3121 = vlaneseq
        %s3122 = smul.u32 %s3120, 128
        %v3123 = vstv %s3122
        %v3124 = vadd.s32 %v3123, 32
        %vm3125 = vcmp.eq.s32.totalorder %v3121, %v3124
        %s3126 = smul.addr %s3114, 8
        %s3127 = scalar_lea.vmem [#allocation14], %s3126
        %3128 = vst.msk [vmem:[%s3127] sm:$0xff] %vm3125, 2147483648
        %s3129 = smul.addr %s3114, 8
        %s3130 = scalar_lea.vmem [#allocation15], %s3129
        %3131 = vst.msk [vmem:[%s3130] sm:$0xff] %vm3125, 2147483647
        %3132 = xla_tuple %3128, %3131
        %v3133 = vrot.slane %v2933, 1
        %s3134 = vtos %v3133
        %s3135 = sshrl.u32 %s3134, 3
        %p3136 = scmp.lt.s32.totalorder %s3134, 0
        %s3137 = ssub.s32 0, %s3134
        %s3138 = scalar_select %p3136, %s3137, %s3134
        %s3139 = sand.u32 %s3138, 7
        %s3140 = ssub.s32 0, %s3139
        %s3141 = scalar_select %p3136, %s3140, %s3139
        %v3142 = vlaneseq
        %s3143 = smul.u32 %s3141, 128
        %v3144 = vstv %s3143
        %v3145 = vadd.s32 %v3144, 33
        %vm3146 = vcmp.eq.s32.totalorder %v3142, %v3145
        %s3147 = smul.addr %s3135, 8
        %s3148 = scalar_lea.vmem [#allocation14], %s3147
        %3149 = vst.msk [vmem:[%s3148] sm:$0xff] %vm3146, 2147483648
        %s3150 = smul.addr %s3135, 8
        %s3151 = scalar_lea.vmem [#allocation15], %s3150
        %3152 = vst.msk [vmem:[%s3151] sm:$0xff] %vm3146, 2147483647
        %3153 = xla_tuple %3149, %3152
        %v3154 = vrot.slane %v3133, 1
        %s3155 = vtos %v2934
        %s3156 = sshrl.u32 %s3155, 3
        %p3157 = scmp.lt.s32.totalorder %s3155, 0
        %s3158 = ssub.s32 0, %s3155
        %s3159 = scalar_select %p3157, %s3158, %s3155
        %s3160 = sand.u32 %s3159, 7
        %s3161 = ssub.s32 0, %s3160
        %s3162 = scalar_select %p3157, %s3161, %s3160
        %v3163 = vlaneseq
        %s3164 = smul.u32 %s3162, 128
        %v3165 = vstv %s3164
        %v3166 = vadd.s32 %v3165, 40
        %vm3167 = vcmp.eq.s32.totalorder %v3163, %v3166
        %s3168 = smul.addr %s3156, 8
        %s3169 = scalar_lea.vmem [#allocation14], %s3168
        %3170 = vst.msk [vmem:[%s3169] sm:$0xff] %vm3167, 2147483648
        %s3171 = smul.addr %s3156, 8
        %s3172 = scalar_lea.vmem [#allocation15], %s3171
        %3173 = vst.msk [vmem:[%s3172] sm:$0xff] %vm3167, 2147483647
        %3174 = xla_tuple %3170, %3173
        %v3175 = vrot.slane %v2934, 1
        %s3176 = vtos %v3175
        %s3177 = sshrl.u32 %s3176, 3
        %p3178 = scmp.lt.s32.totalorder %s3176, 0
        %s3179 = ssub.s32 0, %s3176
        %s3180 = scalar_select %p3178, %s3179, %s3176
        %s3181 = sand.u32 %s3180, 7
        %s3182 = ssub.s32 0, %s3181
        %s3183 = scalar_select %p3178, %s3182, %s3181
        %v3184 = vlaneseq
        %s3185 = smul.u32 %s3183, 128
        %v3186 = vstv %s3185
        %v3187 = vadd.s32 %v3186, 41
        %vm3188 = vcmp.eq.s32.totalorder %v3184, %v3187
        %s3189 = smul.addr %s3177, 8
        %s3190 = scalar_lea.vmem [#allocation14], %s3189
        %3191 = vst.msk [vmem:[%s3190] sm:$0xff] %vm3188, 2147483648
        %s3192 = smul.addr %s3177, 8
        %s3193 = scalar_lea.vmem [#allocation15], %s3192
        %3194 = vst.msk [vmem:[%s3193] sm:$0xff] %vm3188, 2147483647
        %3195 = xla_tuple %3191, %3194
        %v3196 = vrot.slane %v3175, 1
        %s3197 = vtos %v2935
        %s3198 = sshrl.u32 %s3197, 3
        %p3199 = scmp.lt.s32.totalorder %s3197, 0
        %s3200 = ssub.s32 0, %s3197
        %s3201 = scalar_select %p3199, %s3200, %s3197
        %s3202 = sand.u32 %s3201, 7
        %s3203 = ssub.s32 0, %s3202
        %s3204 = scalar_select %p3199, %s3203, %s3202
        %v3205 = vlaneseq
        %s3206 = smul.u32 %s3204, 128
        %v3207 = vstv %s3206
        %v3208 = vadd.s32 %v3207, 48
        %vm3209 = vcmp.eq.s32.totalorder %v3205, %v3208
        %s3210 = smul.addr %s3198, 8
        %s3211 = scalar_lea.vmem [#allocation14], %s3210
        %3212 = vst.msk [vmem:[%s3211] sm:$0xff] %vm3209, 2147483648
        %s3213 = smul.addr %s3198, 8
        %s3214 = scalar_lea.vmem [#allocation15], %s3213
        %3215 = vst.msk [vmem:[%s3214] sm:$0xff] %vm3209, 2147483647
        %3216 = xla_tuple %3212, %3215
        %v3217 = vrot.slane %v2935, 1
        %s3218 = vtos %v3217
        %s3219 = sshrl.u32 %s3218, 3
        %p3220 = scmp.lt.s32.totalorder %s3218, 0
        %s3221 = ssub.s32 0, %s3218
        %s3222 = scalar_select %p3220, %s3221, %s3218
        %s3223 = sand.u32 %s3222, 7
        %s3224 = ssub.s32 0, %s3223
        %s3225 = scalar_select %p3220, %s3224, %s3223
        %v3226 = vlaneseq
        %s3227 = smul.u32 %s3225, 128
        %v3228 = vstv %s3227
        %v3229 = vadd.s32 %v3228, 49
        %vm3230 = vcmp.eq.s32.totalorder %v3226, %v3229
        %s3231 = smul.addr %s3219, 8
        %s3232 = scalar_lea.vmem [#allocation14], %s3231
        %3233 = vst.msk [vmem:[%s3232] sm:$0xff] %vm3230, 2147483648
        %s3234 = smul.addr %s3219, 8
        %s3235 = scalar_lea.vmem [#allocation15], %s3234
        %3236 = vst.msk [vmem:[%s3235] sm:$0xff] %vm3230, 2147483647
        %3237 = xla_tuple %3233, %3236
        %v3238 = vrot.slane %v3217, 1
        %s3239 = vtos %v2936
        %s3240 = sshrl.u32 %s3239, 3
        %p3241 = scmp.lt.s32.totalorder %s3239, 0
        %s3242 = ssub.s32 0, %s3239
        %s3243 = scalar_select %p3241, %s3242, %s3239
        %s3244 = sand.u32 %s3243, 7
        %s3245 = ssub.s32 0, %s3244
        %s3246 = scalar_select %p3241, %s3245, %s3244
        %v3247 = vlaneseq
        %s3248 = smul.u32 %s3246, 128
        %v3249 = vstv %s3248
        %v3250 = vadd.s32 %v3249, 56
        %vm3251 = vcmp.eq.s32.totalorder %v3247, %v3250
        %s3252 = smul.addr %s3240, 8
        %s3253 = scalar_lea.vmem [#allocation14], %s3252
        %3254 = vst.msk [vmem:[%s3253] sm:$0xff] %vm3251, 2147483648
        %s3255 = smul.addr %s3240, 8
        %s3256 = scalar_lea.vmem [#allocation15], %s3255
        %3257 = vst.msk [vmem:[%s3256] sm:$0xff] %vm3251, 2147483647
        %3258 = xla_tuple %3254, %3257
        %v3259 = vrot.slane %v2936, 1
        %s3260 = vtos %v3259
        %s3261 = sshrl.u32 %s3260, 3
        %p3262 = scmp.lt.s32.totalorder %s3260, 0
        %s3263 = ssub.s32 0, %s3260
        %s3264 = scalar_select %p3262, %s3263, %s3260
        %s3265 = sand.u32 %s3264, 7
        %s3266 = ssub.s32 0, %s3265
        %s3267 = scalar_select %p3262, %s3266, %s3265
        %v3268 = vlaneseq
        %s3269 = smul.u32 %s3267, 128
        %v3270 = vstv %s3269
        %v3271 = vadd.s32 %v3270, 57
        %vm3272 = vcmp.eq.s32.totalorder %v3268, %v3271
        %s3273 = smul.addr %s3261, 8
        %s3274 = scalar_lea.vmem [#allocation14], %s3273
        %3275 = vst.msk [vmem:[%s3274] sm:$0xff] %vm3272, 2147483648
        %s3276 = smul.addr %s3261, 8
        %s3277 = scalar_lea.vmem [#allocation15], %s3276
        %3278 = vst.msk [vmem:[%s3277] sm:$0xff] %vm3272, 2147483647
        %3279 = xla_tuple %3275, %3278
        %v3280 = vrot.slane %v3259, 1
        %s3281 = vtos %v2937
        %s3282 = sshrl.u32 %s3281, 3
        %p3283 = scmp.lt.s32.totalorder %s3281, 0
        %s3284 = ssub.s32 0, %s3281
        %s3285 = scalar_select %p3283, %s3284, %s3281
        %s3286 = sand.u32 %s3285, 7
        %s3287 = ssub.s32 0, %s3286
        %s3288 = scalar_select %p3283, %s3287, %s3286
        %v3289 = vlaneseq
        %s3290 = smul.u32 %s3288, 128
        %v3291 = vstv %s3290
        %v3292 = vadd.s32 %v3291, 64
        %vm3293 = vcmp.eq.s32.totalorder %v3289, %v3292
        %s3294 = smul.addr %s3282, 8
        %s3295 = scalar_lea.vmem [#allocation14], %s3294
        %3296 = vst.msk [vmem:[%s3295] sm:$0xff] %vm3293, 2147483648
        %s3297 = smul.addr %s3282, 8
        %s3298 = scalar_lea.vmem [#allocation15], %s3297
        %3299 = vst.msk [vmem:[%s3298] sm:$0xff] %vm3293, 2147483647
        %3300 = xla_tuple %3296, %3299
        %v3301 = vrot.slane %v2937, 1
        %s3302 = vtos %v3301
        %s3303 = sshrl.u32 %s3302, 3
        %p3304 = scmp.lt.s32.totalorder %s3302, 0
        %s3305 = ssub.s32 0, %s3302
        %s3306 = scalar_select %p3304, %s3305, %s3302
        %s3307 = sand.u32 %s3306, 7
        %s3308 = ssub.s32 0, %s3307
        %s3309 = scalar_select %p3304, %s3308, %s3307
        %v3310 = vlaneseq
        %s3311 = smul.u32 %s3309, 128
        %v3312 = vstv %s3311
        %v3313 = vadd.s32 %v3312, 65
        %vm3314 = vcmp.eq.s32.totalorder %v3310, %v3313
        %s3315 = smul.addr %s3303, 8
        %s3316 = scalar_lea.vmem [#allocation14], %s3315
        %3317 = vst.msk [vmem:[%s3316] sm:$0xff] %vm3314, 2147483648
        %s3318 = smul.addr %s3303, 8
        %s3319 = scalar_lea.vmem [#allocation15], %s3318
        %3320 = vst.msk [vmem:[%s3319] sm:$0xff] %vm3314, 2147483647
        %3321 = xla_tuple %3317, %3320
        %v3322 = vrot.slane %v3301, 1
        %s3323 = vtos %v2938
        %s3324 = sshrl.u32 %s3323, 3
        %p3325 = scmp.lt.s32.totalorder %s3323, 0
        %s3326 = ssub.s32 0, %s3323
        %s3327 = scalar_select %p3325, %s3326, %s3323
        %s3328 = sand.u32 %s3327, 7
        %s3329 = ssub.s32 0, %s3328
        %s3330 = scalar_select %p3325, %s3329, %s3328
        %v3331 = vlaneseq
        %s3332 = smul.u32 %s3330, 128
        %v3333 = vstv %s3332
        %v3334 = vadd.s32 %v3333, 72
        %vm3335 = vcmp.eq.s32.totalorder %v3331, %v3334
        %s3336 = smul.addr %s3324, 8
        %s3337 = scalar_lea.vmem [#allocation14], %s3336
        %3338 = vst.msk [vmem:[%s3337] sm:$0xff] %vm3335, 2147483648
        %s3339 = smul.addr %s3324, 8
        %s3340 = scalar_lea.vmem [#allocation15], %s3339
        %3341 = vst.msk [vmem:[%s3340] sm:$0xff] %vm3335, 2147483647
        %3342 = xla_tuple %3338, %3341
        %v3343 = vrot.slane %v2938, 1
        %s3344 = vtos %v3343
        %s3345 = sshrl.u32 %s3344, 3
        %p3346 = scmp.lt.s32.totalorder %s3344, 0
        %s3347 = ssub.s32 0, %s3344
        %s3348 = scalar_select %p3346, %s3347, %s3344
        %s3349 = sand.u32 %s3348, 7
        %s3350 = ssub.s32 0, %s3349
        %s3351 = scalar_select %p3346, %s3350, %s3349
        %v3352 = vlaneseq
        %s3353 = smul.u32 %s3351, 128
        %v3354 = vstv %s3353
        %v3355 = vadd.s32 %v3354, 73
        %vm3356 = vcmp.eq.s32.totalorder %v3352, %v3355
        %s3357 = smul.addr %s3345, 8
        %s3358 = scalar_lea.vmem [#allocation14], %s3357
        %3359 = vst.msk [vmem:[%s3358] sm:$0xff] %vm3356, 2147483648
        %s3360 = smul.addr %s3345, 8
        %s3361 = scalar_lea.vmem [#allocation15], %s3360
        %3362 = vst.msk [vmem:[%s3361] sm:$0xff] %vm3356, 2147483647
        %3363 = xla_tuple %3359, %3362
        %v3364 = vrot.slane %v3343, 1
        %s3365 = vtos %v2939
        %s3366 = sshrl.u32 %s3365, 3
        %p3367 = scmp.lt.s32.totalorder %s3365, 0
        %s3368 = ssub.s32 0, %s3365
        %s3369 = scalar_select %p3367, %s3368, %s3365
        %s3370 = sand.u32 %s3369, 7
        %s3371 = ssub.s32 0, %s3370
        %s3372 = scalar_select %p3367, %s3371, %s3370
        %v3373 = vlaneseq
        %s3374 = smul.u32 %s3372, 128
        %v3375 = vstv %s3374
        %v3376 = vadd.s32 %v3375, 80
        %vm3377 = vcmp.eq.s32.totalorder %v3373, %v3376
        %s3378 = smul.addr %s3366, 8
        %s3379 = scalar_lea.vmem [#allocation14], %s3378
        %3380 = vst.msk [vmem:[%s3379] sm:$0xff] %vm3377, 2147483648
        %s3381 = smul.addr %s3366, 8
        %s3382 = scalar_lea.vmem [#allocation15], %s3381
        %3383 = vst.msk [vmem:[%s3382] sm:$0xff] %vm3377, 2147483647
        %3384 = xla_tuple %3380, %3383
        %v3385 = vrot.slane %v2939, 1
        %s3386 = vtos %v3385
        %s3387 = sshrl.u32 %s3386, 3
        %p3388 = scmp.lt.s32.totalorder %s3386, 0
        %s3389 = ssub.s32 0, %s3386
        %s3390 = scalar_select %p3388, %s3389, %s3386
        %s3391 = sand.u32 %s3390, 7
        %s3392 = ssub.s32 0, %s3391
        %s3393 = scalar_select %p3388, %s3392, %s3391
        %v3394 = vlaneseq
        %s3395 = smul.u32 %s3393, 128
        %v3396 = vstv %s3395
        %v3397 = vadd.s32 %v3396, 81
        %vm3398 = vcmp.eq.s32.totalorder %v3394, %v3397
        %s3399 = smul.addr %s3387, 8
        %s3400 = scalar_lea.vmem [#allocation14], %s3399
        %3401 = vst.msk [vmem:[%s3400] sm:$0xff] %vm3398, 2147483648
        %s3402 = smul.addr %s3387, 8
        %s3403 = scalar_lea.vmem [#allocation15], %s3402
        %3404 = vst.msk [vmem:[%s3403] sm:$0xff] %vm3398, 2147483647
        %3405 = xla_tuple %3401, %3404
        %v3406 = vrot.slane %v3385, 1
        %s3407 = vtos %v2940
        %s3408 = sshrl.u32 %s3407, 3
        %p3409 = scmp.lt.s32.totalorder %s3407, 0
        %s3410 = ssub.s32 0, %s3407
        %s3411 = scalar_select %p3409, %s3410, %s3407
        %s3412 = sand.u32 %s3411, 7
        %s3413 = ssub.s32 0, %s3412
        %s3414 = scalar_select %p3409, %s3413, %s3412
        %v3415 = vlaneseq
        %s3416 = smul.u32 %s3414, 128
        %v3417 = vstv %s3416
        %v3418 = vadd.s32 %v3417, 88
        %vm3419 = vcmp.eq.s32.totalorder %v3415, %v3418
        %s3420 = smul.addr %s3408, 8
        %s3421 = scalar_lea.vmem [#allocation14], %s3420
        %3422 = vst.msk [vmem:[%s3421] sm:$0xff] %vm3419, 2147483648
        %s3423 = smul.addr %s3408, 8
        %s3424 = scalar_lea.vmem [#allocation15], %s3423
        %3425 = vst.msk [vmem:[%s3424] sm:$0xff] %vm3419, 2147483647
        %3426 = xla_tuple %3422, %3425
        %v3427 = vrot.slane %v2940, 1
        %s3428 = vtos %v3427
        %s3429 = sshrl.u32 %s3428, 3
        %p3430 = scmp.lt.s32.totalorder %s3428, 0
        %s3431 = ssub.s32 0, %s3428
        %s3432 = scalar_select %p3430, %s3431, %s3428
        %s3433 = sand.u32 %s3432, 7
        %s3434 = ssub.s32 0, %s3433
        %s3435 = scalar_select %p3430, %s3434, %s3433
        %v3436 = vlaneseq
        %s3437 = smul.u32 %s3435, 128
        %v3438 = vstv %s3437
        %v3439 = vadd.s32 %v3438, 89
        %vm3440 = vcmp.eq.s32.totalorder %v3436, %v3439
        %s3441 = smul.addr %s3429, 8
        %s3442 = scalar_lea.vmem [#allocation14], %s3441
        %3443 = vst.msk [vmem:[%s3442] sm:$0xff] %vm3440, 2147483648
        %s3444 = smul.addr %s3429, 8
        %s3445 = scalar_lea.vmem [#allocation15], %s3444
        %3446 = vst.msk [vmem:[%s3445] sm:$0xff] %vm3440, 2147483647
        %3447 = xla_tuple %3443, %3446
        %v3448 = vrot.slane %v3427, 1
        %s3449 = vtos %v2941
        %s3450 = sshrl.u32 %s3449, 3
        %p3451 = scmp.lt.s32.totalorder %s3449, 0
        %s3452 = ssub.s32 0, %s3449
        %s3453 = scalar_select %p3451, %s3452, %s3449
        %s3454 = sand.u32 %s3453, 7
        %s3455 = ssub.s32 0, %s3454
        %s3456 = scalar_select %p3451, %s3455, %s3454
        %v3457 = vlaneseq
        %s3458 = smul.u32 %s3456, 128
        %v3459 = vstv %s3458
        %v3460 = vadd.s32 %v3459, 96
        %vm3461 = vcmp.eq.s32.totalorder %v3457, %v3460
        %s3462 = smul.addr %s3450, 8
        %s3463 = scalar_lea.vmem [#allocation14], %s3462
        %3464 = vst.msk [vmem:[%s3463] sm:$0xff] %vm3461, 2147483648
        %s3465 = smul.addr %s3450, 8
        %s3466 = scalar_lea.vmem [#allocation15], %s3465
        %3467 = vst.msk [vmem:[%s3466] sm:$0xff] %vm3461, 2147483647
        %3468 = xla_tuple %3464, %3467
        %v3469 = vrot.slane %v2941, 1
        %s3470 = vtos %v3469
        %s3471 = sshrl.u32 %s3470, 3
        %p3472 = scmp.lt.s32.totalorder %s3470, 0
        %s3473 = ssub.s32 0, %s3470
        %s3474 = scalar_select %p3472, %s3473, %s3470
        %s3475 = sand.u32 %s3474, 7
        %s3476 = ssub.s32 0, %s3475
        %s3477 = scalar_select %p3472, %s3476, %s3475
        %v3478 = vlaneseq
        %s3479 = smul.u32 %s3477, 128
        %v3480 = vstv %s3479
        %v3481 = vadd.s32 %v3480, 97
        %vm3482 = vcmp.eq.s32.totalorder %v3478, %v3481
        %s3483 = smul.addr %s3471, 8
        %s3484 = scalar_lea.vmem [#allocation14], %s3483
        %3485 = vst.msk [vmem:[%s3484] sm:$0xff] %vm3482, 2147483648
        %s3486 = smul.addr %s3471, 8
        %s3487 = scalar_lea.vmem [#allocation15], %s3486
        %3488 = vst.msk [vmem:[%s3487] sm:$0xff] %vm3482, 2147483647
        %3489 = xla_tuple %3485, %3488
        %v3490 = vrot.slane %v3469, 1
        %s3491 = vtos %v2942
        %s3492 = sshrl.u32 %s3491, 3
        %p3493 = scmp.lt.s32.totalorder %s3491, 0
        %s3494 = ssub.s32 0, %s3491
        %s3495 = scalar_select %p3493, %s3494, %s3491
        %s3496 = sand.u32 %s3495, 7
        %s3497 = ssub.s32 0, %s3496
        %s3498 = scalar_select %p3493, %s3497, %s3496
        %v3499 = vlaneseq
        %s3500 = smul.u32 %s3498, 128
        %v3501 = vstv %s3500
        %v3502 = vadd.s32 %v3501, 104
        %vm3503 = vcmp.eq.s32.totalorder %v3499, %v3502
        %s3504 = smul.addr %s3492, 8
        %s3505 = scalar_lea.vmem [#allocation14], %s3504
        %3506 = vst.msk [vmem:[%s3505] sm:$0xff] %vm3503, 2147483648
        %s3507 = smul.addr %s3492, 8
        %s3508 = scalar_lea.vmem [#allocation15], %s3507
        %3509 = vst.msk [vmem:[%s3508] sm:$0xff] %vm3503, 2147483647
        %3510 = xla_tuple %3506, %3509
        %v3511 = vrot.slane %v2942, 1
        %s3512 = vtos %v3511
        %s3513 = sshrl.u32 %s3512, 3
        %p3514 = scmp.lt.s32.totalorder %s3512, 0
        %s3515 = ssub.s32 0, %s3512
        %s3516 = scalar_select %p3514, %s3515, %s3512
        %s3517 = sand.u32 %s3516, 7
        %s3518 = ssub.s32 0, %s3517
        %s3519 = scalar_select %p3514, %s3518, %s3517
        %v3520 = vlaneseq
        %s3521 = smul.u32 %s3519, 128
        %v3522 = vstv %s3521
        %v3523 = vadd.s32 %v3522, 105
        %vm3524 = vcmp.eq.s32.totalorder %v3520, %v3523
        %s3525 = smul.addr %s3513, 8
        %s3526 = scalar_lea.vmem [#allocation14], %s3525
        %3527 = vst.msk [vmem:[%s3526] sm:$0xff] %vm3524, 2147483648
        %s3528 = smul.addr %s3513, 8
        %s3529 = scalar_lea.vmem [#allocation15], %s3528
        %3530 = vst.msk [vmem:[%s3529] sm:$0xff] %vm3524, 2147483647
        %3531 = xla_tuple %3527, %3530
        %v3532 = vrot.slane %v3511, 1
        %s3533 = vtos %v2943
        %s3534 = sshrl.u32 %s3533, 3
        %p3535 = scmp.lt.s32.totalorder %s3533, 0
        %s3536 = ssub.s32 0, %s3533
        %s3537 = scalar_select %p3535, %s3536, %s3533
        %s3538 = sand.u32 %s3537, 7
        %s3539 = ssub.s32 0, %s3538
        %s3540 = scalar_select %p3535, %s3539, %s3538
        %v3541 = vlaneseq
        %s3542 = smul.u32 %s3540, 128
        %v3543 = vstv %s3542
        %v3544 = vadd.s32 %v3543, 112
        %vm3545 = vcmp.eq.s32.totalorder %v3541, %v3544
        %s3546 = smul.addr %s3534, 8
        %s3547 = scalar_lea.vmem [#allocation14], %s3546
        %3548 = vst.msk [vmem:[%s3547] sm:$0xff] %vm3545, 2147483648
        %s3549 = smul.addr %s3534, 8
        %s3550 = scalar_lea.vmem [#allocation15], %s3549
        %3551 = vst.msk [vmem:[%s3550] sm:$0xff] %vm3545, 2147483647
        %3552 = xla_tuple %3548, %3551
        %v3553 = vrot.slane %v2943, 1
        %s3554 = vtos %v3553
        %s3555 = sshrl.u32 %s3554, 3
        %p3556 = scmp.lt.s32.totalorder %s3554, 0
        %s3557 = ssub.s32 0, %s3554
        %s3558 = scalar_select %p3556, %s3557, %s3554
        %s3559 = sand.u32 %s3558, 7
        %s3560 = ssub.s32 0, %s3559
        %s3561 = scalar_select %p3556, %s3560, %s3559
        %v3562 = vlaneseq
        %s3563 = smul.u32 %s3561, 128
        %v3564 = vstv %s3563
        %v3565 = vadd.s32 %v3564, 113
        %vm3566 = vcmp.eq.s32.totalorder %v3562, %v3565
        %s3567 = smul.addr %s3555, 8
        %s3568 = scalar_lea.vmem [#allocation14], %s3567
        %3569 = vst.msk [vmem:[%s3568] sm:$0xff] %vm3566, 2147483648
        %s3570 = smul.addr %s3555, 8
        %s3571 = scalar_lea.vmem [#allocation15], %s3570
        %3572 = vst.msk [vmem:[%s3571] sm:$0xff] %vm3566, 2147483647
        %3573 = xla_tuple %3569, %3572
        %v3574 = vrot.slane %v3553, 1
        %s3575 = vtos %v2944
        %s3576 = sshrl.u32 %s3575, 3
        %p3577 = scmp.lt.s32.totalorder %s3575, 0
        %s3578 = ssub.s32 0, %s3575
        %s3579 = scalar_select %p3577, %s3578, %s3575
        %s3580 = sand.u32 %s3579, 7
        %s3581 = ssub.s32 0, %s3580
        %s3582 = scalar_select %p3577, %s3581, %s3580
        %v3583 = vlaneseq
        %s3584 = smul.u32 %s3582, 128
        %v3585 = vstv %s3584
        %v3586 = vadd.s32 %v3585, 120
        %vm3587 = vcmp.eq.s32.totalorder %v3583, %v3586
        %s3588 = smul.addr %s3576, 8
        %s3589 = scalar_lea.vmem [#allocation14], %s3588
        %3590 = vst.msk [vmem:[%s3589] sm:$0xff] %vm3587, 2147483648
        %s3591 = smul.addr %s3576, 8
        %s3592 = scalar_lea.vmem [#allocation15], %s3591
        %3593 = vst.msk [vmem:[%s3592] sm:$0xff] %vm3587, 2147483647
        %3594 = xla_tuple %3590, %3593
        %v3595 = vrot.slane %v2944, 1
        %s3596 = vtos %v3595
        %s3597 = sshrl.u32 %s3596, 3
        %p3598 = scmp.lt.s32.totalorder %s3596, 0
        %s3599 = ssub.s32 0, %s3596
        %s3600 = scalar_select %p3598, %s3599, %s3596
        %s3601 = sand.u32 %s3600, 7
        %s3602 = ssub.s32 0, %s3601
        %s3603 = scalar_select %p3598, %s3602, %s3601
        %v3604 = vlaneseq
        %s3605 = smul.u32 %s3603, 128
        %v3606 = vstv %s3605
        %v3607 = vadd.s32 %v3606, 121
        %vm3608 = vcmp.eq.s32.totalorder %v3604, %v3607
        %s3609 = smul.addr %s3597, 8
        %s3610 = scalar_lea.vmem [#allocation14], %s3609
        %3611 = vst.msk [vmem:[%s3610] sm:$0xff] %vm3608, 2147483648
        %s3612 = smul.addr %s3597, 8
        %s3613 = scalar_lea.vmem [#allocation15], %s3612
        %3614 = vst.msk [vmem:[%s3613] sm:$0xff] %vm3608, 2147483647
        %3615 = xla_tuple %3611, %3614
        %v3616 = vrot.slane %v3595, 1
      $region49: #{custom-call} parent=2 // loop_footer
        %s1592 = sadd.s32 1, %s1588
      $region50: #{custom-call} parent=2 // loop_footer_branch
        %1587 = sbr.rel target = $region46
      $region51: #{custom-call} parent=2 // loop_exit
        _
      %s3617 = scalar_lea.vmem [#allocation11], 7
      %v3618 = vld [vmem:[%s3617] ss:$-1 sm:$0xff]
      %s3619 = scalar_lea.vmem [#allocation11], 7
      %v3620 = vld [vmem:[%s3619] ss:$-1 sm:$0xff]
      %3621 = vst [vmem:[#allocation11] sm:$0xff] %v3620
      %3622 = vst [vmem:[#allocation11] sm:$0xff] %v3618
      %s3623 = scalar_lea.vmem [#allocation13], 7
      %v3624 = vld [vmem:[%s3623] ss:$-1 sm:$0xff]
      %s3625 = scalar_lea.vmem [#allocation13], 7
      %v3626 = vld [vmem:[%s3625] ss:$-1 sm:$0xff]
      %3627 = vst [vmem:[#allocation13] sm:$0xff] %v3626
      %3628 = vst [vmem:[#allocation13] sm:$0xff] %v3624
      %3629 = xla_tuple %3622, %3628
      %v3630 = vld [vmem:[#allocation10] sm:$0xff]
      %v3631 = vld [vmem:[#allocation12] sm:$0xff]
      %3632 = xla_tuple %v3630, %v3631
      %v3633 = vld [vmem:[#allocation11] sm:$0xff]
      %v3634 = vld [vmem:[#allocation13] sm:$0xff]
      %3635 = xla_tuple %v3633, %v3634
      %vm3636 = vcmp.gt.s32.totalorder %v3630, %v3633
      %vm3637 = vcmp.eq.s32.totalorder %v3630, %v3633
      %vm3638 = vcmp.lt.s32.totalorder %v3631, %v3634
      %vm3639 = vmand %vm3637, %vm3638
      %vm3640 = vmor %vm3636, %vm3639
      %v3641 = vsel %vm3640, %v3630, %v3633
      %3642 = vst [vmem:[#allocation10] sm:$0xff] %v3641
      %v3643 = vsel %vm3640, %v3633, %v3630
      %3644 = vst [vmem:[#allocation11] sm:$0xff] %v3643
      %v3645 = vsel %vm3640, %v3631, %v3634
      %3646 = vst [vmem:[#allocation12] sm:$0xff] %v3645
      %v3647 = vsel %vm3640, %v3634, %v3631
      %3648 = vst [vmem:[#allocation13] sm:$0xff] %v3647
      %3649 = xla_tuple %3644, %3648
      %3650 = xla_tuple [#allocation10], [#allocation12]
      %v3651 = vld [vmem:[#allocation10] sm:$0xff]
      %v3652 = vld [vmem:[#allocation12] sm:$0xff]
      %3653 = xla_tuple %v3651, %v3652
      %v3655 = vunpack.c.l.s4 839939668
      %v3656 = vunpack.c.0.s8 %v3655
      %v3657 = vlaneseq
      %v3658 = vshrl.u32 %v3657, 7
      %v3659 = vsub.s32 %v3656, %v3658
      %v3660 = vrot.slane %v3651, %v3659
      %v3662 = vunpack.c.l.s4 839939668
      %v3663 = vunpack.c.0.s8 %v3662
      %v3664 = vlaneseq
      %v3665 = vshrl.u32 %v3664, 7
      %v3666 = vsub.s32 %v3663, %v3665
      %v3667 = vrot.slane %v3652, %v3666
      %3668 = xla_tuple %v3660, %v3667
      %vm3669 = vcmp.gt.s32.totalorder %v3651, %v3660
      %vm3670 = vcmp.eq.s32.totalorder %v3651, %v3660
      %vm3671 = vcmp.lt.s32.totalorder %v3652, %v3667
      %vm3672 = vmand %vm3670, %vm3671
      %vm3673 = vmor %vm3669, %vm3672
      %v3674 = vlaneseq
      %v3675 = vshrl.u32 %v3674, 7
      %v3676 = vand.u32 %v3675, 4
      %vm3677 = vcmp.ne.s32.totalorder %v3676, 0
      %vm3678 = vmxor %vm3673, %vm3677
      %v3679 = vsel %vm3678, %v3651, %v3660
      %v3680 = vsel %vm3678, %v3652, %v3667
      %3681 = xla_tuple %v3679, %v3680
      %v3683 = vunpack.c.l.s4 1417023538
      %v3684 = vunpack.c.0.s8 %v3683
      %v3685 = vlaneseq
      %v3686 = vshrl.u32 %v3685, 7
      %v3687 = vsub.s32 %v3684, %v3686
      %v3688 = vrot.slane %v3679, %v3687
      %v3690 = vunpack.c.l.s4 1417023538
      %v3691 = vunpack.c.0.s8 %v3690
      %v3692 = vlaneseq
      %v3693 = vshrl.u32 %v3692, 7
      %v3694 = vsub.s32 %v3691, %v3693
      %v3695 = vrot.slane %v3680, %v3694
      %3696 = xla_tuple %v3688, %v3695
      %vm3697 = vcmp.gt.s32.totalorder %v3679, %v3688
      %vm3698 = vcmp.eq.s32.totalorder %v3679, %v3688
      %vm3699 = vcmp.lt.s32.totalorder %v3680, %v3695
      %vm3700 = vmand %vm3698, %vm3699
      %vm3701 = vmor %vm3697, %vm3700
      %v3702 = vlaneseq
      %v3703 = vshrl.u32 %v3702, 7
      %v3704 = vand.u32 %v3703, 2
      %vm3705 = vcmp.ne.s32.totalorder %v3704, 0
      %vm3706 = vmxor %vm3701, %vm3705
      %v3707 = vsel %vm3706, %v3679, %v3688
      %v3708 = vsel %vm3706, %v3680, %v3695
      %3709 = xla_tuple %v3707, %v3708
      %v3711 = vunpack.c.l.s4 1732584193
      %v3712 = vunpack.c.0.s8 %v3711
      %v3713 = vlaneseq
      %v3714 = vshrl.u32 %v3713, 7
      %v3715 = vsub.s32 %v3712, %v3714
      %v3716 = vrot.slane %v3707, %v3715
      %v3718 = vunpack.c.l.s4 1732584193
      %v3719 = vunpack.c.0.s8 %v3718
      %v3720 = vlaneseq
      %v3721 = vshrl.u32 %v3720, 7
      %v3722 = vsub.s32 %v3719, %v3721
      %v3723 = vrot.slane %v3708, %v3722
      %3724 = xla_tuple %v3716, %v3723
      %vm3725 = vcmp.gt.s32.totalorder %v3707, %v3716
      %vm3726 = vcmp.eq.s32.totalorder %v3707, %v3716
      %vm3727 = vcmp.lt.s32.totalorder %v3708, %v3723
      %vm3728 = vmand %vm3726, %vm3727
      %vm3729 = vmor %vm3725, %vm3728
      %v3730 = vlaneseq
      %v3731 = vshrl.u32 %v3730, 7
      %v3732 = vand.u32 %v3731, 1
      %vm3733 = vcmp.ne.s32.totalorder %v3732, 0
      %vm3734 = vmxor %vm3729, %vm3733
      %v3735 = vsel %vm3734, %v3707, %v3716
      %v3736 = vsel %vm3734, %v3708, %v3723
      %3737 = xla_tuple %v3735, %v3736
      %3738 = vst [vmem:[#allocation10] sm:$0xff] %v3735
      %3739 = vst [vmem:[#allocation12] sm:$0xff] %v3736
      %3740 = xla_tuple %3738, %3739
      %v3741 = vld [vmem:[#allocation10] sm:$0xff]
      %v3742 = vld [vmem:[#allocation12] sm:$0xff]
      %3743 = xla_tuple %v3741, %v3742
      %v3745 = vunpack.c.l.s4 839939668
      %v3746 = vunpack.c.0.s8 %v3745
      %v3747 = vlaneseq
      %v3748 = vshrl.u32 %v3747, 7
      %v3749 = vsub.s32 %v3746, %v3748
      %v3750 = vrot.slane %v3741, %v3749
      %v3752 = vunpack.c.l.s4 839939668
      %v3753 = vunpack.c.0.s8 %v3752
      %v3754 = vlaneseq
      %v3755 = vshrl.u32 %v3754, 7
      %v3756 = vsub.s32 %v3753, %v3755
      %v3757 = vrot.slane %v3742, %v3756
      %3758 = xla_tuple %v3750, %v3757
      %vm3759 = vcmp.gt.s32.totalorder %v3741, %v3750
      %vm3760 = vcmp.eq.s32.totalorder %v3741, %v3750
      %vm3761 = vcmp.lt.s32.totalorder %v3742, %v3757
      %vm3762 = vmand %vm3760, %vm3761
      %vm3763 = vmor %vm3759, %vm3762
      %v3764 = vlaneseq
      %v3765 = vshrl.u32 %v3764, 7
      %v3766 = vand.u32 %v3765, 4
      %vm3767 = vcmp.ne.s32.totalorder %v3766, 0
      %vm3768 = vmxor %vm3763, %vm3767
      %v3769 = vsel %vm3768, %v3741, %v3750
      %v3770 = vsel %vm3768, %v3742, %v3757
      %3771 = xla_tuple %v3769, %v3770
      %v3773 = vunpack.c.l.s4 1417023538
      %v3774 = vunpack.c.0.s8 %v3773
      %v3775 = vlaneseq
      %v3776 = vshrl.u32 %v3775, 7
      %v3777 = vsub.s32 %v3774, %v3776
      %v3778 = vrot.slane %v3769, %v3777
      %v3780 = vunpack.c.l.s4 1417023538
      %v3781 = vunpack.c.0.s8 %v3780
      %v3782 = vlaneseq
      %v3783 = vshrl.u32 %v3782, 7
      %v3784 = vsub.s32 %v3781, %v3783
      %v3785 = vrot.slane %v3770, %v3784
      %3786 = xla_tuple %v3778, %v3785
      %vm3787 = vcmp.gt.s32.totalorder %v3769, %v3778
      %vm3788 = vcmp.eq.s32.totalorder %v3769, %v3778
      %vm3789 = vcmp.lt.s32.totalorder %v3770, %v3785
      %vm3790 = vmand %vm3788, %vm3789
      %vm3791 = vmor %vm3787, %vm3790
      %v3792 = vlaneseq
      %v3793 = vshrl.u32 %v3792, 7
      %v3794 = vand.u32 %v3793, 2
      %vm3795 = vcmp.ne.s32.totalorder %v3794, 0
      %vm3796 = vmxor %vm3791, %vm3795
      %v3797 = vsel %vm3796, %v3769, %v3778
      %v3798 = vsel %vm3796, %v3770, %v3785
      %3799 = xla_tuple %v3797, %v3798
      %v3801 = vunpack.c.l.s4 1732584193
      %v3802 = vunpack.c.0.s8 %v3801
      %v3803 = vlaneseq
      %v3804 = vshrl.u32 %v3803, 7
      %v3805 = vsub.s32 %v3802, %v3804
      %v3806 = vrot.slane %v3797, %v3805
      %v3808 = vunpack.c.l.s4 1732584193
      %v3809 = vunpack.c.0.s8 %v3808
      %v3810 = vlaneseq
      %v3811 = vshrl.u32 %v3810, 7
      %v3812 = vsub.s32 %v3809, %v3811
      %v3813 = vrot.slane %v3798, %v3812
      %3814 = xla_tuple %v3806, %v3813
      %vm3815 = vcmp.gt.s32.totalorder %v3797, %v3806
      %vm3816 = vcmp.eq.s32.totalorder %v3797, %v3806
      %vm3817 = vcmp.lt.s32.totalorder %v3798, %v3813
      %vm3818 = vmand %vm3816, %vm3817
      %vm3819 = vmor %vm3815, %vm3818
      %v3820 = vlaneseq
      %v3821 = vshrl.u32 %v3820, 7
      %v3822 = vand.u32 %v3821, 1
      %vm3823 = vcmp.ne.s32.totalorder %v3822, 0
      %vm3824 = vmxor %vm3819, %vm3823
      %v3825 = vsel %vm3824, %v3797, %v3806
      %v3826 = vsel %vm3824, %v3798, %v3813
      %3827 = xla_tuple %v3825, %v3826
      %3828 = vst [vmem:[#allocation10] sm:$0xff] %v3825
      %3829 = vst [vmem:[#allocation12] sm:$0xff] %v3826
      %3830 = xla_tuple %3828, %3829
      %3831 = xla_tuple [#allocation11], [#allocation13]
      %v3832 = vld [vmem:[#allocation11] sm:$0xff]
      %v3833 = vld [vmem:[#allocation13] sm:$0xff]
      %3834 = xla_tuple %v3832, %v3833
      %v3836 = vunpack.c.l.s4 839939668
      %v3837 = vunpack.c.0.s8 %v3836
      %v3838 = vlaneseq
      %v3839 = vshrl.u32 %v3838, 7
      %v3840 = vsub.s32 %v3837, %v3839
      %v3841 = vrot.slane %v3832, %v3840
      %v3843 = vunpack.c.l.s4 839939668
      %v3844 = vunpack.c.0.s8 %v3843
      %v3845 = vlaneseq
      %v3846 = vshrl.u32 %v3845, 7
      %v3847 = vsub.s32 %v3844, %v3846
      %v3848 = vrot.slane %v3833, %v3847
      %3849 = xla_tuple %v3841, %v3848
      %vm3850 = vcmp.gt.s32.totalorder %v3832, %v3841
      %vm3851 = vcmp.eq.s32.totalorder %v3832, %v3841
      %vm3852 = vcmp.lt.s32.totalorder %v3833, %v3848
      %vm3853 = vmand %vm3851, %vm3852
      %vm3854 = vmor %vm3850, %vm3853
      %v3855 = vlaneseq
      %v3856 = vshrl.u32 %v3855, 7
      %v3857 = vand.u32 %v3856, 4
      %vm3858 = vcmp.ne.s32.totalorder %v3857, 0
      %vm3859 = vmxor %vm3854, %vm3858
      %v3860 = vsel %vm3859, %v3832, %v3841
      %v3861 = vsel %vm3859, %v3833, %v3848
      %3862 = xla_tuple %v3860, %v3861
      %v3864 = vunpack.c.l.s4 1417023538
      %v3865 = vunpack.c.0.s8 %v3864
      %v3866 = vlaneseq
      %v3867 = vshrl.u32 %v3866, 7
      %v3868 = vsub.s32 %v3865, %v3867
      %v3869 = vrot.slane %v3860, %v3868
      %v3871 = vunpack.c.l.s4 1417023538
      %v3872 = vunpack.c.0.s8 %v3871
      %v3873 = vlaneseq
      %v3874 = vshrl.u32 %v3873, 7
      %v3875 = vsub.s32 %v3872, %v3874
      %v3876 = vrot.slane %v3861, %v3875
      %3877 = xla_tuple %v3869, %v3876
      %vm3878 = vcmp.gt.s32.totalorder %v3860, %v3869
      %vm3879 = vcmp.eq.s32.totalorder %v3860, %v3869
      %vm3880 = vcmp.lt.s32.totalorder %v3861, %v3876
      %vm3881 = vmand %vm3879, %vm3880
      %vm3882 = vmor %vm3878, %vm3881
      %v3883 = vlaneseq
      %v3884 = vshrl.u32 %v3883, 7
      %v3885 = vand.u32 %v3884, 2
      %vm3886 = vcmp.ne.s32.totalorder %v3885, 0
      %vm3887 = vmxor %vm3882, %vm3886
      %v3888 = vsel %vm3887, %v3860, %v3869
      %v3889 = vsel %vm3887, %v3861, %v3876
      %3890 = xla_tuple %v3888, %v3889
      %v3892 = vunpack.c.l.s4 1732584193
      %v3893 = vunpack.c.0.s8 %v3892
      %v3894 = vlaneseq
      %v3895 = vshrl.u32 %v3894, 7
      %v3896 = vsub.s32 %v3893, %v3895
      %v3897 = vrot.slane %v3888, %v3896
      %v3899 = vunpack.c.l.s4 1732584193
      %v3900 = vunpack.c.0.s8 %v3899
      %v3901 = vlaneseq
      %v3902 = vshrl.u32 %v3901, 7
      %v3903 = vsub.s32 %v3900, %v3902
      %v3904 = vrot.slane %v3889, %v3903
      %3905 = xla_tuple %v3897, %v3904
      %vm3906 = vcmp.gt.s32.totalorder %v3888, %v3897
      %vm3907 = vcmp.eq.s32.totalorder %v3888, %v3897
      %vm3908 = vcmp.lt.s32.totalorder %v3889, %v3904
      %vm3909 = vmand %vm3907, %vm3908
      %vm3910 = vmor %vm3906, %vm3909
      %v3911 = vlaneseq
      %v3912 = vshrl.u32 %v3911, 7
      %v3913 = vand.u32 %v3912, 1
      %vm3914 = vcmp.ne.s32.totalorder %v3913, 0
      %vm3915 = vmxor %vm3910, %vm3914
      %v3916 = vsel %vm3915, %v3888, %v3897
      %v3917 = vsel %vm3915, %v3889, %v3904
      %3918 = xla_tuple %v3916, %v3917
      %3919 = vst [vmem:[#allocation11] sm:$0xff] %v3916
      %3920 = vst [vmem:[#allocation13] sm:$0xff] %v3917
      %3921 = xla_tuple %3919, %3920
      %v3922 = vld [vmem:[#allocation11] sm:$0xff]
      %v3923 = vld [vmem:[#allocation13] sm:$0xff]
      %3924 = xla_tuple %v3922, %v3923
      %v3926 = vunpack.c.l.s4 839939668
      %v3927 = vunpack.c.0.s8 %v3926
      %v3928 = vlaneseq
      %v3929 = vshrl.u32 %v3928, 7
      %v3930 = vsub.s32 %v3927, %v3929
      %v3931 = vrot.slane %v3922, %v3930
      %v3933 = vunpack.c.l.s4 839939668
      %v3934 = vunpack.c.0.s8 %v3933
      %v3935 = vlaneseq
      %v3936 = vshrl.u32 %v3935, 7
      %v3937 = vsub.s32 %v3934, %v3936
      %v3938 = vrot.slane %v3923, %v3937
      %3939 = xla_tuple %v3931, %v3938
      %vm3940 = vcmp.gt.s32.totalorder %v3922, %v3931
      %vm3941 = vcmp.eq.s32.totalorder %v3922, %v3931
      %vm3942 = vcmp.lt.s32.totalorder %v3923, %v3938
      %vm3943 = vmand %vm3941, %vm3942
      %vm3944 = vmor %vm3940, %vm3943
      %v3945 = vlaneseq
      %v3946 = vshrl.u32 %v3945, 7
      %v3947 = vand.u32 %v3946, 4
      %vm3948 = vcmp.ne.s32.totalorder %v3947, 0
      %vm3949 = vmxor %vm3944, %vm3948
      %v3950 = vsel %vm3949, %v3922, %v3931
      %v3951 = vsel %vm3949, %v3923, %v3938
      %3952 = xla_tuple %v3950, %v3951
      %v3954 = vunpack.c.l.s4 1417023538
      %v3955 = vunpack.c.0.s8 %v3954
      %v3956 = vlaneseq
      %v3957 = vshrl.u32 %v3956, 7
      %v3958 = vsub.s32 %v3955, %v3957
      %v3959 = vrot.slane %v3950, %v3958
      %v3961 = vunpack.c.l.s4 1417023538
      %v3962 = vunpack.c.0.s8 %v3961
      %v3963 = vlaneseq
      %v3964 = vshrl.u32 %v3963, 7
      %v3965 = vsub.s32 %v3962, %v3964
      %v3966 = vrot.slane %v3951, %v3965
      %3967 = xla_tuple %v3959, %v3966
      %vm3968 = vcmp.gt.s32.totalorder %v3950, %v3959
      %vm3969 = vcmp.eq.s32.totalorder %v3950, %v3959
      %vm3970 = vcmp.lt.s32.totalorder %v3951, %v3966
      %vm3971 = vmand %vm3969, %vm3970
      %vm3972 = vmor %vm3968, %vm3971
      %v3973 = vlaneseq
      %v3974 = vshrl.u32 %v3973, 7
      %v3975 = vand.u32 %v3974, 2
      %vm3976 = vcmp.ne.s32.totalorder %v3975, 0
      %vm3977 = vmxor %vm3972, %vm3976
      %v3978 = vsel %vm3977, %v3950, %v3959
      %v3979 = vsel %vm3977, %v3951, %v3966
      %3980 = xla_tuple %v3978, %v3979
      %v3982 = vunpack.c.l.s4 1732584193
      %v3983 = vunpack.c.0.s8 %v3982
      %v3984 = vlaneseq
      %v3985 = vshrl.u32 %v3984, 7
      %v3986 = vsub.s32 %v3983, %v3985
      %v3987 = vrot.slane %v3978, %v3986
      %v3989 = vunpack.c.l.s4 1732584193
      %v3990 = vunpack.c.0.s8 %v3989
      %v3991 = vlaneseq
      %v3992 = vshrl.u32 %v3991, 7
      %v3993 = vsub.s32 %v3990, %v3992
      %v3994 = vrot.slane %v3979, %v3993
      %3995 = xla_tuple %v3987, %v3994
      %vm3996 = vcmp.gt.s32.totalorder %v3978, %v3987
      %vm3997 = vcmp.eq.s32.totalorder %v3978, %v3987
      %vm3998 = vcmp.lt.s32.totalorder %v3979, %v3994
      %vm3999 = vmand %vm3997, %vm3998
      %vm4000 = vmor %vm3996, %vm3999
      %v4001 = vlaneseq
      %v4002 = vshrl.u32 %v4001, 7
      %v4003 = vand.u32 %v4002, 1
      %vm4004 = vcmp.ne.s32.totalorder %v4003, 0
      %vm4005 = vmxor %vm4000, %vm4004
      %v4006 = vsel %vm4005, %v3978, %v3987
      %v4007 = vsel %vm4005, %v3979, %v3994
      %4008 = xla_tuple %v4006, %v4007
      %4009 = vst [vmem:[#allocation11] sm:$0xff] %v4006
      %4010 = vst [vmem:[#allocation13] sm:$0xff] %v4007
      %4011 = xla_tuple %4009, %4010
    %v4012 = vld [vmem:[#allocation10] sm:$0xff]
    %vm4013 = vcmp.lt.s32.totalorder %v4012, 0
    %v4014 = vsub.s32 2147483647, %v4012
    %v4015 = vsel %vm4013, %v4014, %v4012
    %4016 = vst [vmem:[#allocation10] sm:$0xff] %v4015
    %v4017 = vld [vmem:[#allocation10] sm:$0xff]
    %4018 = vst [vmem:[#allocation7] sm:$0xff] %v4017
    %v4019 = vld [vmem:[#allocation12] sm:$0xff]
    %4020 = vst [vmem:[#allocation9] sm:$0xff] %v4019
    %s4022 = ssub.s32 128, 128
    %4023 = vsyncadd [#allocation8], %s4022
    %s4025 = sshll.u32 [#allocation7], 4
    %s4026 = int_to_ptr.vmem [resolvable:$true] %s4025
    %4028 = dma.vmem_to_hbm [thread:$0]  %s4026, 128, %s1, [#allocation8]
    // Predicated region
    $region52: #{custom-call} parent=1 // pred_check
      _
    $region53: #{custom-call} parent=1 // pred_check_branch
      %4030 = sbr.rel (0) target = $region55
    $region54: #{custom-call} parent=1 // pred_region
      // Predicated region
      $region56: #{custom-call} parent=54 // pred_check
        _
      $region57: #{custom-call} parent=54 // pred_check_branch
        %4032 = sbr.rel (0) target = $region59
      $region58: #{custom-call} parent=54 // pred_region
        // Predicated region
        $region71: #{custom-call} parent=58 // pred_check
          _
        $region72: #{custom-call} parent=58 // pred_check_branch
          %4047 = sbr.rel (0) target = $region74
        $region73: #{custom-call} parent=58 // pred_region
          loop: start=0, step=1, limit=1
          $region75: #{custom-call} parent=73 // loop_pre_header
            _
          $region76: #{custom-call} parent=73 // loop_header
            %s4049 = sphi 0, %s4053
            %p4050 = scmp.ge.s32.totalorder %s4049, 1
            %s4054 = sphi [#allocation9], [#allocation9]
            %s4055 = sphi %s2, %s2
          $region77: #{custom-call} parent=73 // loop_header_branch
            %4052 = sbr.rel (%p4050) target = $region81
          $region78: #{custom-call} parent=73 // loop_body
            %v4056 = vld [vmem:[%s4054] sm:$0xff]
            %4057 = vst [vmem:[%s4055] sm:$0xff] %v4056
          $region79: #{custom-call} parent=73 // loop_footer
            %s4053 = sadd.s32 1, %s4049
          $region80: #{custom-call} parent=73 // loop_footer_branch
            %4048 = sbr.rel target = $region76
          $region81: #{custom-call} parent=73 // loop_exit
            _
        $region74: #{custom-call} parent=58 // pred_fallthru
          _
        // Predicated region
        $region82: #{custom-call} parent=58 // pred_check
          _
        $region83: #{custom-call} parent=58 // pred_check_branch
          %4059 = sbr.rel target = $region85
        $region84: #{custom-call} parent=58 // pred_region
          _
        $region85: #{custom-call} parent=58 // pred_fallthru
          _
      $region59: #{custom-call} parent=54 // pred_fallthru
        _
      // Predicated region
      $region60: #{custom-call} parent=54 // pred_check
        _
      $region61: #{custom-call} parent=54 // pred_check_branch
        %4034 = sbr.rel target = $region63
      $region62: #{custom-call} parent=54 // pred_region
        loop: start=0, step=1, limit=1
        $region64: #{custom-call} parent=62 // loop_pre_header
          _
        $region65: #{custom-call} parent=62 // loop_header
          %s4037 = sphi 0, %s4041
          %p4038 = scmp.ge.s32.totalorder %s4037, 1
          %s4042 = sphi [#allocation9], [#allocation9]
          %s4043 = sphi %s2, %s2
        $region66: #{custom-call} parent=62 // loop_header_branch
          %4040 = sbr.rel (%p4038) target = $region70
        $region67: #{custom-call} parent=62 // loop_body
          %v4044 = vld [vmem:[%s4042] sm:$0xff]
          %4045 = vst [vmem:[%s4043] sm:$0xff] %v4044
        $region68: #{custom-call} parent=62 // loop_footer
          %s4041 = sadd.s32 1, %s4037
        $region69: #{custom-call} parent=62 // loop_footer_branch
          %4036 = sbr.rel target = $region65
        $region70: #{custom-call} parent=62 // loop_exit
          _
      $region63: #{custom-call} parent=54 // pred_fallthru
        _
    $region55: #{custom-call} parent=1 // pred_fallthru
      _
    %4060 = vnop
    %4061 = dma.done [#allocation8], 128
    %4062 = vsyncpa [#allocation8], 1

// kernel: _rcnn_forward_impl.2
$region0: #{_rcnn_forward_impl.2}
  #allocation0 [shape = 'u32[]', space=smem, size = 0x4, offset = 0x4, fixed_abs, tag = 'smem constant byte address 0x4 - core index']
  #allocation1 [shape = 'u32[144,128]{1,0:T(1,128)}', space=vmem, size = 0x12000, scoped, tag = 'internal scratch']
  %s0 = inlined_call_operand.vmem [shape: f32[512,3], index: 0, kind: input, shape index: {}]
  %s1 = inlined_call_operand.vmem [shape: bf16[3,32], index: 1, kind: input, shape index: {}]
  %s2 = inlined_call_operand.vmem [shape: f32[1,32], index: 2, kind: input, shape index: {}]
  %s3 = inlined_call_operand.vmem [shape: bf16[32,15], index: 3, kind: input, shape index: {}]
  %s4 = inlined_call_operand.vmem [shape: f32[1,15], index: 4, kind: input, shape index: {}]
  %s5 = inlined_call_operand.vmem [shape: bf16[512,32], index: 5, kind: output, shape index: {0}]
  %s6 = inlined_call_operand.vmem [shape: f32[512,15], index: 6, kind: output, shape index: {1}]
  %7 = xla_tuple %s5, %s6
  %s8 = sld [smem:[#allocation0]]
  $region61: #{_rcnn_forward_impl.2} parent=0
    _
  %s10 = ssub.s32 1, %s8
  %s11 = scalar_select 0, %s10, %s8
  loop: start=0, step=1, limit=4
  $region2: #{_rcnn_forward_impl.2} parent=0 // loop_pre_header
    _
  $region3: #{_rcnn_forward_impl.2} parent=0 // loop_header
    %s13 = sphi 0, %s17
    %p14 = scmp.ge.s32.totalorder %s13, 4
    %s23 = sphi 0, %s25
    %s26 = sphi 0, %s23
    %s27 = sphi 0, %s26
    %s43 = sphi 0, %s27
    %s47 = sphi 0, %s47
    %s49 = sphi 0, %s47
    %s50 = sphi 0, %s49
    %s64 = sphi 0, %s50
    %s68 = sphi 0, %s68
    %s70 = sphi 0, %s68
    %s71 = sphi 0, %s70
    %s85 = sphi 0, %s71
    %s89 = sphi 0, %s89
    %s91 = sphi 0, %s89
    %s92 = sphi 0, %s91
    %s106 = sphi 0, %s92
    %s110 = sphi 0, %s110
    %s112 = sphi 0, %s110
    %s113 = sphi 0, %s112
    %s127 = sphi 0, %s113
    %s133 = sphi 0, %s135
    %s136 = sphi 0, %s133
    %s137 = sphi 0, %s136
    %s153 = sphi 0, %s137
    %s159 = sphi 0, %s161
    %s162 = sphi 0, %s159
    %s163 = sphi 0, %s162
    %s179 = sphi 0, %s163
  $region4: #{_rcnn_forward_impl.2} parent=0 // loop_header_branch
    %16 = sbr.rel (%p14) target = $region8
  $region5: #{_rcnn_forward_impl.2} parent=0 // loop_body
    %s18 = ssub.s32 %s13, 1
    %s19 = ssub.s32 %s13, 2
    %s20 = sadd.s32 %s13, 1
    %s21 = ssub.s32 %s13, %s20
    %p22 = scmp.eq.s32.totalorder %s21, 0
    %s24 = sadd.s32 %s23, 1
    %s25 = scalar_select %p22, %s23, %s24
    %p28 = pneg %p22
    %p29 = scmp.eq.s32.totalorder %s13, 1
    %p30 = por %p28, %p29
    %p31 = scmp.ne.s32.totalorder %s23, %s26
    %p32 = scmp.eq.s32.totalorder %s13, 0
    %p33 = por %p31, %p32
    %p34 = scmp.ne.s32.totalorder %s23, %s26
    %p35 = scmp.eq.s32.totalorder %s18, 1
    %p36 = por %p34, %p35
    %p37 = scmp.ne.s32.totalorder %s26, %s27
    %p38 = scmp.eq.s32.totalorder %s18, 0
    %p39 = por %p37, %p38
    %p40 = scmp.ne.s32.totalorder %s26, %s27
    %p41 = scmp.eq.s32.totalorder %s19, 1
    %p42 = por %p40, %p41
    %p44 = scmp.ne.s32.totalorder %s27, %s43
    %p45 = scmp.eq.s32.totalorder %s19, 0
    %p46 = por %p44, %p45
    %s48 = sadd.s32 %s47, 1
    %p51 = scmp.eq.s32.totalorder %s13, 1
    %p52 = scmp.ne.s32.totalorder %s47, %s49
    %p53 = scmp.eq.s32.totalorder %s13, 0
    %p54 = por %p52, %p53
    %p55 = scmp.ne.s32.totalorder %s47, %s49
    %p56 = scmp.eq.s32.totalorder %s18, 1
    %p57 = por %p55, %p56
    %p58 = scmp.ne.s32.totalorder %s49, %s50
    %p59 = scmp.eq.s32.totalorder %s18, 0
    %p60 = por %p58, %p59
    %p61 = scmp.ne.s32.totalorder %s49, %s50
    %p62 = scmp.eq.s32.totalorder %s19, 1
    %p63 = por %p61, %p62
    %p65 = scmp.ne.s32.totalorder %s50, %s64
    %p66 = scmp.eq.s32.totalorder %s19, 0
    %p67 = por %p65, %p66
    %s69 = sadd.s32 %s68, 1
    %p72 = scmp.eq.s32.totalorder %s13, 1
    %p73 = scmp.ne.s32.totalorder %s68, %s70
    %p74 = scmp.eq.s32.totalorder %s13, 0
    %p75 = por %p73, %p74
    %p76 = scmp.ne.s32.totalorder %s68, %s70
    %p77 = scmp.eq.s32.totalorder %s18, 1
    %p78 = por %p76, %p77
    %p79 = scmp.ne.s32.totalorder %s70, %s71
    %p80 = scmp.eq.s32.totalorder %s18, 0
    %p81 = por %p79, %p80
    %p82 = scmp.ne.s32.totalorder %s70, %s71
    %p83 = scmp.eq.s32.totalorder %s19, 1
    %p84 = por %p82, %p83
    %p86 = scmp.ne.s32.totalorder %s71, %s85
    %p87 = scmp.eq.s32.totalorder %s19, 0
    %p88 = por %p86, %p87
    %s90 = sadd.s32 %s89, 1
    %p93 = scmp.eq.s32.totalorder %s13, 1
    %p94 = scmp.ne.s32.totalorder %s89, %s91
    %p95 = scmp.eq.s32.totalorder %s13, 0
    %p96 = por %p94, %p95
    %p97 = scmp.ne.s32.totalorder %s89, %s91
    %p98 = scmp.eq.s32.totalorder %s18, 1
    %p99 = por %p97, %p98
    %p100 = scmp.ne.s32.totalorder %s91, %s92
    %p101 = scmp.eq.s32.totalorder %s18, 0
    %p102 = por %p100, %p101
    %p103 = scmp.ne.s32.totalorder %s91, %s92
    %p104 = scmp.eq.s32.totalorder %s19, 1
    %p105 = por %p103, %p104
    %p107 = scmp.ne.s32.totalorder %s92, %s106
    %p108 = scmp.eq.s32.totalorder %s19, 0
    %p109 = por %p107, %p108
    %s111 = sadd.s32 %s110, 1
    %p114 = scmp.eq.s32.totalorder %s13, 1
    %p115 = scmp.ne.s32.totalorder %s110, %s112
    %p116 = scmp.eq.s32.totalorder %s13, 0
    %p117 = por %p115, %p116
    %p118 = scmp.ne.s32.totalorder %s110, %s112
    %p119 = scmp.eq.s32.totalorder %s18, 1
    %p120 = por %p118, %p119
    %p121 = scmp.ne.s32.totalorder %s112, %s113
    %p122 = scmp.eq.s32.totalorder %s18, 0
    %p123 = por %p121, %p122
    %p124 = scmp.ne.s32.totalorder %s112, %s113
    %p125 = scmp.eq.s32.totalorder %s19, 1
    %p126 = por %p124, %p125
    %p128 = scmp.ne.s32.totalorder %s113, %s127
    %p129 = scmp.eq.s32.totalorder %s19, 0
    %p130 = por %p128, %p129
    %s131 = ssub.s32 %s13, %s20
    %p132 = scmp.eq.s32.totalorder %s131, 0
    %s134 = sadd.s32 %s133, 1
    %s135 = scalar_select %p132, %s133, %s134
    %p138 = pneg %p132
    %p139 = scmp.eq.s32.totalorder %s13, 1
    %p140 = por %p138, %p139
    %p141 = scmp.ne.s32.totalorder %s133, %s136
    %p142 = scmp.eq.s32.totalorder %s13, 0
    %p143 = por %p141, %p142
    %p144 = scmp.ne.s32.totalorder %s133, %s136
    %p145 = scmp.eq.s32.totalorder %s18, 1
    %p146 = por %p144, %p145
    %p147 = scmp.ne.s32.totalorder %s136, %s137
    %p148 = scmp.eq.s32.totalorder %s18, 0
    %p149 = por %p147, %p148
    %p150 = scmp.ne.s32.totalorder %s136, %s137
    %p151 = scmp.eq.s32.totalorder %s19, 1
    %p152 = por %p150, %p151
    %p154 = scmp.ne.s32.totalorder %s137, %s153
    %p155 = scmp.eq.s32.totalorder %s19, 0
    %p156 = por %p154, %p155
    %s157 = ssub.s32 %s13, %s20
    %p158 = scmp.eq.s32.totalorder %s157, 0
    %s160 = sadd.s32 %s159, 1
    %s161 = scalar_select %p158, %s159, %s160
    %p164 = pneg %p158
    %p165 = scmp.eq.s32.totalorder %s13, 1
    %p166 = por %p164, %p165
    %p167 = scmp.ne.s32.totalorder %s159, %s162
    %p168 = scmp.eq.s32.totalorder %s13, 0
    %p169 = por %p167, %p168
    %p170 = scmp.ne.s32.totalorder %s159, %s162
    %p171 = scmp.eq.s32.totalorder %s18, 1
    %p172 = por %p170, %p171
    %p173 = scmp.ne.s32.totalorder %s162, %s163
    %p174 = scmp.eq.s32.totalorder %s18, 0
    %p175 = por %p173, %p174
    %p176 = scmp.ne.s32.totalorder %s162, %s163
    %p177 = scmp.eq.s32.totalorder %s19, 1
    %p178 = por %p176, %p177
    %p180 = scmp.ne.s32.totalorder %s163, %s179
    %p181 = scmp.eq.s32.totalorder %s19, 0
    %p182 = por %p180, %p181
    %p183 = scmp.le.s32.totalorder 1, %s13
    %p184 = scmp.lt.s32.totalorder %s13, 3
    %p185 = pnand %p183, %p184
    %p186 = pneg %p185
    // Predicated region
    $region9: #{_rcnn_forward_impl.2} parent=5 // pred_check
      _
    $region10: #{_rcnn_forward_impl.2} parent=5 // pred_check_branch
      %188 = sbr.rel (%p185) target = $region12
    $region11: #{_rcnn_forward_impl.2} parent=5 // pred_region
      %s189 = ssub.s32 %s13, 1
      // Predicated region
      $region13: #{_rcnn_forward_impl.2} parent=11 // pred_check
        %p190 = pneg %p60
      $region14: #{_rcnn_forward_impl.2} parent=11 // pred_check_branch
        %192 = sbr.rel (%p190) target = $region16
      $region15: #{_rcnn_forward_impl.2} parent=11 // pred_region
        _
      $region16: #{_rcnn_forward_impl.2} parent=11 // pred_fallthru
        _
      // Predicated region
      $region17: #{_rcnn_forward_impl.2} parent=11 // pred_check
        %p193 = pneg %p81
      $region18: #{_rcnn_forward_impl.2} parent=11 // pred_check_branch
        %195 = sbr.rel (%p193) target = $region20
      $region19: #{_rcnn_forward_impl.2} parent=11 // pred_region
        _
      $region20: #{_rcnn_forward_impl.2} parent=11 // pred_fallthru
        _
      // Predicated region
      $region21: #{_rcnn_forward_impl.2} parent=11 // pred_check
        %p196 = pneg %p102
      $region22: #{_rcnn_forward_impl.2} parent=11 // pred_check_branch
        %198 = sbr.rel (%p196) target = $region24
      $region23: #{_rcnn_forward_impl.2} parent=11 // pred_region
        _
      $region24: #{_rcnn_forward_impl.2} parent=11 // pred_fallthru
        _
      // Predicated region
      $region25: #{_rcnn_forward_impl.2} parent=11 // pred_check
        %p199 = pneg %p123
      $region26: #{_rcnn_forward_impl.2} parent=11 // pred_check_branch
        %201 = sbr.rel (%p199) target = $region28
      $region27: #{_rcnn_forward_impl.2} parent=11 // pred_region
        _
      $region28: #{_rcnn_forward_impl.2} parent=11 // pred_fallthru
        _
    $region12: #{_rcnn_forward_impl.2} parent=5 // pred_fallthru
      _
    %p202 = scmp.lt.s32.totalorder %s13, 2
    // Predicated region
    $region29: #{_rcnn_forward_impl.2} parent=5 // pred_check
      %p203 = pneg %p202
    $region30: #{_rcnn_forward_impl.2} parent=5 // pred_check_branch
      %205 = sbr.rel (%p203) target = $region32
    $region31: #{_rcnn_forward_impl.2} parent=5 // pred_region
      // Predicated region
      $region33: #{_rcnn_forward_impl.2} parent=31 // pred_check
        %p206 = pneg %p33
      $region34: #{_rcnn_forward_impl.2} parent=31 // pred_check_branch
        %208 = sbr.rel (%p206) target = $region36
      $region35: #{_rcnn_forward_impl.2} parent=31 // pred_region
        %s209 = smul.u32 32, %s13
        %p210 = scmp.lt.s32.totalorder %s209, 63
        %s211 = scalar_select %p210, %s209, 63
        %s212 = smul.addr %s211, 8
        %s213 = scalar_lea.vmem %s0, %s212
        %s214 = smul.u32 32, %s13
      $region36: #{_rcnn_forward_impl.2} parent=31 // pred_fallthru
        _
    $region32: #{_rcnn_forward_impl.2} parent=5 // pred_fallthru
      _
    %p215 = scmp.le.s32.totalorder 1, %s13
    %p216 = scmp.lt.s32.totalorder %s13, 3
    %p217 = pnand %p215, %p216
    %p218 = pneg %p217
    // Predicated region
    $region37: #{_rcnn_forward_impl.2} parent=5 // pred_check
      _
    $region38: #{_rcnn_forward_impl.2} parent=5 // pred_check_branch
      %220 = sbr.rel (%p217) target = $region40
    $region39: #{_rcnn_forward_impl.2} parent=5 // pred_region
      %s221 = ssub.s32 %s13, 1
      %s222 = smul.u32 32, %s18
      %p223 = scmp.lt.s32.totalorder %s222, 63
      %s224 = scalar_select %p223, %s222, 63
      %s225 = smul.addr %s224, 8
      %s226 = scalar_lea.vmem %s0, %s225
      %p227 = pneg %p39
      %p228 = pneg %p36
      %p229 = pneg %p60
      %p230 = pneg %p57
      %p231 = pneg %p81
      %p232 = pneg %p78
      %p233 = pneg %p102
      %p234 = pneg %p99
      %p235 = pneg %p123
      %p236 = pneg %p120
      %p237 = pneg %p149
      %p238 = pneg %p146
      %s239 = smul.u32 32, %s18
      %p240 = scmp.lt.s32.totalorder %s239, 63
      %s241 = scalar_select %p240, %s239, 63
      %s242 = smul.addr %s241, 4
      %s243 = scalar_lea.vmem %s5, %s242
      %p244 = pneg %p175
      %p245 = pneg %p172
      %s246 = smul.u32 32, %s18
      %p247 = scmp.lt.s32.totalorder %s246, 63
      %s248 = scalar_select %p247, %s246, 63
      %s249 = smul.addr %s248, 8
      %s250 = scalar_lea.vmem %s6, %s249
      %s251 = smul.u32 32, %s18
      %p252 = scmp.lt.s32.totalorder %s251, 63
      %s253 = scalar_select %p252, %s251, 63
      %s254 = smul.addr %s253, 8
      %s255 = scalar_lea.vmem %s0, %s254
      %s256 = smul.u32 32, %s18
      %s257 = smul.u32 32, %s18
      %p258 = scmp.lt.s32.totalorder %s257, 63
      %s259 = scalar_select %p258, %s257, 63
      %s260 = smul.addr %s259, 4
      %s261 = scalar_lea.vmem %s5, %s260
      %s262 = smul.u32 32, %s18
      %s263 = smul.u32 32, %s18
      %p264 = scmp.lt.s32.totalorder %s263, 63
      %s265 = scalar_select %p264, %s263, 63
      %s266 = smul.addr %s265, 8
      %s267 = scalar_lea.vmem %s6, %s266
      %s268 = smul.u32 32, %s18
      %v270 = vld [vmem:[%s255] sm:$0xff]
      %v271 = vld [vmem:[%s255 + $0x8] sm:$0xff]
      %v272 = vld [vmem:[%s255 + $0x10] sm:$0xff]
      %v273 = vld [vmem:[%s255 + $0x18] sm:$0xff]
      %v274 = vld [vmem:[%s255 + $0x20] sm:$0xff]
      %v275 = vld [vmem:[%s255 + $0x28] sm:$0xff]
      %v276 = vld [vmem:[%s255 + $0x30] sm:$0xff]
      %v277 = vld [vmem:[%s255 + $0x38] sm:$0xff]
      %v278 = vld [vmem:[%s255 + $0x40] sm:$0xff]
      %v279 = vld [vmem:[%s255 + $0x48] sm:$0xff]
      %v280 = vld [vmem:[%s255 + $0x50] sm:$0xff]
      %v281 = vld [vmem:[%s255 + $0x58] sm:$0xff]
      %v282 = vld [vmem:[%s255 + $0x60] sm:$0xff]
      %v283 = vld [vmem:[%s255 + $0x68] sm:$0xff]
      %v284 = vld [vmem:[%s255 + $0x70] sm:$0xff]
      %v285 = vld [vmem:[%s255 + $0x78] sm:$0xff]
      %v286 = vld [vmem:[%s255 + $0x80] sm:$0xff]
      %v287 = vld [vmem:[%s255 + $0x88] sm:$0xff]
      %v288 = vld [vmem:[%s255 + $0x90] sm:$0xff]
      %v289 = vld [vmem:[%s255 + $0x98] sm:$0xff]
      %v290 = vld [vmem:[%s255 + $0xa0] sm:$0xff]
      %v291 = vld [vmem:[%s255 + $0xa8] sm:$0xff]
      %v292 = vld [vmem:[%s255 + $0xb0] sm:$0xff]
      %v293 = vld [vmem:[%s255 + $0xb8] sm:$0xff]
      %v294 = vld [vmem:[%s255 + $0xc0] sm:$0xff]
      %v295 = vld [vmem:[%s255 + $0xc8] sm:$0xff]
      %v296 = vld [vmem:[%s255 + $0xd0] sm:$0xff]
      %v297 = vld [vmem:[%s255 + $0xd8] sm:$0xff]
      %v298 = vld [vmem:[%s255 + $0xe0] sm:$0xff]
      %v299 = vld [vmem:[%s255 + $0xe8] sm:$0xff]
      %v300 = vld [vmem:[%s255 + $0xf0] sm:$0xff]
      %v301 = vld [vmem:[%s255 + $0xf8] sm:$0xff]
      %v302 = vpack.c.bf16 %v271, %v270
      %v303 = vpack.c.bf16 %v273, %v272
      %v304 = vpack.c.bf16 %v275, %v274
      %v305 = vpack.c.bf16 %v277, %v276
      %v306 = vpack.c.bf16 %v279, %v278
      %v307 = vpack.c.bf16 %v281, %v280
      %v308 = vpack.c.bf16 %v283, %v282
      %v309 = vpack.c.bf16 %v285, %v284
      %v310 = vpack.c.bf16 %v287, %v286
      %v311 = vpack.c.bf16 %v289, %v288
      %v312 = vpack.c.bf16 %v291, %v290
      %v313 = vpack.c.bf16 %v293, %v292
      %v314 = vpack.c.bf16 %v295, %v294
      %v315 = vpack.c.bf16 %v297, %v296
      %v316 = vpack.c.bf16 %v299, %v298
      %v317 = vpack.c.bf16 %v301, %v300
      %v318 = vld [vmem:[%s1] sm:$0x3]
      %v319 = vld [vmem:[%s2] sm:$0x1]
      %v321 = vlaneseq
      %v322 = vshrl.u32 %v321, 7
      %v323 = vsub.s32 0, %v322
      %v324 = vrot.slane %v319, %v323
      %vm326 = vcmask 23552
      %v328 = vsel %vm326, %v302, 0
      %v331 = vsel %vm326, %v303, 0
      %v334 = vsel %vm326, %v304, 0
      %v337 = vsel %vm326, %v305, 0
      %v340 = vsel %vm326, %v306, 0
      %v343 = vsel %vm326, %v307, 0
      %v346 = vsel %vm326, %v308, 0
      %v349 = vsel %vm326, %v309, 0
      %v352 = vsel %vm326, %v310, 0
      %v355 = vsel %vm326, %v311, 0
      %v358 = vsel %vm326, %v312, 0
      %v361 = vsel %vm326, %v313, 0
      %v364 = vsel %vm326, %v314, 0
      %v367 = vsel %vm326, %v315, 0
      %v370 = vsel %vm326, %v316, 0
      %v373 = vsel %vm326, %v317, 0
      %vm375 = vcmask 1040384
      %vm376 = vcmask 1041408
      %v377 = vsel %vm375, 4294967295, 65535
      %v378 = vsel %vm376, %v377, 0
      %v380 = vand.u32 %v318, %v378
      %382 = vmatprep.subr.bf16.mxu0 0
      %383 = vmatpush1.bf16.msra.mxu0 %v380
      %384 = vmatprep.subr.bf16.mxu0 0
      %385 = vmatpush1.bf16.msra.mxu0 0
      %386 = vmatprep.subr.bf16.mxu0 0
      %387 = vmatpush1.bf16.msra.mxu0 0
      %388 = vmatprep.subr.bf16.mxu0 0
      %389 = vmatpush1.bf16.msra.mxu0 0
      %390 = vmatprep.subr.bf16.mxu0 0
      %391 = vmatpush1.bf16.msra.mxu0 0
      %392 = vmatprep.subr.bf16.mxu0 0
      %393 = vmatpush1.bf16.msra.mxu0 0
      %394 = vmatprep.subr.bf16.mxu0 0
      %395 = vmatpush1.bf16.msra.mxu0 0
      %396 = vmatprep.subr.bf16.mxu0 0
      %397 = vmatpush1.bf16.msra.mxu0 0
      %398 = vmatprep.subr.bf16.mxu0 0
      %399 = vmatpush1.bf16.msra.mxu0 0
      %400 = vmatprep.subr.bf16.mxu0 0
      %401 = vmatpush1.bf16.msra.mxu0 0
      %402 = vmatprep.subr.bf16.mxu0 0
      %403 = vmatpush1.bf16.msra.mxu0 0
      %404 = vmatprep.subr.bf16.mxu0 0
      %405 = vmatpush1.bf16.msra.mxu0 0
      %406 = vmatprep.subr.bf16.mxu0 0
      %407 = vmatpush1.bf16.msra.mxu0 0
      %408 = vmatprep.subr.bf16.mxu0 0
      %409 = vmatpush1.bf16.msra.mxu0 0
      %410 = vmatprep.subr.bf16.mxu0 0
      %411 = vmatpush1.bf16.msra.mxu0 0
      %412 = vmatprep.subr.bf16.mxu0 0
      %413 = vmatpush1.bf16.msra.mxu0 0
      %414 = vmatprep.mubr.bf16.mxu0 0
      %415 = vmatmul.mubr.bf16.gmra.mrb[0].mxu0 %v328
      %v416 = vpop.f32.mrb[0].mxu0
      %v417 = vadd.f32 %v324, %v416
      %v418 = vpop.f32.mrb[0].mxu0
      %v419 = vpop.f32.mrb[0].mxu0
      %v420 = vadd.f32 %v324, %v419
      %v421 = vpop.f32.mrb[0].mxu0
      %422 = vmatprep.mubr.bf16.mxu0 0
      %423 = vmatmul.mubr.bf16.gmra.mrb[0].mxu0 %v331
      %v424 = vpop.f32.mrb[0].mxu0
      %v425 = vadd.f32 %v324, %v424
      %v426 = vpop.f32.mrb[0].mxu0
      %v427 = vpop.f32.mrb[0].mxu0
      %v428 = vadd.f32 %v324, %v427
      %v429 = vpop.f32.mrb[0].mxu0
      %430 = vmatprep.mubr.bf16.mxu0 0
      %431 = vmatmul.mubr.bf16.gmra.mrb[0].mxu0 %v334
      %v432 = vpop.f32.mrb[0].mxu0
      %v433 = vadd.f32 %v324, %v432
      %v434 = vpop.f32.mrb[0].mxu0
      %v435 = vpop.f32.mrb[0].mxu0
      %v436 = vadd.f32 %v324, %v435
      %v437 = vpop.f32.mrb[0].mxu0
      %438 = vmatprep.mubr.bf16.mxu0 0
      %439 = vmatmul.mubr.bf16.gmra.mrb[0].mxu0 %v337
      %v440 = vpop.f32.mrb[0].mxu0
      %v441 = vadd.f32 %v324, %v440
      %v442 = vpop.f32.mrb[0].mxu0
      %v443 = vpop.f32.mrb[0].mxu0
      %v444 = vadd.f32 %v324, %v443
      %v445 = vpop.f32.mrb[0].mxu0
      %446 = vmatprep.mubr.bf16.mxu0 0
      %447 = vmatmul.mubr.bf16.gmra.mrb[0].mxu0 %v340
      %v448 = vpop.f32.mrb[0].mxu0
      %v449 = vadd.f32 %v324, %v448
      %v450 = vpop.f32.mrb[0].mxu0
      %v451 = vpop.f32.mrb[0].mxu0
      %v452 = vadd.f32 %v324, %v451
      %v453 = vpop.f32.mrb[0].mxu0
      %454 = vmatprep.mubr.bf16.mxu0 0
      %455 = vmatmul.mubr.bf16.gmra.mrb[0].mxu0 %v343
      %v456 = vpop.f32.mrb[0].mxu0
      %v457 = vadd.f32 %v324, %v456
      %v458 = vpop.f32.mrb[0].mxu0
      %v459 = vpop.f32.mrb[0].mxu0
      %v460 = vadd.f32 %v324, %v459
      %v461 = vpop.f32.mrb[0].mxu0
      %462 = vmatprep.mubr.bf16.mxu0 0
      %463 = vmatmul.mubr.bf16.gmra.mrb[0].mxu0 %v346
      %v464 = vpop.f32.mrb[0].mxu0
      %v465 = vadd.f32 %v324, %v464
      %v466 = vpop.f32.mrb[0].mxu0
      %v467 = vpop.f32.mrb[0].mxu0
      %v468 = vadd.f32 %v324, %v467
      %v469 = vpop.f32.mrb[0].mxu0
      %470 = vmatprep.mubr.bf16.mxu0 0
      %471 = vmatmul.mubr.bf16.gmra.mrb[0].mxu0 %v349
      %v472 = vpop.f32.mrb[0].mxu0
      %v473 = vadd.f32 %v324, %v472
      %v474 = vpop.f32.mrb[0].mxu0
      %v475 = vpop.f32.mrb[0].mxu0
      %v476 = vadd.f32 %v324, %v475
      %v477 = vpop.f32.mrb[0].mxu0
      %478 = vmatprep.mubr.bf16.mxu0 0
      %479 = vmatmul.mubr.bf16.gmra.mrb[0].mxu0 %v352
      %v480 = vpop.f32.mrb[0].mxu0
      %v481 = vadd.f32 %v324, %v480
      %v482 = vpop.f32.mrb[0].mxu0
      %v483 = vpop.f32.mrb[0].mxu0
      %v484 = vadd.f32 %v324, %v483
      %v485 = vpop.f32.mrb[0].mxu0
      %486 = vmatprep.mubr.bf16.mxu0 0
      %487 = vmatmul.mubr.bf16.gmra.mrb[0].mxu0 %v355
      %v488 = vpop.f32.mrb[0].mxu0
      %v489 = vadd.f32 %v324, %v488
      %v490 = vpop.f32.mrb[0].mxu0
      %v491 = vpop.f32.mrb[0].mxu0
      %v492 = vadd.f32 %v324, %v491
      %v493 = vpop.f32.mrb[0].mxu0
      %494 = vmatprep.mubr.bf16.mxu0 0
      %495 = vmatmul.mubr.bf16.gmra.mrb[0].mxu0 %v358
      %v496 = vpop.f32.mrb[0].mxu0
      %v497 = vadd.f32 %v324, %v496
      %v498 = vpop.f32.mrb[0].mxu0
      %v499 = vpop.f32.mrb[0].mxu0
      %v500 = vadd.f32 %v324, %v499
      %v501 = vpop.f32.mrb[0].mxu0
      %502 = vmatprep.mubr.bf16.mxu0 0
      %503 = vmatmul.mubr.bf16.gmra.mrb[0].mxu0 %v361
      %v504 = vpop.f32.mrb[0].mxu0
      %v505 = vadd.f32 %v324, %v504
      %v506 = vpop.f32.mrb[0].mxu0
      %v507 = vpop.f32.mrb[0].mxu0
      %v508 = vadd.f32 %v324, %v507
      %v509 = vpop.f32.mrb[0].mxu0
      %510 = vmatprep.mubr.bf16.mxu0 0
      %511 = vmatmul.mubr.bf16.gmra.mrb[0].mxu0 %v364
      %v512 = vpop.f32.mrb[0].mxu0
      %v513 = vadd.f32 %v324, %v512
      %v514 = vpop.f32.mrb[0].mxu0
      %v515 = vpop.f32.mrb[0].mxu0
      %v516 = vadd.f32 %v324, %v515
      %v517 = vpop.f32.mrb[0].mxu0
      %518 = vmatprep.mubr.bf16.mxu0 0
      %519 = vmatmul.mubr.bf16.gmra.mrb[0].mxu0 %v367
      %v520 = vpop.f32.mrb[0].mxu0
      %v521 = vadd.f32 %v324, %v520
      %v522 = vpop.f32.mrb[0].mxu0
      %v523 = vpop.f32.mrb[0].mxu0
      %v524 = vadd.f32 %v324, %v523
      %v525 = vpop.f32.mrb[0].mxu0
      %526 = vmatprep.mubr.bf16.mxu0 0
      %527 = vmatmul.mubr.bf16.gmra.mrb[0].mxu0 %v370
      %v528 = vpop.f32.mrb[0].mxu0
      %v529 = vadd.f32 %v324, %v528
      %v530 = vpop.f32.mrb[0].mxu0
      %v531 = vpop.f32.mrb[0].mxu0
      %v532 = vadd.f32 %v324, %v531
      %v533 = vpop.f32.mrb[0].mxu0
      %534 = vmatprep.mubr.bf16.mxu0 0
      %535 = vmatmul.mubr.bf16.gmra.mrb[0].mxu0 %v373
      %v536 = vpop.f32.mrb[0].mxu0
      %v537 = vadd.f32 %v324, %v536
      %v538 = vpop.f32.mrb[0].mxu0
      %v539 = vpop.f32.mrb[0].mxu0
      %v540 = vadd.f32 %v324, %v539
      %v541 = vpop.f32.mrb[0].mxu0
      %542 = vdwg.mxu0
      %v543 = vmax.f32 %v417, 0.0
      %v544 = vmax.f32 %v420, 0.0
      %v545 = vmax.f32 %v425, 0.0
      %v546 = vmax.f32 %v428, 0.0
      %v547 = vmax.f32 %v433, 0.0
      %v548 = vmax.f32 %v436, 0.0
      %v549 = vmax.f32 %v441, 0.0
      %v550 = vmax.f32 %v444, 0.0
      %v551 = vmax.f32 %v449, 0.0
      %v552 = vmax.f32 %v452, 0.0
      %v553 = vmax.f32 %v457, 0.0
      %v554 = vmax.f32 %v460, 0.0
      %v555 = vmax.f32 %v465, 0.0
      %v556 = vmax.f32 %v468, 0.0
      %v557 = vmax.f32 %v473, 0.0
      %v558 = vmax.f32 %v476, 0.0
      %v559 = vmax.f32 %v481, 0.0
      %v560 = vmax.f32 %v484, 0.0
      %v561 = vmax.f32 %v489, 0.0
      %v562 = vmax.f32 %v492, 0.0
      %v563 = vmax.f32 %v497, 0.0
      %v564 = vmax.f32 %v500, 0.0
      %v565 = vmax.f32 %v505, 0.0
      %v566 = vmax.f32 %v508, 0.0
      %v567 = vmax.f32 %v513, 0.0
      %v568 = vmax.f32 %v516, 0.0
      %v569 = vmax.f32 %v521, 0.0
      %v570 = vmax.f32 %v524, 0.0
      %v571 = vmax.f32 %v529, 0.0
      %v572 = vmax.f32 %v532, 0.0
      %v573 = vmax.f32 %v537, 0.0
      %v574 = vmax.f32 %v540, 0.0
      %v575 = vpack.c.bf16 %v544, %v543
      %v576 = vpack.c.bf16 %v546, %v545
      %v577 = vpack.c.bf16 %v548, %v547
      %v578 = vpack.c.bf16 %v550, %v549
      %v579 = vpack.c.bf16 %v552, %v551
      %v580 = vpack.c.bf16 %v554, %v553
      %v581 = vpack.c.bf16 %v556, %v555
      %v582 = vpack.c.bf16 %v558, %v557
      %v583 = vpack.c.bf16 %v560, %v559
      %v584 = vpack.c.bf16 %v562, %v561
      %v585 = vpack.c.bf16 %v564, %v563
      %v586 = vpack.c.bf16 %v566, %v565
      %v587 = vpack.c.bf16 %v568, %v567
      %v588 = vpack.c.bf16 %v570, %v569
      %v589 = vpack.c.bf16 %v572, %v571
      %v590 = vpack.c.bf16 %v574, %v573
      %v591 = vld [vmem:[%s3] sm:$0xf]
      %v592 = vld [vmem:[%s3 + $0x4] sm:$0xf]
      %v593 = vld [vmem:[%s3 + $0x8] sm:$0xf]
      %v594 = vld [vmem:[%s3 + $0xc] sm:$0xf]
      %v595 = vld [vmem:[%s4] sm:$0x1]
      %v597 = vlaneseq
      %v598 = vshrl.u32 %v597, 7
      %v599 = vsub.s32 0, %v598
      %v600 = vrot.slane %v595, %v599
      %v606 = vunpack.c.l.b16 %v591
      %v607 = vunpack.c.l.b16 %v592
      %v608 = vunpack.c.l.b16 %v593
      %v609 = vunpack.c.l.b16 %v594
      %v610 = vpack.c.b16 %v607, %v606
      %v611 = vpack.c.b16 %v609, %v608
      %vm614 = vcmask 261120
      %v616 = vsel %vm614, %v575, 0
      %v619 = vsel %vm614, %v576, 0
      %v622 = vsel %vm614, %v577, 0
      %v625 = vsel %vm614, %v578, 0
      %v628 = vsel %vm614, %v579, 0
      %v631 = vsel %vm614, %v580, 0
      %v634 = vsel %vm614, %v581, 0
      %v637 = vsel %vm614, %v582, 0
      %v640 = vsel %vm614, %v583, 0
      %v643 = vsel %vm614, %v584, 0
      %v646 = vsel %vm614, %v585, 0
      %v649 = vsel %vm614, %v586, 0
      %v652 = vsel %vm614, %v587, 0
      %v655 = vsel %vm614, %v588, 0
      %v658 = vsel %vm614, %v589, 0
      %v661 = vsel %vm614, %v590, 0
      %663 = vmatprep.subr.bf16.mxu0 0
      %664 = vmatpush1.bf16.msra.mxu0 %v610
      %665 = vmatprep.subr.bf16.mxu0 0
      %666 = vmatpush1.bf16.msra.mxu0 %v611
      %667 = vmatprep.subr.bf16.mxu0 0
      %668 = vmatpush1.bf16.msra.mxu0 0
      %669 = vmatprep.subr.bf16.mxu0 0
      %670 = vmatpush1.bf16.msra.mxu0 0
      %671 = vmatprep.subr.bf16.mxu0 0
      %672 = vmatpush1.bf16.msra.mxu0 0
      %673 = vmatprep.subr.bf16.mxu0 0
      %674 = vmatpush1.bf16.msra.mxu0 0
      %675 = vmatprep.subr.bf16.mxu0 0
      %676 = vmatpush1.bf16.msra.mxu0 0
      %677 = vmatprep.subr.bf16.mxu0 0
      %678 = vmatpush1.bf16.msra.mxu0 0
      %679 = vmatprep.subr.bf16.mxu0 0
      %680 = vmatpush1.bf16.msra.mxu0 0
      %681 = vmatprep.subr.bf16.mxu0 0
      %682 = vmatpush1.bf16.msra.mxu0 0
      %683 = vmatprep.subr.bf16.mxu0 0
      %684 = vmatpush1.bf16.msra.mxu0 0
      %685 = vmatprep.subr.bf16.mxu0 0
      %686 = vmatpush1.bf16.msra.mxu0 0
      %687 = vmatprep.subr.bf16.mxu0 0
      %688 = vmatpush1.bf16.msra.mxu0 0
      %689 = vmatprep.subr.bf16.mxu0 0
      %690 = vmatpush1.bf16.msra.mxu0 0
      %691 = vmatprep.subr.bf16.mxu0 0
      %692 = vmatpush1.bf16.msra.mxu0 0
      %693 = vmatprep.subr.bf16.mxu0 0
      %694 = vmatpush1.bf16.msra.mxu0 0
      %695 = vmatprep.mubr.bf16.mxu0 0
      %696 = vmatmul.mubr.bf16.gmra.mrb[0].mxu0 %v616
      %v697 = vpop.f32.mrb[0].mxu0
      %v698 = vadd.f32 %v600, %v697
      %v699 = vpop.f32.mrb[0].mxu0
      %v700 = vpop.f32.mrb[0].mxu0
      %v701 = vadd.f32 %v600, %v700
      %v702 = vpop.f32.mrb[0].mxu0
      %703 = vmatprep.mubr.bf16.mxu0 0
      %704 = vmatmul.mubr.bf16.gmra.mrb[0].mxu0 %v619
      %v705 = vpop.f32.mrb[0].mxu0
      %v706 = vadd.f32 %v600, %v705
      %v707 = vpop.f32.mrb[0].mxu0
      %v708 = vpop.f32.mrb[0].mxu0
      %v709 = vadd.f32 %v600, %v708
      %v710 = vpop.f32.mrb[0].mxu0
      %711 = vmatprep.mubr.bf16.mxu0 0
      %712 = vmatmul.mubr.bf16.gmra.mrb[0].mxu0 %v622
      %v713 = vpop.f32.mrb[0].mxu0
      %v714 = vadd.f32 %v600, %v713
      %v715 = vpop.f32.mrb[0].mxu0
      %v716 = vpop.f32.mrb[0].mxu0
      %v717 = vadd.f32 %v600, %v716
      %v718 = vpop.f32.mrb[0].mxu0
      %719 = vmatprep.mubr.bf16.mxu0 0
      %720 = vmatmul.mubr.bf16.gmra.mrb[0].mxu0 %v625
      %v721 = vpop.f32.mrb[0].mxu0
      %v722 = vadd.f32 %v600, %v721
      %v723 = vpop.f32.mrb[0].mxu0
      %v724 = vpop.f32.mrb[0].mxu0
      %v725 = vadd.f32 %v600, %v724
      %v726 = vpop.f32.mrb[0].mxu0
      %727 = vmatprep.mubr.bf16.mxu0 0
      %728 = vmatmul.mubr.bf16.gmra.mrb[0].mxu0 %v628
      %v729 = vpop.f32.mrb[0].mxu0
      %v730 = vadd.f32 %v600, %v729
      %v731 = vpop.f32.mrb[0].mxu0
      %v732 = vpop.f32.mrb[0].mxu0
      %v733 = vadd.f32 %v600, %v732
      %v734 = vpop.f32.mrb[0].mxu0
      %735 = vmatprep.mubr.bf16.mxu0 0
      %736 = vmatmul.mubr.bf16.gmra.mrb[0].mxu0 %v631
      %v737 = vpop.f32.mrb[0].mxu0
      %v738 = vadd.f32 %v600, %v737
      %v739 = vpop.f32.mrb[0].mxu0
      %v740 = vpop.f32.mrb[0].mxu0
      %v741 = vadd.f32 %v600, %v740
      %v742 = vpop.f32.mrb[0].mxu0
      %743 = vmatprep.mubr.bf16.mxu0 0
      %744 = vmatmul.mubr.bf16.gmra.mrb[0].mxu0 %v634
      %v745 = vpop.f32.mrb[0].mxu0
      %v746 = vadd.f32 %v600, %v745
      %v747 = vpop.f32.mrb[0].mxu0
      %v748 = vpop.f32.mrb[0].mxu0
      %v749 = vadd.f32 %v600, %v748
      %v750 = vpop.f32.mrb[0].mxu0
      %751 = vmatprep.mubr.bf16.mxu0 0
      %752 = vmatmul.mubr.bf16.gmra.mrb[0].mxu0 %v637
      %v753 = vpop.f32.mrb[0].mxu0
      %v754 = vadd.f32 %v600, %v753
      %v755 = vpop.f32.mrb[0].mxu0
      %v756 = vpop.f32.mrb[0].mxu0
      %v757 = vadd.f32 %v600, %v756
      %v758 = vpop.f32.mrb[0].mxu0
      %759 = vmatprep.mubr.bf16.mxu0 0
      %760 = vmatmul.mubr.bf16.gmra.mrb[0].mxu0 %v640
      %v761 = vpop.f32.mrb[0].mxu0
      %v762 = vadd.f32 %v600, %v761
      %v763 = vpop.f32.mrb[0].mxu0
      %v764 = vpop.f32.mrb[0].mxu0
      %v765 = vadd.f32 %v600, %v764
      %v766 = vpop.f32.mrb[0].mxu0
      %767 = vmatprep.mubr.bf16.mxu0 0
      %768 = vmatmul.mubr.bf16.gmra.mrb[0].mxu0 %v643
      %v769 = vpop.f32.mrb[0].mxu0
      %v770 = vadd.f32 %v600, %v769
      %v771 = vpop.f32.mrb[0].mxu0
      %v772 = vpop.f32.mrb[0].mxu0
      %v773 = vadd.f32 %v600, %v772
      %v774 = vpop.f32.mrb[0].mxu0
      %775 = vmatprep.mubr.bf16.mxu0 0
      %776 = vmatmul.mubr.bf16.gmra.mrb[0].mxu0 %v646
      %v777 = vpop.f32.mrb[0].mxu0
      %v778 = vadd.f32 %v600, %v777
      %v779 = vpop.f32.mrb[0].mxu0
      %v780 = vpop.f32.mrb[0].mxu0
      %v781 = vadd.f32 %v600, %v780
      %v782 = vpop.f32.mrb[0].mxu0
      %783 = vmatprep.mubr.bf16.mxu0 0
      %784 = vmatmul.mubr.bf16.gmra.mrb[0].mxu0 %v649
      %v785 = vpop.f32.mrb[0].mxu0
      %v786 = vadd.f32 %v600, %v785
      %v787 = vpop.f32.mrb[0].mxu0
      %v788 = vpop.f32.mrb[0].mxu0
      %v789 = vadd.f32 %v600, %v788
      %v790 = vpop.f32.mrb[0].mxu0
      %791 = vmatprep.mubr.bf16.mxu0 0
      %792 = vmatmul.mubr.bf16.gmra.mrb[0].mxu0 %v652
      %v793 = vpop.f32.mrb[0].mxu0
      %v794 = vadd.f32 %v600, %v793
      %v795 = vpop.f32.mrb[0].mxu0
      %v796 = vpop.f32.mrb[0].mxu0
      %v797 = vadd.f32 %v600, %v796
      %v798 = vpop.f32.mrb[0].mxu0
      %799 = vmatprep.mubr.bf16.mxu0 0
      %800 = vmatmul.mubr.bf16.gmra.mrb[0].mxu0 %v655
      %v801 = vpop.f32.mrb[0].mxu0
      %v802 = vadd.f32 %v600, %v801
      %v803 = vpop.f32.mrb[0].mxu0
      %v804 = vpop.f32.mrb[0].mxu0
      %v805 = vadd.f32 %v600, %v804
      %v806 = vpop.f32.mrb[0].mxu0
      %807 = vmatprep.mubr.bf16.mxu0 0
      %808 = vmatmul.mubr.bf16.gmra.mrb[0].mxu0 %v658
      %v809 = vpop.f32.mrb[0].mxu0
      %v810 = vadd.f32 %v600, %v809
      %v811 = vpop.f32.mrb[0].mxu0
      %v812 = vpop.f32.mrb[0].mxu0
      %v813 = vadd.f32 %v600, %v812
      %v814 = vpop.f32.mrb[0].mxu0
      %815 = vmatprep.mubr.bf16.mxu0 0
      %816 = vmatmul.mubr.bf16.gmra.mrb[0].mxu0 %v661
      %v817 = vpop.f32.mrb[0].mxu0
      %v818 = vadd.f32 %v600, %v817
      %v819 = vpop.f32.mrb[0].mxu0
      %v820 = vpop.f32.mrb[0].mxu0
      %v821 = vadd.f32 %v600, %v820
      %v822 = vpop.f32.mrb[0].mxu0
      %823 = vdwg.mxu0
      %vm824 = vcmask 121856
      %825 = vst.msk [vmem:[%s267] sm:$0xff] %vm824, %v698
      %826 = vst.msk [vmem:[%s267 + $0x8] sm:$0xff] %vm824, %v701
      %827 = vst.msk [vmem:[%s267 + $0x10] sm:$0xff] %vm824, %v706
      %828 = vst.msk [vmem:[%s267 + $0x18] sm:$0xff] %vm824, %v709
      %829 = vst.msk [vmem:[%s267 + $0x20] sm:$0xff] %vm824, %v714
      %830 = vst.msk [vmem:[%s267 + $0x28] sm:$0xff] %vm824, %v717
      %831 = vst.msk [vmem:[%s267 + $0x30] sm:$0xff] %vm824, %v722
      %832 = vst.msk [vmem:[%s267 + $0x38] sm:$0xff] %vm824, %v725
      %833 = vst.msk [vmem:[%s267 + $0x40] sm:$0xff] %vm824, %v730
      %834 = vst.msk [vmem:[%s267 + $0x48] sm:$0xff] %vm824, %v733
      %835 = vst.msk [vmem:[%s267 + $0x50] sm:$0xff] %vm824, %v738
      %836 = vst.msk [vmem:[%s267 + $0x58] sm:$0xff] %vm824, %v741
      %837 = vst.msk [vmem:[%s267 + $0x60] sm:$0xff] %vm824, %v746
      %838 = vst.msk [vmem:[%s267 + $0x68] sm:$0xff] %vm824, %v749
      %839 = vst.msk [vmem:[%s267 + $0x70] sm:$0xff] %vm824, %v754
      %840 = vst.msk [vmem:[%s267 + $0x78] sm:$0xff] %vm824, %v757
      %841 = vst.msk [vmem:[%s267 + $0x80] sm:$0xff] %vm824, %v762
      %842 = vst.msk [vmem:[%s267 + $0x88] sm:$0xff] %vm824, %v765
      %843 = vst.msk [vmem:[%s267 + $0x90] sm:$0xff] %vm824, %v770
      %844 = vst.msk [vmem:[%s267 + $0x98] sm:$0xff] %vm824, %v773
      %845 = vst.msk [vmem:[%s267 + $0xa0] sm:$0xff] %vm824, %v778
      %846 = vst.msk [vmem:[%s267 + $0xa8] sm:$0xff] %vm824, %v781
      %847 = vst.msk [vmem:[%s267 + $0xb0] sm:$0xff] %vm824, %v786
      %848 = vst.msk [vmem:[%s267 + $0xb8] sm:$0xff] %vm824, %v789
      %849 = vst.msk [vmem:[%s267 + $0xc0] sm:$0xff] %vm824, %v794
      %850 = vst.msk [vmem:[%s267 + $0xc8] sm:$0xff] %vm824, %v797
      %851 = vst.msk [vmem:[%s267 + $0xd0] sm:$0xff] %vm824, %v802
      %852 = vst.msk [vmem:[%s267 + $0xd8] sm:$0xff] %vm824, %v805
      %853 = vst.msk [vmem:[%s267 + $0xe0] sm:$0xff] %vm824, %v810
      %854 = vst.msk [vmem:[%s267 + $0xe8] sm:$0xff] %vm824, %v813
      %855 = vst.msk [vmem:[%s267 + $0xf0] sm:$0xff] %vm824, %v818
      %856 = vst.msk [vmem:[%s267 + $0xf8] sm:$0xff] %vm824, %v821
      %v873 = vunpack.c.l.b16 %v575
      %v874 = vunpack.c.h.b16 %v575
      %v875 = vunpack.c.l.b16 %v576
      %v876 = vunpack.c.h.b16 %v576
      %v877 = vunpack.c.l.b16 %v577
      %v878 = vunpack.c.h.b16 %v577
      %v879 = vunpack.c.l.b16 %v578
      %v880 = vunpack.c.h.b16 %v578
      %v881 = vunpack.c.l.b16 %v579
      %v882 = vunpack.c.h.b16 %v579
      %v883 = vunpack.c.l.b16 %v580
      %v884 = vunpack.c.h.b16 %v580
      %v885 = vunpack.c.l.b16 %v581
      %v886 = vunpack.c.h.b16 %v581
      %v887 = vunpack.c.l.b16 %v582
      %v888 = vunpack.c.h.b16 %v582
      %v889 = vunpack.c.l.b16 %v583
      %v890 = vunpack.c.h.b16 %v583
      %v891 = vunpack.c.l.b16 %v584
      %v892 = vunpack.c.h.b16 %v584
      %v893 = vunpack.c.l.b16 %v585
      %v894 = vunpack.c.h.b16 %v585
      %v895 = vunpack.c.l.b16 %v586
      %v896 = vunpack.c.h.b16 %v586
      %v897 = vunpack.c.l.b16 %v587
      %v898 = vunpack.c.h.b16 %v587
      %v899 = vunpack.c.l.b16 %v588
      %v900 = vunpack.c.h.b16 %v588
      %v901 = vunpack.c.l.b16 %v589
      %v902 = vunpack.c.h.b16 %v589
      %v903 = vunpack.c.l.b16 %v590
      %v904 = vunpack.c.h.b16 %v590
      %v905 = vpack.c.b16 %v873, %v873
      %v906 = vpack.c.b16 %v874, %v874
      %v907 = vpack.c.b16 %v875, %v875
      %v908 = vpack.c.b16 %v876, %v876
      %v909 = vpack.c.b16 %v877, %v877
      %v910 = vpack.c.b16 %v878, %v878
      %v911 = vpack.c.b16 %v879, %v879
      %v912 = vpack.c.b16 %v880, %v880
      %v913 = vpack.c.b16 %v881, %v881
      %v914 = vpack.c.b16 %v882, %v882
      %v915 = vpack.c.b16 %v883, %v883
      %v916 = vpack.c.b16 %v884, %v884
      %v917 = vpack.c.b16 %v885, %v885
      %v918 = vpack.c.b16 %v886, %v886
      %v919 = vpack.c.b16 %v887, %v887
      %v920 = vpack.c.b16 %v888, %v888
      %v921 = vpack.c.b16 %v889, %v889
      %v922 = vpack.c.b16 %v890, %v890
      %v923 = vpack.c.b16 %v891, %v891
      %v924 = vpack.c.b16 %v892, %v892
      %v925 = vpack.c.b16 %v893, %v893
      %v926 = vpack.c.b16 %v894, %v894
      %v927 = vpack.c.b16 %v895, %v895
      %v928 = vpack.c.b16 %v896, %v896
      %v929 = vpack.c.b16 %v897, %v897
      %v930 = vpack.c.b16 %v898, %v898
      %v931 = vpack.c.b16 %v899, %v899
      %v932 = vpack.c.b16 %v900, %v900
      %v933 = vpack.c.b16 %v901, %v901
      %v934 = vpack.c.b16 %v902, %v902
      %v935 = vpack.c.b16 %v903, %v903
      %v936 = vpack.c.b16 %v904, %v904
      %vm969 = vcmask 257024
      %970 = vst.msk [vmem:[%s261] sm:$0xf] %vm969, %v905
      %971 = vst.msk [vmem:[%s261 + $0x4] sm:$0xf] %vm969, %v906
      %972 = vst.msk [vmem:[%s261 + $0x8] sm:$0xf] %vm969, %v907
      %973 = vst.msk [vmem:[%s261 + $0xc] sm:$0xf] %vm969, %v908
      %974 = vst.msk [vmem:[%s261 + $0x10] sm:$0xf] %vm969, %v909
      %975 = vst.msk [vmem:[%s261 + $0x14] sm:$0xf] %vm969, %v910
      %976 = vst.msk [vmem:[%s261 + $0x18] sm:$0xf] %vm969, %v911
      %977 = vst.msk [vmem:[%s261 + $0x1c] sm:$0xf] %vm969, %v912
      %978 = vst.msk [vmem:[%s261 + $0x20] sm:$0xf] %vm969, %v913
      %979 = vst.msk [vmem:[%s261 + $0x24] sm:$0xf] %vm969, %v914
      %980 = vst.msk [vmem:[%s261 + $0x28] sm:$0xf] %vm969, %v915
      %981 = vst.msk [vmem:[%s261 + $0x2c] sm:$0xf] %vm969, %v916
      %982 = vst.msk [vmem:[%s261 + $0x30] sm:$0xf] %vm969, %v917
      %983 = vst.msk [vmem:[%s261 + $0x34] sm:$0xf] %vm969, %v918
      %984 = vst.msk [vmem:[%s261 + $0x38] sm:$0xf] %vm969, %v919
      %985 = vst.msk [vmem:[%s261 + $0x3c] sm:$0xf] %vm969, %v920
      %986 = vst.msk [vmem:[%s261 + $0x40] sm:$0xf] %vm969, %v921
      %987 = vst.msk [vmem:[%s261 + $0x44] sm:$0xf] %vm969, %v922
      %988 = vst.msk [vmem:[%s261 + $0x48] sm:$0xf] %vm969, %v923
      %989 = vst.msk [vmem:[%s261 + $0x4c] sm:$0xf] %vm969, %v924
      %990 = vst.msk [vmem:[%s261 + $0x50] sm:$0xf] %vm969, %v925
      %991 = vst.msk [vmem:[%s261 + $0x54] sm:$0xf] %vm969, %v926
      %992 = vst.msk [vmem:[%s261 + $0x58] sm:$0xf] %vm969, %v927
      %993 = vst.msk [vmem:[%s261 + $0x5c] sm:$0xf] %vm969, %v928
      %994 = vst.msk [vmem:[%s261 + $0x60] sm:$0xf] %vm969, %v929
      %995 = vst.msk [vmem:[%s261 + $0x64] sm:$0xf] %vm969, %v930
      %996 = vst.msk [vmem:[%s261 + $0x68] sm:$0xf] %vm969, %v931
      %997 = vst.msk [vmem:[%s261 + $0x6c] sm:$0xf] %vm969, %v932
      %998 = vst.msk [vmem:[%s261 + $0x70] sm:$0xf] %vm969, %v933
      %999 = vst.msk [vmem:[%s261 + $0x74] sm:$0xf] %vm969, %v934
      %1000 = vst.msk [vmem:[%s261 + $0x78] sm:$0xf] %vm969, %v935
      %1001 = vst.msk [vmem:[%s261 + $0x7c] sm:$0xf] %vm969, %v936
      %s1002 = smul.u32 32, %s18
      %p1003 = scmp.lt.s32.totalorder %s1002, 63
      %s1004 = scalar_select %p1003, %s1002, 63
      %s1005 = smul.addr %s1004, 4
      %s1006 = scalar_lea.vmem %s5, %s1005
      %s1007 = smul.u32 32, %s18
      %p1008 = scmp.lt.s32.totalorder %s1007, 63
      %s1009 = scalar_select %p1008, %s1007, 63
      %s1010 = smul.addr %s1009, 8
      %s1011 = scalar_lea.vmem %s6, %s1010
      // Predicated region
      $region41: #{_rcnn_forward_impl.2} parent=39 // pred_check
        %p1012 = pneg %p146
      $region42: #{_rcnn_forward_impl.2} parent=39 // pred_check_branch
        %1014 = sbr.rel (%p1012) target = $region44
      $region43: #{_rcnn_forward_impl.2} parent=39 // pred_region
        %s1015 = smul.u32 32, %s18
      $region44: #{_rcnn_forward_impl.2} parent=39 // pred_fallthru
        _
      // Predicated region
      $region45: #{_rcnn_forward_impl.2} parent=39 // pred_check
        %p1016 = pneg %p172
      $region46: #{_rcnn_forward_impl.2} parent=39 // pred_check_branch
        %1018 = sbr.rel (%p1016) target = $region48
      $region47: #{_rcnn_forward_impl.2} parent=39 // pred_region
        %s1019 = smul.u32 32, %s18
      $region48: #{_rcnn_forward_impl.2} parent=39 // pred_fallthru
        _
    $region40: #{_rcnn_forward_impl.2} parent=5 // pred_fallthru
      _
    %p1020 = scmp.le.s32.totalorder 2, %s13
    // Predicated region
    $region49: #{_rcnn_forward_impl.2} parent=5 // pred_check
      %p1021 = pneg %p1020
    $region50: #{_rcnn_forward_impl.2} parent=5 // pred_check_branch
      %1023 = sbr.rel (%p1021) target = $region52
    $region51: #{_rcnn_forward_impl.2} parent=5 // pred_region
      %s1024 = ssub.s32 %s13, 2
      // Predicated region
      $region53: #{_rcnn_forward_impl.2} parent=51 // pred_check
        %p1025 = pneg %p152
      $region54: #{_rcnn_forward_impl.2} parent=51 // pred_check_branch
        %1027 = sbr.rel (%p1025) target = $region56
      $region55: #{_rcnn_forward_impl.2} parent=51 // pred_region
        %s1028 = smul.u32 32, %s19
        %p1029 = scmp.lt.s32.totalorder %s1028, 63
        %s1030 = scalar_select %p1029, %s1028, 63
        %s1031 = smul.addr %s1030, 4
        %s1032 = scalar_lea.vmem %s5, %s1031
      $region56: #{_rcnn_forward_impl.2} parent=51 // pred_fallthru
        _
      // Predicated region
      $region57: #{_rcnn_forward_impl.2} parent=51 // pred_check
        %p1033 = pneg %p178
      $region58: #{_rcnn_forward_impl.2} parent=51 // pred_check_branch
        %1035 = sbr.rel (%p1033) target = $region60
      $region59: #{_rcnn_forward_impl.2} parent=51 // pred_region
        %s1036 = smul.u32 32, %s19
        %p1037 = scmp.lt.s32.totalorder %s1036, 63
        %s1038 = scalar_select %p1037, %s1036, 63
        %s1039 = smul.addr %s1038, 8
        %s1040 = scalar_lea.vmem %s6, %s1039
      $region60: #{_rcnn_forward_impl.2} parent=51 // pred_fallthru
        _
    $region52: #{_rcnn_forward_impl.2} parent=5 // pred_fallthru
      _
  $region6: #{_rcnn_forward_impl.2} parent=0 // loop_footer
    %s17 = sadd.s32 1, %s13
  $region7: #{_rcnn_forward_impl.2} parent=0 // loop_footer_branch
    %12 = sbr.rel target = $region3
  $region8: #{_rcnn_forward_impl.2} parent=0 // loop_exit
    _

// kernel: tile.8
$region0: #{tile.8}
  #allocation0 [shape = 's32[1]{0}', space=sflag, size = 0x4, scoped, tag = 'scoped memory for tile.8']
  %s0 = inlined_call_operand.vmem [shape: f32[3], index: 0, kind: input, shape index: {}]
  %s1 = inlined_call_operand.vmem [shape: f32[256,3], index: 1, kind: output, shape index: {}]
  // Predicated region
  $region2: #{tile.8} parent=0 // pred_check
    _
  $region3: #{tile.8} parent=0 // pred_check_branch
    %3 = sbr.rel (0) target = $region5
  $region4: #{tile.8} parent=0 // pred_region
    _
  $region5: #{tile.8} parent=0 // pred_fallthru
    _
  %v4 = vld [vmem:[%s0] ss:$0 sm:$0xff]
  %5 = vst [vmem:[%s1] sm:$0xff] %v4
  %s6 = scalar_lea.vmem %s1, 8
  %7 = vst [vmem:[%s6] sm:$0xff] %v4
  %s8 = scalar_lea.vmem %s1, 16
  %9 = vst [vmem:[%s8] sm:$0xff] %v4
  %s10 = scalar_lea.vmem %s1, 24
  %11 = vst [vmem:[%s10] sm:$0xff] %v4
  %s12 = scalar_lea.vmem %s1, 32
  %13 = vst [vmem:[%s12] sm:$0xff] %v4
  %s14 = scalar_lea.vmem %s1, 40
  %15 = vst [vmem:[%s14] sm:$0xff] %v4
  %s16 = scalar_lea.vmem %s1, 48
  %17 = vst [vmem:[%s16] sm:$0xff] %v4
  %s18 = scalar_lea.vmem %s1, 56
  %19 = vst [vmem:[%s18] sm:$0xff] %v4
  %s20 = scalar_lea.vmem %s1, 64
  %21 = vst [vmem:[%s20] sm:$0xff] %v4
  %s22 = scalar_lea.vmem %s1, 72
  %23 = vst [vmem:[%s22] sm:$0xff] %v4
  %s24 = scalar_lea.vmem %s1, 80
  %25 = vst [vmem:[%s24] sm:$0xff] %v4
  %s26 = scalar_lea.vmem %s1, 88
  %27 = vst [vmem:[%s26] sm:$0xff] %v4
  %s28 = scalar_lea.vmem %s1, 96
  %29 = vst [vmem:[%s28] sm:$0xff] %v4
  %s30 = scalar_lea.vmem %s1, 104
  %31 = vst [vmem:[%s30] sm:$0xff] %v4
  %s32 = scalar_lea.vmem %s1, 112
  %33 = vst [vmem:[%s32] sm:$0xff] %v4
  %s34 = scalar_lea.vmem %s1, 120
  %35 = vst [vmem:[%s34] sm:$0xff] %v4
  %s36 = scalar_lea.vmem %s1, 128
  %37 = vst [vmem:[%s36] sm:$0xff] %v4
  %s38 = scalar_lea.vmem %s1, 136
  %39 = vst [vmem:[%s38] sm:$0xff] %v4
  %s40 = scalar_lea.vmem %s1, 144
  %41 = vst [vmem:[%s40] sm:$0xff] %v4
  %s42 = scalar_lea.vmem %s1, 152
  %43 = vst [vmem:[%s42] sm:$0xff] %v4
  %s44 = scalar_lea.vmem %s1, 160
  %45 = vst [vmem:[%s44] sm:$0xff] %v4
  %s46 = scalar_lea.vmem %s1, 168
  %47 = vst [vmem:[%s46] sm:$0xff] %v4
  %s48 = scalar_lea.vmem %s1, 176
  %49 = vst [vmem:[%s48] sm:$0xff] %v4
  %s50 = scalar_lea.vmem %s1, 184
  %51 = vst [vmem:[%s50] sm:$0xff] %v4
  %s52 = scalar_lea.vmem %s1, 192
  %53 = vst [vmem:[%s52] sm:$0xff] %v4
  %s54 = scalar_lea.vmem %s1, 200
  %55 = vst [vmem:[%s54] sm:$0xff] %v4
  %s56 = scalar_lea.vmem %s1, 208
  %57 = vst [vmem:[%s56] sm:$0xff] %v4
  %s58 = scalar_lea.vmem %s1, 216
  %59 = vst [vmem:[%s58] sm:$0xff] %v4
  %s60 = scalar_lea.vmem %s1, 224
  %61 = vst [vmem:[%s60] sm:$0xff] %v4
  %s62 = scalar_lea.vmem %s1, 232
  %63 = vst [vmem:[%s62] sm:$0xff] %v4
  %s64 = scalar_lea.vmem %s1, 240
  %65 = vst [vmem:[%s64] sm:$0xff] %v4
  %s66 = scalar_lea.vmem %s1, 248
  %67 = vst [vmem:[%s66] sm:$0xff] %v4

// kernel: neg.1
$region0: #{neg.1}
  #allocation0 [shape = 's32[1]{0}', space=sflag, size = 0x4, scoped, tag = 'scoped memory for neg.1']
  %s0 = inlined_call_operand.vmem [shape: f32[2,8], index: 0, kind: input, shape index: {}]
  %s1 = inlined_call_operand.vmem [shape: f32[2,8], index: 1, kind: output, shape index: {}]
  %v2 = vld [vmem:[%s0] sm:$0xff]
  %3 = xla_tuple %v2
  %4 = xla_tuple %3
  %v5 = vxor.u32 %v2, 2147483648
  %6 = xla_tuple %v5
  %7 = vst [vmem:[%s1] sm:$0xff] %v5

// kernel: _rcnn_forward_impl.3
$region0: #{_rcnn_forward_impl.3}
  #allocation0 [shape = 'u32[]', space=smem, size = 0x4, offset = 0x4, fixed_abs, tag = 'smem constant byte address 0x4 - core index']
  #allocation1 [shape = 'u32[144,128]{1,0:T(1,128)}', space=vmem, size = 0x12000, scoped, tag = 'internal scratch']
  %s0 = inlined_call_operand.vmem [shape: bf16[16,32], index: 0, kind: input, shape index: {}]
  %s1 = inlined_call_operand.vmem [shape: f32[32,64], index: 1, kind: input, shape index: {}]
  %s2 = inlined_call_operand.vmem [shape: f32[1,64], index: 2, kind: input, shape index: {}]
  %s3 = inlined_call_operand.vmem [shape: f32[64,64], index: 3, kind: input, shape index: {}]
  %s4 = inlined_call_operand.vmem [shape: f32[1,64], index: 4, kind: input, shape index: {}]
  %s5 = inlined_call_operand.vmem [shape: f32[64,11], index: 5, kind: input, shape index: {}]
  %s6 = inlined_call_operand.vmem [shape: f32[1,11], index: 6, kind: input, shape index: {}]
  %s7 = inlined_call_operand.vmem [shape: f32[16,11], index: 7, kind: output, shape index: {}]
  %s8 = sld [smem:[#allocation0]]
  $region38: #{_rcnn_forward_impl.3} parent=0
    _
  %s10 = ssub.s32 1, %s8
  %s11 = scalar_select 0, %s10, %s8
  // Predicated region
  $region2: #{_rcnn_forward_impl.3} parent=0 // pred_check
    _
  $region3: #{_rcnn_forward_impl.3} parent=0 // pred_check_branch
    %13 = sbr.rel (0) target = $region5
  $region4: #{_rcnn_forward_impl.3} parent=0 // pred_region
    _
  $region5: #{_rcnn_forward_impl.3} parent=0 // pred_fallthru
    _
  // Predicated region
  $region6: #{_rcnn_forward_impl.3} parent=0 // pred_check
    _
  $region7: #{_rcnn_forward_impl.3} parent=0 // pred_check_branch
    %15 = sbr.rel (0) target = $region9
  $region8: #{_rcnn_forward_impl.3} parent=0 // pred_region
    _
  $region9: #{_rcnn_forward_impl.3} parent=0 // pred_fallthru
    _
  // Predicated region
  $region10: #{_rcnn_forward_impl.3} parent=0 // pred_check
    _
  $region11: #{_rcnn_forward_impl.3} parent=0 // pred_check_branch
    %17 = sbr.rel (0) target = $region13
  $region12: #{_rcnn_forward_impl.3} parent=0 // pred_region
    _
  $region13: #{_rcnn_forward_impl.3} parent=0 // pred_fallthru
    _
  // Predicated region
  $region14: #{_rcnn_forward_impl.3} parent=0 // pred_check
    _
  $region15: #{_rcnn_forward_impl.3} parent=0 // pred_check_branch
    %19 = sbr.rel (0) target = $region17
  $region16: #{_rcnn_forward_impl.3} parent=0 // pred_region
    _
  $region17: #{_rcnn_forward_impl.3} parent=0 // pred_fallthru
    _
  // Predicated region
  $region18: #{_rcnn_forward_impl.3} parent=0 // pred_check
    _
  $region19: #{_rcnn_forward_impl.3} parent=0 // pred_check_branch
    %21 = sbr.rel (0) target = $region21
  $region20: #{_rcnn_forward_impl.3} parent=0 // pred_region
    _
  $region21: #{_rcnn_forward_impl.3} parent=0 // pred_fallthru
    _
  // Predicated region
  $region22: #{_rcnn_forward_impl.3} parent=0 // pred_check
    _
  $region23: #{_rcnn_forward_impl.3} parent=0 // pred_check_branch
    %23 = sbr.rel (0) target = $region25
  $region24: #{_rcnn_forward_impl.3} parent=0 // pred_region
    _
  $region25: #{_rcnn_forward_impl.3} parent=0 // pred_fallthru
    _
  // Predicated region
  $region26: #{_rcnn_forward_impl.3} parent=0 // pred_check
    _
  $region27: #{_rcnn_forward_impl.3} parent=0 // pred_check_branch
    %25 = sbr.rel (0) target = $region29
  $region28: #{_rcnn_forward_impl.3} parent=0 // pred_region
    _
  $region29: #{_rcnn_forward_impl.3} parent=0 // pred_fallthru
    _
  %v26 = vld [vmem:[%s0] sm:$0xf]
  %v27 = vld [vmem:[%s0 + $0x4] sm:$0xf]
  %v28 = vunpack.c.l.bf16 %v26
  %v29 = vunpack.c.l.bf16 %v27
  %v30 = vld [vmem:[%s1] sm:$0xff]
  %v31 = vld [vmem:[%s1 + $0x8] sm:$0xff]
  %v32 = vld [vmem:[%s1 + $0x10] sm:$0xff]
  %v33 = vld [vmem:[%s1 + $0x18] sm:$0xff]
  %v34 = vld [vmem:[%s2] sm:$0x1]
  %v36 = vlaneseq
  %v37 = vshrl.u32 %v36, 7
  %v38 = vsub.s32 0, %v37
  %v39 = vrot.slane %v34, %v38
  %vm41 = vcmask 261120
  %v43 = vsel %vm41, %v28, 0
  %v46 = vsel %vm41, %v29, 0
  %48 = vmatprep.subr.mxu0 0.0
  %49 = vmatpush1.msra.mxu0 %v30
  %50 = vmatprep.subr.mxu0 0.0
  %51 = vmatpush1.msra.mxu0 %v31
  %52 = vmatprep.subr.mxu0 0.0
  %53 = vmatpush1.msra.mxu0 %v32
  %54 = vmatprep.subr.mxu0 0.0
  %55 = vmatpush1.msra.mxu0 %v33
  %56 = vmatprep.subr.mxu0 0.0
  %57 = vmatpush1.msra.mxu0 0.0
  %58 = vmatprep.subr.mxu0 0.0
  %59 = vmatpush1.msra.mxu0 0.0
  %60 = vmatprep.subr.mxu0 0.0
  %61 = vmatpush1.msra.mxu0 0.0
  %62 = vmatprep.subr.mxu0 0.0
  %63 = vmatpush1.msra.mxu0 0.0
  %64 = vmatprep.subr.mxu0 0.0
  %65 = vmatpush1.msra.mxu0 0.0
  %66 = vmatprep.subr.mxu0 0.0
  %67 = vmatpush1.msra.mxu0 0.0
  %68 = vmatprep.subr.mxu0 0.0
  %69 = vmatpush1.msra.mxu0 0.0
  %70 = vmatprep.subr.mxu0 0.0
  %71 = vmatpush1.msra.mxu0 0.0
  %72 = vmatprep.subr.mxu0 0.0
  %73 = vmatpush1.msra.mxu0 0.0
  %74 = vmatprep.subr.mxu0 0.0
  %75 = vmatpush1.msra.mxu0 0.0
  %76 = vmatprep.subr.mxu0 0.0
  %77 = vmatpush1.msra.mxu0 0.0
  %78 = vmatprep.subr.mxu0 0.0
  %79 = vmatpush1.msra.mxu0 0.0
  %80 = vmatprep.subr.mxu0 0.0
  %81 = vmatpush1.msra.mxu0 0.0
  %82 = vmatprep.subr.mxu0 0.0
  %83 = vmatpush1.msra.mxu0 0.0
  %84 = vmatprep.subr.mxu0 0.0
  %85 = vmatpush1.msra.mxu0 0.0
  %86 = vmatprep.subr.mxu0 0.0
  %87 = vmatpush1.msra.mxu0 0.0
  %88 = vmatprep.subr.mxu0 0.0
  %89 = vmatpush1.msra.mxu0 0.0
  %90 = vmatprep.subr.mxu0 0.0
  %91 = vmatpush1.msra.mxu0 0.0
  %92 = vmatprep.subr.mxu0 0.0
  %93 = vmatpush1.msra.mxu0 0.0
  %94 = vmatprep.subr.mxu0 0.0
  %95 = vmatpush1.msra.mxu0 0.0
  %96 = vmatprep.subr.mxu0 0.0
  %97 = vmatpush1.msra.mxu0 0.0
  %98 = vmatprep.subr.mxu0 0.0
  %99 = vmatpush1.msra.mxu0 0.0
  %100 = vmatprep.subr.mxu0 0.0
  %101 = vmatpush1.msra.mxu0 0.0
  %102 = vmatprep.subr.mxu0 0.0
  %103 = vmatpush1.msra.mxu0 0.0
  %104 = vmatprep.subr.mxu0 0.0
  %105 = vmatpush1.msra.mxu0 0.0
  %106 = vmatprep.subr.mxu0 0.0
  %107 = vmatpush1.msra.mxu0 0.0
  %108 = vmatprep.subr.mxu0 0.0
  %109 = vmatpush1.msra.mxu0 0.0
  %110 = vmatprep.subr.mxu0 0.0
  %111 = vmatpush1.msra.mxu0 0.0
  %112 = vmatprep.mubr.f32.mxu0 0.0
  %113 = vmatmul.mubr.f32.gmra.mrb[0].mxu0 %v43
  %v114 = vpop.f32.mrb[0].mxu0
  %v115 = vadd.f32 %v39, %v114
  %v116 = vpop.f32.mrb[0].mxu0
  %117 = vmatprep.mubr.f32.mxu0 0.0
  %118 = vmatmul.mubr.f32.gmra.mrb[0].mxu0 %v46
  %v119 = vpop.f32.mrb[0].mxu0
  %v120 = vadd.f32 %v39, %v119
  %v121 = vpop.f32.mrb[0].mxu0
  %122 = vdwg.mxu0
  %v123 = vmax.f32 %v115, 0.0
  %v124 = vmax.f32 %v120, 0.0
  %v125 = vld [vmem:[%s3] sm:$0xff]
  %v126 = vld [vmem:[%s3 + $0x8] sm:$0xff]
  %v127 = vld [vmem:[%s3 + $0x10] sm:$0xff]
  %v128 = vld [vmem:[%s3 + $0x18] sm:$0xff]
  %v129 = vld [vmem:[%s3 + $0x20] sm:$0xff]
  %v130 = vld [vmem:[%s3 + $0x28] sm:$0xff]
  %v131 = vld [vmem:[%s3 + $0x30] sm:$0xff]
  %v132 = vld [vmem:[%s3 + $0x38] sm:$0xff]
  %v133 = vld [vmem:[%s4] sm:$0x1]
  %v135 = vlaneseq
  %v136 = vshrl.u32 %v135, 7
  %v137 = vsub.s32 0, %v136
  %v138 = vrot.slane %v133, %v137
  %vm140 = vcmask 523264
  %v142 = vsel %vm140, %v123, 0
  %v145 = vsel %vm140, %v124, 0
  %147 = vmatprep.subr.mxu0 0.0
  %148 = vmatpush1.msra.mxu0 %v125
  %149 = vmatprep.subr.mxu0 0.0
  %150 = vmatpush1.msra.mxu0 %v126
  %151 = vmatprep.subr.mxu0 0.0
  %152 = vmatpush1.msra.mxu0 %v127
  %153 = vmatprep.subr.mxu0 0.0
  %154 = vmatpush1.msra.mxu0 %v128
  %155 = vmatprep.subr.mxu0 0.0
  %156 = vmatpush1.msra.mxu0 %v129
  %157 = vmatprep.subr.mxu0 0.0
  %158 = vmatpush1.msra.mxu0 %v130
  %159 = vmatprep.subr.mxu0 0.0
  %160 = vmatpush1.msra.mxu0 %v131
  %161 = vmatprep.subr.mxu0 0.0
  %162 = vmatpush1.msra.mxu0 %v132
  %163 = vmatprep.subr.mxu0 0.0
  %164 = vmatpush1.msra.mxu0 0.0
  %165 = vmatprep.subr.mxu0 0.0
  %166 = vmatpush1.msra.mxu0 0.0
  %167 = vmatprep.subr.mxu0 0.0
  %168 = vmatpush1.msra.mxu0 0.0
  %169 = vmatprep.subr.mxu0 0.0
  %170 = vmatpush1.msra.mxu0 0.0
  %171 = vmatprep.subr.mxu0 0.0
  %172 = vmatpush1.msra.mxu0 0.0
  %173 = vmatprep.subr.mxu0 0.0
  %174 = vmatpush1.msra.mxu0 0.0
  %175 = vmatprep.subr.mxu0 0.0
  %176 = vmatpush1.msra.mxu0 0.0
  %177 = vmatprep.subr.mxu0 0.0
  %178 = vmatpush1.msra.mxu0 0.0
  %179 = vmatprep.subr.mxu0 0.0
  %180 = vmatpush1.msra.mxu0 0.0
  %181 = vmatprep.subr.mxu0 0.0
  %182 = vmatpush1.msra.mxu0 0.0
  %183 = vmatprep.subr.mxu0 0.0
  %184 = vmatpush1.msra.mxu0 0.0
  %185 = vmatprep.subr.mxu0 0.0
  %186 = vmatpush1.msra.mxu0 0.0
  %187 = vmatprep.subr.mxu0 0.0
  %188 = vmatpush1.msra.mxu0 0.0
  %189 = vmatprep.subr.mxu0 0.0
  %190 = vmatpush1.msra.mxu0 0.0
  %191 = vmatprep.subr.mxu0 0.0
  %192 = vmatpush1.msra.mxu0 0.0
  %193 = vmatprep.subr.mxu0 0.0
  %194 = vmatpush1.msra.mxu0 0.0
  %195 = vmatprep.subr.mxu0 0.0
  %196 = vmatpush1.msra.mxu0 0.0
  %197 = vmatprep.subr.mxu0 0.0
  %198 = vmatpush1.msra.mxu0 0.0
  %199 = vmatprep.subr.mxu0 0.0
  %200 = vmatpush1.msra.mxu0 0.0
  %201 = vmatprep.subr.mxu0 0.0
  %202 = vmatpush1.msra.mxu0 0.0
  %203 = vmatprep.subr.mxu0 0.0
  %204 = vmatpush1.msra.mxu0 0.0
  %205 = vmatprep.subr.mxu0 0.0
  %206 = vmatpush1.msra.mxu0 0.0
  %207 = vmatprep.subr.mxu0 0.0
  %208 = vmatpush1.msra.mxu0 0.0
  %209 = vmatprep.subr.mxu0 0.0
  %210 = vmatpush1.msra.mxu0 0.0
  %211 = vmatprep.mubr.f32.mxu0 0.0
  %212 = vmatmul.mubr.f32.gmra.mrb[0].mxu0 %v142
  %v213 = vpop.f32.mrb[0].mxu0
  %v214 = vadd.f32 %v138, %v213
  %v215 = vpop.f32.mrb[0].mxu0
  %216 = vmatprep.mubr.f32.mxu0 0.0
  %217 = vmatmul.mubr.f32.gmra.mrb[0].mxu0 %v145
  %v218 = vpop.f32.mrb[0].mxu0
  %v219 = vadd.f32 %v138, %v218
  %v220 = vpop.f32.mrb[0].mxu0
  %221 = vdwg.mxu0
  %v222 = vmax.f32 %v214, 0.0
  %v223 = vmax.f32 %v219, 0.0
  %v224 = vld [vmem:[%s5] sm:$0xff]
  %v225 = vld [vmem:[%s5 + $0x8] sm:$0xff]
  %v226 = vld [vmem:[%s5 + $0x10] sm:$0xff]
  %v227 = vld [vmem:[%s5 + $0x18] sm:$0xff]
  %v228 = vld [vmem:[%s5 + $0x20] sm:$0xff]
  %v229 = vld [vmem:[%s5 + $0x28] sm:$0xff]
  %v230 = vld [vmem:[%s5 + $0x30] sm:$0xff]
  %v231 = vld [vmem:[%s5 + $0x38] sm:$0xff]
  %v232 = vld [vmem:[%s6] sm:$0x1]
  %v234 = vlaneseq
  %v235 = vshrl.u32 %v234, 7
  %v236 = vsub.s32 0, %v235
  %v237 = vrot.slane %v232, %v236
  %v240 = vsel %vm140, %v222, 0
  %v243 = vsel %vm140, %v223, 0
  %245 = vmatprep.subr.mxu0 0.0
  %246 = vmatpush1.msra.mxu0 %v224
  %247 = vmatprep.subr.mxu0 0.0
  %248 = vmatpush1.msra.mxu0 %v225
  %249 = vmatprep.subr.mxu0 0.0
  %250 = vmatpush1.msra.mxu0 %v226
  %251 = vmatprep.subr.mxu0 0.0
  %252 = vmatpush1.msra.mxu0 %v227
  %253 = vmatprep.subr.mxu0 0.0
  %254 = vmatpush1.msra.mxu0 %v228
  %255 = vmatprep.subr.mxu0 0.0
  %256 = vmatpush1.msra.mxu0 %v229
  %257 = vmatprep.subr.mxu0 0.0
  %258 = vmatpush1.msra.mxu0 %v230
  %259 = vmatprep.subr.mxu0 0.0
  %260 = vmatpush1.msra.mxu0 %v231
  %261 = vmatprep.subr.mxu0 0.0
  %262 = vmatpush1.msra.mxu0 0.0
  %263 = vmatprep.subr.mxu0 0.0
  %264 = vmatpush1.msra.mxu0 0.0
  %265 = vmatprep.subr.mxu0 0.0
  %266 = vmatpush1.msra.mxu0 0.0
  %267 = vmatprep.subr.mxu0 0.0
  %268 = vmatpush1.msra.mxu0 0.0
  %269 = vmatprep.subr.mxu0 0.0
  %270 = vmatpush1.msra.mxu0 0.0
  %271 = vmatprep.subr.mxu0 0.0
  %272 = vmatpush1.msra.mxu0 0.0
  %273 = vmatprep.subr.mxu0 0.0
  %274 = vmatpush1.msra.mxu0 0.0
  %275 = vmatprep.subr.mxu0 0.0
  %276 = vmatpush1.msra.mxu0 0.0
  %277 = vmatprep.subr.mxu0 0.0
  %278 = vmatpush1.msra.mxu0 0.0
  %279 = vmatprep.subr.mxu0 0.0
  %280 = vmatpush1.msra.mxu0 0.0
  %281 = vmatprep.subr.mxu0 0.0
  %282 = vmatpush1.msra.mxu0 0.0
  %283 = vmatprep.subr.mxu0 0.0
  %284 = vmatpush1.msra.mxu0 0.0
  %285 = vmatprep.subr.mxu0 0.0
  %286 = vmatpush1.msra.mxu0 0.0
  %287 = vmatprep.subr.mxu0 0.0
  %288 = vmatpush1.msra.mxu0 0.0
  %289 = vmatprep.subr.mxu0 0.0
  %290 = vmatpush1.msra.mxu0 0.0
  %291 = vmatprep.subr.mxu0 0.0
  %292 = vmatpush1.msra.mxu0 0.0
  %293 = vmatprep.subr.mxu0 0.0
  %294 = vmatpush1.msra.mxu0 0.0
  %295 = vmatprep.subr.mxu0 0.0
  %296 = vmatpush1.msra.mxu0 0.0
  %297 = vmatprep.subr.mxu0 0.0
  %298 = vmatpush1.msra.mxu0 0.0
  %299 = vmatprep.subr.mxu0 0.0
  %300 = vmatpush1.msra.mxu0 0.0
  %301 = vmatprep.subr.mxu0 0.0
  %302 = vmatpush1.msra.mxu0 0.0
  %303 = vmatprep.subr.mxu0 0.0
  %304 = vmatpush1.msra.mxu0 0.0
  %305 = vmatprep.subr.mxu0 0.0
  %306 = vmatpush1.msra.mxu0 0.0
  %307 = vmatprep.subr.mxu0 0.0
  %308 = vmatpush1.msra.mxu0 0.0
  %309 = vmatprep.mubr.f32.mxu0 0.0
  %310 = vmatmul.mubr.f32.gmra.mrb[0].mxu0 %v240
  %v311 = vpop.f32.mrb[0].mxu0
  %v312 = vadd.f32 %v237, %v311
  %v313 = vpop.f32.mrb[0].mxu0
  %314 = vmatprep.mubr.f32.mxu0 0.0
  %315 = vmatmul.mubr.f32.gmra.mrb[0].mxu0 %v243
  %v316 = vpop.f32.mrb[0].mxu0
  %v317 = vadd.f32 %v237, %v316
  %v318 = vpop.f32.mrb[0].mxu0
  %319 = vdwg.mxu0
  %vm320 = vcmask 89088
  %321 = vst.msk [vmem:[%s7] sm:$0xff] %vm320, %v312
  %322 = vst.msk [vmem:[%s7 + $0x8] sm:$0xff] %vm320, %v317
  // Predicated region
  $region30: #{_rcnn_forward_impl.3} parent=0 // pred_check
    _
  $region31: #{_rcnn_forward_impl.3} parent=0 // pred_check_branch
    %324 = sbr.rel (0) target = $region33
  $region32: #{_rcnn_forward_impl.3} parent=0 // pred_region
    _
  $region33: #{_rcnn_forward_impl.3} parent=0 // pred_fallthru
    _
  // Predicated region
  $region34: #{_rcnn_forward_impl.3} parent=0 // pred_check
    _
  $region35: #{_rcnn_forward_impl.3} parent=0 // pred_check_branch
    %326 = sbr.rel (0) target = $region37
  $region36: #{_rcnn_forward_impl.3} parent=0 // pred_region
    _
  $region37: #{_rcnn_forward_impl.3} parent=0 // pred_fallthru
    _

</llo_original>
